<compile_context>
chip_gen: v5e
topology: v5e:2x2
jax: 0.10.0
libtpu: 0.0.40
codegen_flags: <defaults>
</compile_context>

<pallas_src>
import functools

import jax
import jax.numpy as jnp
from jax.experimental import pallas as pl
from jax.experimental.pallas import tpu as pltpu


# ----------------------------- Fused kernel ---------------------------------
def fused_encdec_kernel(src_ids_ref, trg_ids_ref,
                        e_gr_ref, e_gz_ref, e_gn_ref, e_whh_ref, e_bhn_ref,
                        d_gr_ref, d_gz_ref, d_gn_ref, d_whh_ref, d_bhn_ref,
                        wout_ref, bout_ref, out_ref,
                        *, S, Tm1, B, H):
    """Everything-in-one kernel: encoder GRU -> decoder GRU -> projection.

    src_ids_ref / trg_ids_ref : SMEM int32, flattened (S*B,) / (Tm1*B,)
    *_g{r,z,n}_ref            : VMEM (Vpad, H) per-gate lookup tables
                                (embedding row @ W_ih_gate + folded biases)
    *_whh_ref                 : VMEM (3, H, H) hidden-to-hidden weights [r|z|n]
    *_bhn_ref                 : VMEM (1, H) n-gate hidden bias (gated by r)
    wout_ref / bout_ref       : VMEM (H, 128) / (1, 128) lane-dense projection
    out_ref                   : VMEM (T, B, 128) padded output slab
    """
    f32 = jnp.float32

    def gate_rows(tab_ref, ids_ref, t):
        # Gather the per-gate precomputed input activation for every batch row
        # of step t: a dynamic (1, H) row load per token id from SMEM.
        rows = [tab_ref[pl.ds(ids_ref[t * B + b], 1), :] for b in range(B)]
        return rows[0] if B == 1 else jnp.concatenate(rows, axis=0)

    def run_gru(ids_ref, gr_ref, gz_ref, gn_ref, whh_ref, bhn_ref,
                h0, n_steps, collect):
        # Load recurrent weights once; hoist the bhn broadcast out of the loop.
        whh_r = whh_ref[0]
        whh_z = whh_ref[1]
        whh_n = whh_ref[2]
        bhn = jnp.broadcast_to(bhn_ref[...], (B, H))

        h = h0
        hs = []
        for t in range(n_steps):              # static trip count, unrolled
            gi_r = gate_rows(gr_ref, ids_ref, t)
            gi_z = gate_rows(gz_ref, ids_ref, t)
            gi_n = gate_rows(gn_ref, ids_ref, t)
            gh_r = jnp.dot(h, whh_r, preferred_element_type=f32)
            gh_z = jnp.dot(h, whh_z, preferred_element_type=f32)
            gh_n = jnp.dot(h, whh_n, preferred_element_type=f32)
            r = jax.nn.sigmoid(gi_r + gh_r)
            z = jax.nn.sigmoid(gi_z + gh_z)
            n = jnp.tanh(gi_n + r * (gh_n + bhn))
            h = (1.0 - z) * n + z * h
            if collect:
                hs.append(h)
        return h, hs

    # --- encoder recurrence (h0 = 0) ---
    h_enc, _ = run_gru(src_ids_ref, e_gr_ref, e_gz_ref, e_gn_ref,
                       e_whh_ref, e_bhn_ref,
                       jnp.zeros((B, H), f32), S, collect=False)

    # --- decoder recurrence (teacher forcing: inputs are trg[0 : T-1]) ---
    _, hs = run_gru(trg_ids_ref, d_gr_ref, d_gz_ref, d_gn_ref,
                    d_whh_ref, d_bhn_ref,
                    h_enc, Tm1, collect=True)

    # --- output projection, hoisted out of the serial loop, lane-dense ---
    h_seq = jnp.concatenate(hs, axis=0)                               # (Tm1*B, H)
    logits = (jnp.dot(h_seq, wout_ref[...], preferred_element_type=f32)
              + bout_ref[...])                                        # (Tm1*B, Vp)
    Vp = out_ref.shape[-1]
    # Row 0 of the outputs stays zero (as in the reference module); one full,
    # unmasked store of the whole padded slab.
    out_ref[...] = jnp.concatenate(
        [jnp.zeros((1, B, Vp), f32), logits.reshape(Tm1, B, Vp)], axis=0)


# ----------------------------- Forward wrapper -------------------------------
def encoder_decoder_forward(params, src, trg):
    """Pallas EncoderDecoder forward (teacher forcing fixed to True)."""
    if src.ndim == 1:
        src = src[:, None]
    if trg.ndim == 1:
        trg = trg[:, None]
    S, B = src.shape
    T = trg.shape[0]
    Tm1 = T - 1
    H = params["enc_emb"].shape[-1]
    V = params["dec_out_w"].shape[-1]
    Vp = ((V + 127) // 128) * 128            # lane-dense projection width

    # Fold embedding + input-gate matmul + biases into per-gate lookup tables.
    # (Parameter-only preprocessing: cost is O(vocab * H^2), independent of the
    #  sequence length, and all tables trivially fit VMEM.)
    def gi_tables(emb, wih, bih, bhh):
        tr = emb @ wih[0] + bih[0] + bhh[0]          # r gate: fold b_ih + b_hh
        tz = emb @ wih[1] + bih[1] + bhh[1]          # z gate: fold b_ih + b_hh
        tn = emb @ wih[2] + bih[2]                   # n gate: b_hh_n stays gated by r
        pad = (-emb.shape[0]) % 8                    # sublane-align the vocab axis
        if pad:
            tr, tz, tn = [jnp.pad(t, ((0, pad), (0, 0))) for t in (tr, tz, tn)]
        return tr, tz, tn

    e_gr, e_gz, e_gn = gi_tables(params["enc_emb"], params["enc_wih"],
                                 params["enc_bih"], params["enc_bhh"])
    d_gr, d_gz, d_gn = gi_tables(params["dec_emb"], params["dec_wih"],
                                 params["dec_bih"], params["dec_bhh"])

    wout_p = jnp.pad(params["dec_out_w"], ((0, 0), (0, Vp - V)))
    bout_p = jnp.pad(params["dec_out_b"], ((0, 0), (0, Vp - V)))

    src_ids = src.reshape(-1).astype(jnp.int32)          # (S*B,)  row-major
    trg_ids = trg[:-1].reshape(-1).astype(jnp.int32)     # (Tm1*B,)

    kernel = functools.partial(fused_encdec_kernel, S=S, Tm1=Tm1, B=B, H=H)

    smem = pltpu.MemorySpace.SMEM
    vmem = pltpu.MemorySpace.VMEM
    out_padded = pl.pallas_call(
        kernel,
        out_shape=jax.ShapeDtypeStruct((T, B, Vp), jnp.float32),
        in_specs=[pl.BlockSpec(memory_space=smem),
                  pl.BlockSpec(memory_space=smem)]
                 + [pl.BlockSpec(memory_space=vmem) for _ in range(12)],
        out_specs=pl.BlockSpec(memory_space=vmem),
    )(src_ids, trg_ids,
      e_gr, e_gz, e_gn, params["enc_whh"], params["enc_bhh"][2],
      d_gr, d_gz, d_gn, params["dec_whh"], params["dec_bhh"][2],
      wout_p, bout_p)

    return out_padded[:, :, :V]                           # (T, B, V)


# ----------------------------- Pure-JAX reference ----------------------------
def _gru_cell_ref(x, h, wih, whh, bih, bhh):
    r = jax.nn.sigmoid(x @ wih[0] + bih[0] + h @ whh[0] + bhh[0])
    z = jax.nn.sigmoid(x @ wih[1] + bih[1] + h @ whh[1] + bhh[1])
    n = jnp.tanh(x @ wih[2] + bih[2] + r * (h @ whh[2] + bhh[2]))
    return (1.0 - z) * n + z * h


def encoder_decoder_ref(params, src, trg):
    T, B = trg.shape
    H = params["enc_emb"].shape[-1]
    V_out = params["dec_out_w"].shape[-1]

    src_emb = jnp.take(params["enc_emb"], src, axis=0)
    h = jnp.zeros((B, H), jnp.float32)
    for t in range(src.shape[0]):
        h = _gru_cell_ref(src_emb[t], h, params["enc_wih"], params["enc_whh"],
                          params["enc_bih"], params["enc_bhh"])

    outputs = [jnp.zeros((B, V_out), jnp.float32)]
    dec_emb = jnp.take(params["dec_emb"], trg[:-1], axis=0)
    for t in range(T - 1):
        h = _gru_cell_ref(dec_emb[t], h, params["dec_wih"], params["dec_whh"],
                          params["dec_bih"], params["dec_bhh"])
        outputs.append(h @ params["dec_out_w"] + params["dec_out_b"][0])
    return jnp.stack(outputs, axis=0)


# ----------------------------- Parameter init --------------------------------
def init_params(key, in_vocab, out_vocab, hidden):
    ks = jax.random.split(key, 12)
    s = 1.0 / jnp.sqrt(hidden)
    u = lambda k, shape: jax.random.uniform(k, shape, jnp.float32, -s, s)
    return {
        "enc_emb": jax.random.normal(ks[0], (in_vocab, hidden), jnp.float32),
        "enc_wih": u(ks[1], (3, hidden, hidden)),
        "enc_whh": u(ks[2], (3, hidden, hidden)),
        "enc_bih": u(ks[3], (3, 1, hidden)),
        "enc_bhh": u(ks[4], (3, 1, hidden)),
        "dec_emb": jax.random.normal(ks[5], (out_vocab, hidden), jnp.float32),
        "dec_wih": u(ks[6], (3, hidden, hidden)),
        "dec_whh": u(ks[7], (3, hidden, hidden)),
        "dec_bih": u(ks[8], (3, 1, hidden)),
        "dec_bhh": u(ks[9], (3, 1, hidden)),
        "dec_out_w": u(ks[10], (hidden, out_vocab)),
        "dec_out_b": u(ks[11], (1, out_vocab)),
    }


if __name__ == "__main__":
    HIDDEN = 32
    IN_VOCAB, OUT_VOCAB = 13, 11
    S, T, B = 10, 8, 2

    key = jax.random.PRNGKey(0)
    kp, ks, kt = jax.random.split(key, 3)
    params = init_params(kp, IN_VOCAB, OUT_VOCAB, HIDDEN)
    src = jax.random.randint(ks, (S, B), 0, IN_VOCAB, jnp.int32)
    trg = jax.random.randint(kt, (T, B), 0, OUT_VOCAB, jnp.int32)

    fwd = jax.jit(encoder_decoder_forward)
    out = jax.block_until_ready(fwd(params, src, trg))

    ref = encoder_decoder_ref(params, src, trg)
    assert out.shape == (T, B, OUT_VOCAB), out.shape
    assert jnp.allclose(out, ref, atol=1e-4, rtol=1e-4), \
        float(jnp.max(jnp.abs(out - ref)))

    print("KERNEL_OK")
</pallas_src>

<mosaic_0001>
module attributes {stable_mosaic.version = 11 : i64} {
  func.func @fused_encdec_kernel(%arg0: memref<20xi32, #tpu.memory_space<smem>>, %arg1: memref<14xi32, #tpu.memory_space<smem>>, %arg2: memref<16x32xf32, #tpu.memory_space<vmem>>, %arg3: memref<16x32xf32, #tpu.memory_space<vmem>>, %arg4: memref<16x32xf32, #tpu.memory_space<vmem>>, %arg5: memref<3x32x32xf32, #tpu.memory_space<vmem>>, %arg6: memref<1x32xf32, #tpu.memory_space<vmem>>, %arg7: memref<16x32xf32, #tpu.memory_space<vmem>>, %arg8: memref<16x32xf32, #tpu.memory_space<vmem>>, %arg9: memref<16x32xf32, #tpu.memory_space<vmem>>, %arg10: memref<3x32x32xf32, #tpu.memory_space<vmem>>, %arg11: memref<1x32xf32, #tpu.memory_space<vmem>>, %arg12: memref<32x128xf32, #tpu.memory_space<vmem>>, %arg13: memref<1x128xf32, #tpu.memory_space<vmem>>, %arg14: memref<8x2x128xf32, #tpu.memory_space<vmem>>) attributes {dimension_semantics = [], scalar_prefetch = 0 : i64, scratch_operands = 0 : i64, tpu.core_type = #tpu.core_type<tc>} {
    %cst = arith.constant 0.000000e+00 : f32
    %0 = vector.broadcast %cst : f32 to vector<2x32xf32>
    %c0 = arith.constant 0 : index
    %c0_0 = arith.constant 0 : index
    %c0_1 = arith.constant 0 : index
    %1 = vector.load %arg5[%c0, %c0_0, %c0_1] : memref<3x32x32xf32, #tpu.memory_space<vmem>>, vector<1x32x32xf32>
    %2 = vector.shape_cast %1 : vector<1x32x32xf32> to vector<32x32xf32>
    %c1 = arith.constant 1 : index
    %c0_2 = arith.constant 0 : index
    %c0_3 = arith.constant 0 : index
    %3 = vector.load %arg5[%c1, %c0_2, %c0_3] : memref<3x32x32xf32, #tpu.memory_space<vmem>>, vector<1x32x32xf32>
    %4 = vector.shape_cast %3 : vector<1x32x32xf32> to vector<32x32xf32>
    %c2 = arith.constant 2 : index
    %c0_4 = arith.constant 0 : index
    %c0_5 = arith.constant 0 : index
    %5 = vector.load %arg5[%c2, %c0_4, %c0_5] : memref<3x32x32xf32, #tpu.memory_space<vmem>>, vector<1x32x32xf32>
    %6 = vector.shape_cast %5 : vector<1x32x32xf32> to vector<32x32xf32>
    %c0_6 = arith.constant 0 : index
    %c0_7 = arith.constant 0 : index
    %7 = vector.load %arg6[%c0_6, %c0_7] : memref<1x32xf32, #tpu.memory_space<vmem>>, vector<1x32xf32>
    %8 = vector.shape_cast %7 : vector<1x32xf32> to vector<1x32xf32>
    %9 = vector.broadcast %8 : vector<1x32xf32> to vector<2x32xf32>
    %c0_8 = arith.constant 0 : index
    %10 = memref.load %arg0[%c0_8] : memref<20xi32, #tpu.memory_space<smem>>
    %11 = arith.index_cast %10 : i32 to index
    %c0_9 = arith.constant 0 : index
    %12 = vector.load %arg2[%11, %c0_9] : memref<16x32xf32, #tpu.memory_space<vmem>>, vector<1x32xf32>
    %c1_10 = arith.constant 1 : index
    %13 = memref.load %arg0[%c1_10] : memref<20xi32, #tpu.memory_space<smem>>
    %14 = arith.index_cast %13 : i32 to index
    %c0_11 = arith.constant 0 : index
    %15 = vector.load %arg2[%14, %c0_11] : memref<16x32xf32, #tpu.memory_space<vmem>>, vector<1x32xf32>
    %16 = tpu.concatenate %12, %15 in 0 : vector<1x32xf32>, vector<1x32xf32> -> vector<2x32xf32>
    %c0_12 = arith.constant 0 : index
    %17 = memref.load %arg0[%c0_12] : memref<20xi32, #tpu.memory_space<smem>>
    %18 = arith.index_cast %17 : i32 to index
    %c0_13 = arith.constant 0 : index
    %19 = vector.load %arg3[%18, %c0_13] : memref<16x32xf32, #tpu.memory_space<vmem>>, vector<1x32xf32>
    %c1_14 = arith.constant 1 : index
    %20 = memref.load %arg0[%c1_14] : memref<20xi32, #tpu.memory_space<smem>>
    %21 = arith.index_cast %20 : i32 to index
    %c0_15 = arith.constant 0 : index
    %22 = vector.load %arg3[%21, %c0_15] : memref<16x32xf32, #tpu.memory_space<vmem>>, vector<1x32xf32>
    %23 = tpu.concatenate %19, %22 in 0 : vector<1x32xf32>, vector<1x32xf32> -> vector<2x32xf32>
    %c0_16 = arith.constant 0 : index
    %24 = memref.load %arg0[%c0_16] : memref<20xi32, #tpu.memory_space<smem>>
    %25 = arith.index_cast %24 : i32 to index
    %c0_17 = arith.constant 0 : index
    %26 = vector.load %arg4[%25, %c0_17] : memref<16x32xf32, #tpu.memory_space<vmem>>, vector<1x32xf32>
    %c1_18 = arith.constant 1 : index
    %27 = memref.load %arg0[%c1_18] : memref<20xi32, #tpu.memory_space<smem>>
    %28 = arith.index_cast %27 : i32 to index
    %c0_19 = arith.constant 0 : index
    %29 = vector.load %arg4[%28, %c0_19] : memref<16x32xf32, #tpu.memory_space<vmem>>, vector<1x32xf32>
    %30 = tpu.concatenate %26, %29 in 0 : vector<1x32xf32>, vector<1x32xf32> -> vector<2x32xf32>
    %cst_20 = arith.constant dense<0.000000e+00> : vector<2x32xf32>
    %31 = tpu.matmul %0, %2, %cst_20 {dimension_numbers = #tpu.dot_dimension_numbers<[1], [0], [0], [1], [0, 0, 1, 1], [], []>} : vector<2x32xf32>, vector<32x32xf32>, vector<2x32xf32> -> vector<2x32xf32>
    %cst_21 = arith.constant dense<0.000000e+00> : vector<2x32xf32>
    %32 = tpu.matmul %0, %4, %cst_21 {dimension_numbers = #tpu.dot_dimension_numbers<[1], [0], [0], [1], [0, 0, 1, 1], [], []>} : vector<2x32xf32>, vector<32x32xf32>, vector<2x32xf32> -> vector<2x32xf32>
    %cst_22 = arith.constant dense<0.000000e+00> : vector<2x32xf32>
    %33 = tpu.matmul %0, %6, %cst_22 {dimension_numbers = #tpu.dot_dimension_numbers<[1], [0], [0], [1], [0, 0, 1, 1], [], []>} : vector<2x32xf32>, vector<32x32xf32>, vector<2x32xf32> -> vector<2x32xf32>
    %34 = arith.addf %16, %31 : vector<2x32xf32>
    %35 = arith.negf %34 : vector<2x32xf32>
    %36 = math.exp %35 : vector<2x32xf32>
    %cst_23 = arith.constant 1.000000e+00 : f32
    %37 = vector.broadcast %cst_23 : f32 to vector<2x32xf32>
    %38 = arith.addf %37, %36 : vector<2x32xf32>
    %39 = arith.divf %37, %38 : vector<2x32xf32>
    %40 = arith.addf %23, %32 : vector<2x32xf32>
    %41 = arith.negf %40 : vector<2x32xf32>
    %42 = math.exp %41 : vector<2x32xf32>
    %cst_24 = arith.constant 1.000000e+00 : f32
    %43 = vector.broadcast %cst_24 : f32 to vector<2x32xf32>
    %44 = arith.addf %43, %42 : vector<2x32xf32>
    %45 = arith.divf %43, %44 : vector<2x32xf32>
    %46 = arith.addf %33, %9 : vector<2x32xf32>
    %47 = arith.mulf %39, %46 : vector<2x32xf32>
    %48 = arith.addf %30, %47 : vector<2x32xf32>
    %49 = math.tanh %48 : vector<2x32xf32>
    %cst_25 = arith.constant 1.000000e+00 : f32
    %50 = vector.broadcast %cst_25 : f32 to vector<2x32xf32>
    %51 = arith.subf %50, %45 : vector<2x32xf32>
    %52 = arith.mulf %51, %49 : vector<2x32xf32>
    %53 = arith.mulf %45, %0 : vector<2x32xf32>
    %54 = arith.addf %52, %53 : vector<2x32xf32>
    %c2_26 = arith.constant 2 : index
    %55 = memref.load %arg0[%c2_26] : memref<20xi32, #tpu.memory_space<smem>>
    %56 = arith.index_cast %55 : i32 to index
    %c0_27 = arith.constant 0 : index
    %57 = vector.load %arg2[%56, %c0_27] : memref<16x32xf32, #tpu.memory_space<vmem>>, vector<1x32xf32>
    %c3 = arith.constant 3 : index
    %58 = memref.load %arg0[%c3] : memref<20xi32, #tpu.memory_space<smem>>
    %59 = arith.index_cast %58 : i32 to index
    %c0_28 = arith.constant 0 : index
    %60 = vector.load %arg2[%59, %c0_28] : memref<16x32xf32, #tpu.memory_space<vmem>>, vector<1x32xf32>
    %61 = tpu.concatenate %57, %60 in 0 : vector<1x32xf32>, vector<1x32xf32> -> vector<2x32xf32>
    %c2_29 = arith.constant 2 : index
    %62 = memref.load %arg0[%c2_29] : memref<20xi32, #tpu.memory_space<smem>>
    %63 = arith.index_cast %62 : i32 to index
    %c0_30 = arith.constant 0 : index
    %64 = vector.load %arg3[%63, %c0_30] : memref<16x32xf32, #tpu.memory_space<vmem>>, vector<1x32xf32>
    %c3_31 = arith.constant 3 : index
    %65 = memref.load %arg0[%c3_31] : memref<20xi32, #tpu.memory_space<smem>>
    %66 = arith.index_cast %65 : i32 to index
    %c0_32 = arith.constant 0 : index
    %67 = vector.load %arg3[%66, %c0_32] : memref<16x32xf32, #tpu.memory_space<vmem>>, vector<1x32xf32>
    %68 = tpu.concatenate %64, %67 in 0 : vector<1x32xf32>, vector<1x32xf32> -> vector<2x32xf32>
    %c2_33 = arith.constant 2 : index
    %69 = memref.load %arg0[%c2_33] : memref<20xi32, #tpu.memory_space<smem>>
    %70 = arith.index_cast %69 : i32 to index
    %c0_34 = arith.constant 0 : index
    %71 = vector.load %arg4[%70, %c0_34] : memref<16x32xf32, #tpu.memory_space<vmem>>, vector<1x32xf32>
    %c3_35 = arith.constant 3 : index
    %72 = memref.load %arg0[%c3_35] : memref<20xi32, #tpu.memory_space<smem>>
    %73 = arith.index_cast %72 : i32 to index
    %c0_36 = arith.constant 0 : index
    %74 = vector.load %arg4[%73, %c0_36] : memref<16x32xf32, #tpu.memory_space<vmem>>, vector<1x32xf32>
    %75 = tpu.concatenate %71, %74 in 0 : vector<1x32xf32>, vector<1x32xf32> -> vector<2x32xf32>
    %cst_37 = arith.constant dense<0.000000e+00> : vector<2x32xf32>
    %76 = tpu.matmul %54, %2, %cst_37 {dimension_numbers = #tpu.dot_dimension_numbers<[1], [0], [0], [1], [0, 0, 1, 1], [], []>} : vector<2x32xf32>, vector<32x32xf32>, vector<2x32xf32> -> vector<2x32xf32>
    %cst_38 = arith.constant dense<0.000000e+00> : vector<2x32xf32>
    %77 = tpu.matmul %54, %4, %cst_38 {dimension_numbers = #tpu.dot_dimension_numbers<[1], [0], [0], [1], [0, 0, 1, 1], [], []>} : vector<2x32xf32>, vector<32x32xf32>, vector<2x32xf32> -> vector<2x32xf32>
    %cst_39 = arith.constant dense<0.000000e+00> : vector<2x32xf32>
    %78 = tpu.matmul %54, %6, %cst_39 {dimension_numbers = #tpu.dot_dimension_numbers<[1], [0], [0], [1], [0, 0, 1, 1], [], []>} : vector<2x32xf32>, vector<32x32xf32>, vector<2x32xf32> -> vector<2x32xf32>
    %79 = arith.addf %61, %76 : vector<2x32xf32>
    %80 = arith.negf %79 : vector<2x32xf32>
    %81 = math.exp %80 : vector<2x32xf32>
    %cst_40 = arith.constant 1.000000e+00 : f32
    %82 = vector.broadcast %cst_40 : f32 to vector<2x32xf32>
    %83 = arith.addf %82, %81 : vector<2x32xf32>
    %84 = arith.divf %82, %83 : vector<2x32xf32>
    %85 = arith.addf %68, %77 : vector<2x32xf32>
    %86 = arith.negf %85 : vector<2x32xf32>
    %87 = math.exp %86 : vector<2x32xf32>
    %cst_41 = arith.constant 1.000000e+00 : f32
    %88 = vector.broadcast %cst_41 : f32 to vector<2x32xf32>
    %89 = arith.addf %88, %87 : vector<2x32xf32>
    %90 = arith.divf %88, %89 : vector<2x32xf32>
    %91 = arith.addf %78, %9 : vector<2x32xf32>
    %92 = arith.mulf %84, %91 : vector<2x32xf32>
    %93 = arith.addf %75, %92 : vector<2x32xf32>
    %94 = math.tanh %93 : vector<2x32xf32>
    %cst_42 = arith.constant 1.000000e+00 : f32
    %95 = vector.broadcast %cst_42 : f32 to vector<2x32xf32>
    %96 = arith.subf %95, %90 : vector<2x32xf32>
    %97 = arith.mulf %96, %94 : vector<2x32xf32>
    %98 = arith.mulf %90, %54 : vector<2x32xf32>
    %99 = arith.addf %97, %98 : vector<2x32xf32>
    %c4 = arith.constant 4 : index
    %100 = memref.load %arg0[%c4] : memref<20xi32, #tpu.memory_space<smem>>
    %101 = arith.index_cast %100 : i32 to index
    %c0_43 = arith.constant 0 : index
    %102 = vector.load %arg2[%101, %c0_43] : memref<16x32xf32, #tpu.memory_space<vmem>>, vector<1x32xf32>
    %c5 = arith.constant 5 : index
    %103 = memref.load %arg0[%c5] : memref<20xi32, #tpu.memory_space<smem>>
    %104 = arith.index_cast %103 : i32 to index
    %c0_44 = arith.constant 0 : index
    %105 = vector.load %arg2[%104, %c0_44] : memref<16x32xf32, #tpu.memory_space<vmem>>, vector<1x32xf32>
    %106 = tpu.concatenate %102, %105 in 0 : vector<1x32xf32>, vector<1x32xf32> -> vector<2x32xf32>
    %c4_45 = arith.constant 4 : index
    %107 = memref.load %arg0[%c4_45] : memref<20xi32, #tpu.memory_space<smem>>
    %108 = arith.index_cast %107 : i32 to index
    %c0_46 = arith.constant 0 : index
    %109 = vector.load %arg3[%108, %c0_46] : memref<16x32xf32, #tpu.memory_space<vmem>>, vector<1x32xf32>
    %c5_47 = arith.constant 5 : index
    %110 = memref.load %arg0[%c5_47] : memref<20xi32, #tpu.memory_space<smem>>
    %111 = arith.index_cast %110 : i32 to index
    %c0_48 = arith.constant 0 : index
    %112 = vector.load %arg3[%111, %c0_48] : memref<16x32xf32, #tpu.memory_space<vmem>>, vector<1x32xf32>
    %113 = tpu.concatenate %109, %112 in 0 : vector<1x32xf32>, vector<1x32xf32> -> vector<2x32xf32>
    %c4_49 = arith.constant 4 : index
    %114 = memref.load %arg0[%c4_49] : memref<20xi32, #tpu.memory_space<smem>>
    %115 = arith.index_cast %114 : i32 to index
    %c0_50 = arith.constant 0 : index
    %116 = vector.load %arg4[%115, %c0_50] : memref<16x32xf32, #tpu.memory_space<vmem>>, vector<1x32xf32>
    %c5_51 = arith.constant 5 : index
    %117 = memref.load %arg0[%c5_51] : memref<20xi32, #tpu.memory_space<smem>>
    %118 = arith.index_cast %117 : i32 to index
    %c0_52 = arith.constant 0 : index
    %119 = vector.load %arg4[%118, %c0_52] : memref<16x32xf32, #tpu.memory_space<vmem>>, vector<1x32xf32>
    %120 = tpu.concatenate %116, %119 in 0 : vector<1x32xf32>, vector<1x32xf32> -> vector<2x32xf32>
    %cst_53 = arith.constant dense<0.000000e+00> : vector<2x32xf32>
    %121 = tpu.matmul %99, %2, %cst_53 {dimension_numbers = #tpu.dot_dimension_numbers<[1], [0], [0], [1], [0, 0, 1, 1], [], []>} : vector<2x32xf32>, vector<32x32xf32>, vector<2x32xf32> -> vector<2x32xf32>
    %cst_54 = arith.constant dense<0.000000e+00> : vector<2x32xf32>
    %122 = tpu.matmul %99, %4, %cst_54 {dimension_numbers = #tpu.dot_dimension_numbers<[1], [0], [0], [1], [0, 0, 1, 1], [], []>} : vector<2x32xf32>, vector<32x32xf32>, vector<2x32xf32> -> vector<2x32xf32>
    %cst_55 = arith.constant dense<0.000000e+00> : vector<2x32xf32>
    %123 = tpu.matmul %99, %6, %cst_55 {dimension_numbers = #tpu.dot_dimension_numbers<[1], [0], [0], [1], [0, 0, 1, 1], [], []>} : vector<2x32xf32>, vector<32x32xf32>, vector<2x32xf32> -> vector<2x32xf32>
    %124 = arith.addf %106, %121 : vector<2x32xf32>
    %125 = arith.negf %124 : vector<2x32xf32>
    %126 = math.exp %125 : vector<2x32xf32>
    %cst_56 = arith.constant 1.000000e+00 : f32
    %127 = vector.broadcast %cst_56 : f32 to vector<2x32xf32>
    %128 = arith.addf %127, %126 : vector<2x32xf32>
    %129 = arith.divf %127, %128 : vector<2x32xf32>
    %130 = arith.addf %113, %122 : vector<2x32xf32>
    %131 = arith.negf %130 : vector<2x32xf32>
    %132 = math.exp %131 : vector<2x32xf32>
    %cst_57 = arith.constant 1.000000e+00 : f32
    %133 = vector.broadcast %cst_57 : f32 to vector<2x32xf32>
    %134 = arith.addf %133, %132 : vector<2x32xf32>
    %135 = arith.divf %133, %134 : vector<2x32xf32>
    %136 = arith.addf %123, %9 : vector<2x32xf32>
    %137 = arith.mulf %129, %136 : vector<2x32xf32>
    %138 = arith.addf %120, %137 : vector<2x32xf32>
    %139 = math.tanh %138 : vector<2x32xf32>
    %cst_58 = arith.constant 1.000000e+00 : f32
    %140 = vector.broadcast %cst_58 : f32 to vector<2x32xf32>
    %141 = arith.subf %140, %135 : vector<2x32xf32>
    %142 = arith.mulf %141, %139 : vector<2x32xf32>
    %143 = arith.mulf %135, %99 : vector<2x32xf32>
    %144 = arith.addf %142, %143 : vector<2x32xf32>
    %c6 = arith.constant 6 : index
    %145 = memref.load %arg0[%c6] : memref<20xi32, #tpu.memory_space<smem>>
    %146 = arith.index_cast %145 : i32 to index
    %c0_59 = arith.constant 0 : index
    %147 = vector.load %arg2[%146, %c0_59] : memref<16x32xf32, #tpu.memory_space<vmem>>, vector<1x32xf32>
    %c7 = arith.constant 7 : index
    %148 = memref.load %arg0[%c7] : memref<20xi32, #tpu.memory_space<smem>>
    %149 = arith.index_cast %148 : i32 to index
    %c0_60 = arith.constant 0 : index
    %150 = vector.load %arg2[%149, %c0_60] : memref<16x32xf32, #tpu.memory_space<vmem>>, vector<1x32xf32>
    %151 = tpu.concatenate %147, %150 in 0 : vector<1x32xf32>, vector<1x32xf32> -> vector<2x32xf32>
    %c6_61 = arith.constant 6 : index
    %152 = memref.load %arg0[%c6_61] : memref<20xi32, #tpu.memory_space<smem>>
    %153 = arith.index_cast %152 : i32 to index
    %c0_62 = arith.constant 0 : index
    %154 = vector.load %arg3[%153, %c0_62] : memref<16x32xf32, #tpu.memory_space<vmem>>, vector<1x32xf32>
    %c7_63 = arith.constant 7 : index
    %155 = memref.load %arg0[%c7_63] : memref<20xi32, #tpu.memory_space<smem>>
    %156 = arith.index_cast %155 : i32 to index
    %c0_64 = arith.constant 0 : index
    %157 = vector.load %arg3[%156, %c0_64] : memref<16x32xf32, #tpu.memory_space<vmem>>, vector<1x32xf32>
    %158 = tpu.concatenate %154, %157 in 0 : vector<1x32xf32>, vector<1x32xf32> -> vector<2x32xf32>
    %c6_65 = arith.constant 6 : index
    %159 = memref.load %arg0[%c6_65] : memref<20xi32, #tpu.memory_space<smem>>
    %160 = arith.index_cast %159 : i32 to index
    %c0_66 = arith.constant 0 : index
    %161 = vector.load %arg4[%160, %c0_66] : memref<16x32xf32, #tpu.memory_space<vmem>>, vector<1x32xf32>
    %c7_67 = arith.constant 7 : index
    %162 = memref.load %arg0[%c7_67] : memref<20xi32, #tpu.memory_space<smem>>
    %163 = arith.index_cast %162 : i32 to index
    %c0_68 = arith.constant 0 : index
    %164 = vector.load %arg4[%163, %c0_68] : memref<16x32xf32, #tpu.memory_space<vmem>>, vector<1x32xf32>
    %165 = tpu.concatenate %161, %164 in 0 : vector<1x32xf32>, vector<1x32xf32> -> vector<2x32xf32>
    %cst_69 = arith.constant dense<0.000000e+00> : vector<2x32xf32>
    %166 = tpu.matmul %144, %2, %cst_69 {dimension_numbers = #tpu.dot_dimension_numbers<[1], [0], [0], [1], [0, 0, 1, 1], [], []>} : vector<2x32xf32>, vector<32x32xf32>, vector<2x32xf32> -> vector<2x32xf32>
    %cst_70 = arith.constant dense<0.000000e+00> : vector<2x32xf32>
    %167 = tpu.matmul %144, %4, %cst_70 {dimension_numbers = #tpu.dot_dimension_numbers<[1], [0], [0], [1], [0, 0, 1, 1], [], []>} : vector<2x32xf32>, vector<32x32xf32>, vector<2x32xf32> -> vector<2x32xf32>
    %cst_71 = arith.constant dense<0.000000e+00> : vector<2x32xf32>
    %168 = tpu.matmul %144, %6, %cst_71 {dimension_numbers = #tpu.dot_dimension_numbers<[1], [0], [0], [1], [0, 0, 1, 1], [], []>} : vector<2x32xf32>, vector<32x32xf32>, vector<2x32xf32> -> vector<2x32xf32>
    %169 = arith.addf %151, %166 : vector<2x32xf32>
    %170 = arith.negf %169 : vector<2x32xf32>
    %171 = math.exp %170 : vector<2x32xf32>
    %cst_72 = arith.constant 1.000000e+00 : f32
    %172 = vector.broadcast %cst_72 : f32 to vector<2x32xf32>
    %173 = arith.addf %172, %171 : vector<2x32xf32>
    %174 = arith.divf %172, %173 : vector<2x32xf32>
    %175 = arith.addf %158, %167 : vector<2x32xf32>
    %176 = arith.negf %175 : vector<2x32xf32>
    %177 = math.exp %176 : vector<2x32xf32>
    %cst_73 = arith.constant 1.000000e+00 : f32
    %178 = vector.broadcast %cst_73 : f32 to vector<2x32xf32>
    %179 = arith.addf %178, %177 : vector<2x32xf32>
    %180 = arith.divf %178, %179 : vector<2x32xf32>
    %181 = arith.addf %168, %9 : vector<2x32xf32>
    %182 = arith.mulf %174, %181 : vector<2x32xf32>
    %183 = arith.addf %165, %182 : vector<2x32xf32>
    %184 = math.tanh %183 : vector<2x32xf32>
    %cst_74 = arith.constant 1.000000e+00 : f32
    %185 = vector.broadcast %cst_74 : f32 to vector<2x32xf32>
    %186 = arith.subf %185, %180 : vector<2x32xf32>
    %187 = arith.mulf %186, %184 : vector<2x32xf32>
    %188 = arith.mulf %180, %144 : vector<2x32xf32>
    %189 = arith.addf %187, %188 : vector<2x32xf32>
    %c8 = arith.constant 8 : index
    %190 = memref.load %arg0[%c8] : memref<20xi32, #tpu.memory_space<smem>>
    %191 = arith.index_cast %190 : i32 to index
    %c0_75 = arith.constant 0 : index
    %192 = vector.load %arg2[%191, %c0_75] : memref<16x32xf32, #tpu.memory_space<vmem>>, vector<1x32xf32>
    %c9 = arith.constant 9 : index
    %193 = memref.load %arg0[%c9] : memref<20xi32, #tpu.memory_space<smem>>
    %194 = arith.index_cast %193 : i32 to index
    %c0_76 = arith.constant 0 : index
    %195 = vector.load %arg2[%194, %c0_76] : memref<16x32xf32, #tpu.memory_space<vmem>>, vector<1x32xf32>
    %196 = tpu.concatenate %192, %195 in 0 : vector<1x32xf32>, vector<1x32xf32> -> vector<2x32xf32>
    %c8_77 = arith.constant 8 : index
    %197 = memref.load %arg0[%c8_77] : memref<20xi32, #tpu.memory_space<smem>>
    %198 = arith.index_cast %197 : i32 to index
    %c0_78 = arith.constant 0 : index
    %199 = vector.load %arg3[%198, %c0_78] : memref<16x32xf32, #tpu.memory_space<vmem>>, vector<1x32xf32>
    %c9_79 = arith.constant 9 : index
    %200 = memref.load %arg0[%c9_79] : memref<20xi32, #tpu.memory_space<smem>>
    %201 = arith.index_cast %200 : i32 to index
    %c0_80 = arith.constant 0 : index
    %202 = vector.load %arg3[%201, %c0_80] : memref<16x32xf32, #tpu.memory_space<vmem>>, vector<1x32xf32>
    %203 = tpu.concatenate %199, %202 in 0 : vector<1x32xf32>, vector<1x32xf32> -> vector<2x32xf32>
    %c8_81 = arith.constant 8 : index
    %204 = memref.load %arg0[%c8_81] : memref<20xi32, #tpu.memory_space<smem>>
    %205 = arith.index_cast %204 : i32 to index
    %c0_82 = arith.constant 0 : index
    %206 = vector.load %arg4[%205, %c0_82] : memref<16x32xf32, #tpu.memory_space<vmem>>, vector<1x32xf32>
    %c9_83 = arith.constant 9 : index
    %207 = memref.load %arg0[%c9_83] : memref<20xi32, #tpu.memory_space<smem>>
    %208 = arith.index_cast %207 : i32 to index
    %c0_84 = arith.constant 0 : index
    %209 = vector.load %arg4[%208, %c0_84] : memref<16x32xf32, #tpu.memory_space<vmem>>, vector<1x32xf32>
    %210 = tpu.concatenate %206, %209 in 0 : vector<1x32xf32>, vector<1x32xf32> -> vector<2x32xf32>
    %cst_85 = arith.constant dense<0.000000e+00> : vector<2x32xf32>
    %211 = tpu.matmul %189, %2, %cst_85 {dimension_numbers = #tpu.dot_dimension_numbers<[1], [0], [0], [1], [0, 0, 1, 1], [], []>} : vector<2x32xf32>, vector<32x32xf32>, vector<2x32xf32> -> vector<2x32xf32>
    %cst_86 = arith.constant dense<0.000000e+00> : vector<2x32xf32>
    %212 = tpu.matmul %189, %4, %cst_86 {dimension_numbers = #tpu.dot_dimension_numbers<[1], [0], [0], [1], [0, 0, 1, 1], [], []>} : vector<2x32xf32>, vector<32x32xf32>, vector<2x32xf32> -> vector<2x32xf32>
    %cst_87 = arith.constant dense<0.000000e+00> : vector<2x32xf32>
    %213 = tpu.matmul %189, %6, %cst_87 {dimension_numbers = #tpu.dot_dimension_numbers<[1], [0], [0], [1], [0, 0, 1, 1], [], []>} : vector<2x32xf32>, vector<32x32xf32>, vector<2x32xf32> -> vector<2x32xf32>
    %214 = arith.addf %196, %211 : vector<2x32xf32>
    %215 = arith.negf %214 : vector<2x32xf32>
    %216 = math.exp %215 : vector<2x32xf32>
    %cst_88 = arith.constant 1.000000e+00 : f32
    %217 = vector.broadcast %cst_88 : f32 to vector<2x32xf32>
    %218 = arith.addf %217, %216 : vector<2x32xf32>
    %219 = arith.divf %217, %218 : vector<2x32xf32>
    %220 = arith.addf %203, %212 : vector<2x32xf32>
    %221 = arith.negf %220 : vector<2x32xf32>
    %222 = math.exp %221 : vector<2x32xf32>
    %cst_89 = arith.constant 1.000000e+00 : f32
    %223 = vector.broadcast %cst_89 : f32 to vector<2x32xf32>
    %224 = arith.addf %223, %222 : vector<2x32xf32>
    %225 = arith.divf %223, %224 : vector<2x32xf32>
    %226 = arith.addf %213, %9 : vector<2x32xf32>
    %227 = arith.mulf %219, %226 : vector<2x32xf32>
    %228 = arith.addf %210, %227 : vector<2x32xf32>
    %229 = math.tanh %228 : vector<2x32xf32>
    %cst_90 = arith.constant 1.000000e+00 : f32
    %230 = vector.broadcast %cst_90 : f32 to vector<2x32xf32>
    %231 = arith.subf %230, %225 : vector<2x32xf32>
    %232 = arith.mulf %231, %229 : vector<2x32xf32>
    %233 = arith.mulf %225, %189 : vector<2x32xf32>
    %234 = arith.addf %232, %233 : vector<2x32xf32>
    %c10 = arith.constant 10 : index
    %235 = memref.load %arg0[%c10] : memref<20xi32, #tpu.memory_space<smem>>
    %236 = arith.index_cast %235 : i32 to index
    %c0_91 = arith.constant 0 : index
    %237 = vector.load %arg2[%236, %c0_91] : memref<16x32xf32, #tpu.memory_space<vmem>>, vector<1x32xf32>
    %c11 = arith.constant 11 : index
    %238 = memref.load %arg0[%c11] : memref<20xi32, #tpu.memory_space<smem>>
    %239 = arith.index_cast %238 : i32 to index
    %c0_92 = arith.constant 0 : index
    %240 = vector.load %arg2[%239, %c0_92] : memref<16x32xf32, #tpu.memory_space<vmem>>, vector<1x32xf32>
    %241 = tpu.concatenate %237, %240 in 0 : vector<1x32xf32>, vector<1x32xf32> -> vector<2x32xf32>
    %c10_93 = arith.constant 10 : index
    %242 = memref.load %arg0[%c10_93] : memref<20xi32, #tpu.memory_space<smem>>
    %243 = arith.index_cast %242 : i32 to index
    %c0_94 = arith.constant 0 : index
    %244 = vector.load %arg3[%243, %c0_94] : memref<16x32xf32, #tpu.memory_space<vmem>>, vector<1x32xf32>
    %c11_95 = arith.constant 11 : index
    %245 = memref.load %arg0[%c11_95] : memref<20xi32, #tpu.memory_space<smem>>
    %246 = arith.index_cast %245 : i32 to index
    %c0_96 = arith.constant 0 : index
    %247 = vector.load %arg3[%246, %c0_96] : memref<16x32xf32, #tpu.memory_space<vmem>>, vector<1x32xf32>
    %248 = tpu.concatenate %244, %247 in 0 : vector<1x32xf32>, vector<1x32xf32> -> vector<2x32xf32>
    %c10_97 = arith.constant 10 : index
    %249 = memref.load %arg0[%c10_97] : memref<20xi32, #tpu.memory_space<smem>>
    %250 = arith.index_cast %249 : i32 to index
    %c0_98 = arith.constant 0 : index
    %251 = vector.load %arg4[%250, %c0_98] : memref<16x32xf32, #tpu.memory_space<vmem>>, vector<1x32xf32>
    %c11_99 = arith.constant 11 : index
    %252 = memref.load %arg0[%c11_99] : memref<20xi32, #tpu.memory_space<smem>>
    %253 = arith.index_cast %252 : i32 to index
    %c0_100 = arith.constant 0 : index
    %254 = vector.load %arg4[%253, %c0_100] : memref<16x32xf32, #tpu.memory_space<vmem>>, vector<1x32xf32>
    %255 = tpu.concatenate %251, %254 in 0 : vector<1x32xf32>, vector<1x32xf32> -> vector<2x32xf32>
    %cst_101 = arith.constant dense<0.000000e+00> : vector<2x32xf32>
    %256 = tpu.matmul %234, %2, %cst_101 {dimension_numbers = #tpu.dot_dimension_numbers<[1], [0], [0], [1], [0, 0, 1, 1], [], []>} : vector<2x32xf32>, vector<32x32xf32>, vector<2x32xf32> -> vector<2x32xf32>
    %cst_102 = arith.constant dense<0.000000e+00> : vector<2x32xf32>
    %257 = tpu.matmul %234, %4, %cst_102 {dimension_numbers = #tpu.dot_dimension_numbers<[1], [0], [0], [1], [0, 0, 1, 1], [], []>} : vector<2x32xf32>, vector<32x32xf32>, vector<2x32xf32> -> vector<2x32xf32>
    %cst_103 = arith.constant dense<0.000000e+00> : vector<2x32xf32>
    %258 = tpu.matmul %234, %6, %cst_103 {dimension_numbers = #tpu.dot_dimension_numbers<[1], [0], [0], [1], [0, 0, 1, 1], [], []>} : vector<2x32xf32>, vector<32x32xf32>, vector<2x32xf32> -> vector<2x32xf32>
    %259 = arith.addf %241, %256 : vector<2x32xf32>
    %260 = arith.negf %259 : vector<2x32xf32>
    %261 = math.exp %260 : vector<2x32xf32>
    %cst_104 = arith.constant 1.000000e+00 : f32
    %262 = vector.broadcast %cst_104 : f32 to vector<2x32xf32>
    %263 = arith.addf %262, %261 : vector<2x32xf32>
    %264 = arith.divf %262, %263 : vector<2x32xf32>
    %265 = arith.addf %248, %257 : vector<2x32xf32>
    %266 = arith.negf %265 : vector<2x32xf32>
    %267 = math.exp %266 : vector<2x32xf32>
    %cst_105 = arith.constant 1.000000e+00 : f32
    %268 = vector.broadcast %cst_105 : f32 to vector<2x32xf32>
    %269 = arith.addf %268, %267 : vector<2x32xf32>
    %270 = arith.divf %268, %269 : vector<2x32xf32>
    %271 = arith.addf %258, %9 : vector<2x32xf32>
    %272 = arith.mulf %264, %271 : vector<2x32xf32>
    %273 = arith.addf %255, %272 : vector<2x32xf32>
    %274 = math.tanh %273 : vector<2x32xf32>
    %cst_106 = arith.constant 1.000000e+00 : f32
    %275 = vector.broadcast %cst_106 : f32 to vector<2x32xf32>
    %276 = arith.subf %275, %270 : vector<2x32xf32>
    %277 = arith.mulf %276, %274 : vector<2x32xf32>
    %278 = arith.mulf %270, %234 : vector<2x32xf32>
    %279 = arith.addf %277, %278 : vector<2x32xf32>
    %c12 = arith.constant 12 : index
    %280 = memref.load %arg0[%c12] : memref<20xi32, #tpu.memory_space<smem>>
    %281 = arith.index_cast %280 : i32 to index
    %c0_107 = arith.constant 0 : index
    %282 = vector.load %arg2[%281, %c0_107] : memref<16x32xf32, #tpu.memory_space<vmem>>, vector<1x32xf32>
    %c13 = arith.constant 13 : index
    %283 = memref.load %arg0[%c13] : memref<20xi32, #tpu.memory_space<smem>>
    %284 = arith.index_cast %283 : i32 to index
    %c0_108 = arith.constant 0 : index
    %285 = vector.load %arg2[%284, %c0_108] : memref<16x32xf32, #tpu.memory_space<vmem>>, vector<1x32xf32>
    %286 = tpu.concatenate %282, %285 in 0 : vector<1x32xf32>, vector<1x32xf32> -> vector<2x32xf32>
    %c12_109 = arith.constant 12 : index
    %287 = memref.load %arg0[%c12_109] : memref<20xi32, #tpu.memory_space<smem>>
    %288 = arith.index_cast %287 : i32 to index
    %c0_110 = arith.constant 0 : index
    %289 = vector.load %arg3[%288, %c0_110] : memref<16x32xf32, #tpu.memory_space<vmem>>, vector<1x32xf32>
    %c13_111 = arith.constant 13 : index
    %290 = memref.load %arg0[%c13_111] : memref<20xi32, #tpu.memory_space<smem>>
    %291 = arith.index_cast %290 : i32 to index
    %c0_112 = arith.constant 0 : index
    %292 = vector.load %arg3[%291, %c0_112] : memref<16x32xf32, #tpu.memory_space<vmem>>, vector<1x32xf32>
    %293 = tpu.concatenate %289, %292 in 0 : vector<1x32xf32>, vector<1x32xf32> -> vector<2x32xf32>
    %c12_113 = arith.constant 12 : index
    %294 = memref.load %arg0[%c12_113] : memref<20xi32, #tpu.memory_space<smem>>
    %295 = arith.index_cast %294 : i32 to index
    %c0_114 = arith.constant 0 : index
    %296 = vector.load %arg4[%295, %c0_114] : memref<16x32xf32, #tpu.memory_space<vmem>>, vector<1x32xf32>
    %c13_115 = arith.constant 13 : index
    %297 = memref.load %arg0[%c13_115] : memref<20xi32, #tpu.memory_space<smem>>
    %298 = arith.index_cast %297 : i32 to index
    %c0_116 = arith.constant 0 : index
    %299 = vector.load %arg4[%298, %c0_116] : memref<16x32xf32, #tpu.memory_space<vmem>>, vector<1x32xf32>
    %300 = tpu.concatenate %296, %299 in 0 : vector<1x32xf32>, vector<1x32xf32> -> vector<2x32xf32>
    %cst_117 = arith.constant dense<0.000000e+00> : vector<2x32xf32>
    %301 = tpu.matmul %279, %2, %cst_117 {dimension_numbers = #tpu.dot_dimension_numbers<[1], [0], [0], [1], [0, 0, 1, 1], [], []>} : vector<2x32xf32>, vector<32x32xf32>, vector<2x32xf32> -> vector<2x32xf32>
    %cst_118 = arith.constant dense<0.000000e+00> : vector<2x32xf32>
    %302 = tpu.matmul %279, %4, %cst_118 {dimension_numbers = #tpu.dot_dimension_numbers<[1], [0], [0], [1], [0, 0, 1, 1], [], []>} : vector<2x32xf32>, vector<32x32xf32>, vector<2x32xf32> -> vector<2x32xf32>
    %cst_119 = arith.constant dense<0.000000e+00> : vector<2x32xf32>
    %303 = tpu.matmul %279, %6, %cst_119 {dimension_numbers = #tpu.dot_dimension_numbers<[1], [0], [0], [1], [0, 0, 1, 1], [], []>} : vector<2x32xf32>, vector<32x32xf32>, vector<2x32xf32> -> vector<2x32xf32>
    %304 = arith.addf %286, %301 : vector<2x32xf32>
    %305 = arith.negf %304 : vector<2x32xf32>
    %306 = math.exp %305 : vector<2x32xf32>
    %cst_120 = arith.constant 1.000000e+00 : f32
    %307 = vector.broadcast %cst_120 : f32 to vector<2x32xf32>
    %308 = arith.addf %307, %306 : vector<2x32xf32>
    %309 = arith.divf %307, %308 : vector<2x32xf32>
    %310 = arith.addf %293, %302 : vector<2x32xf32>
    %311 = arith.negf %310 : vector<2x32xf32>
    %312 = math.exp %311 : vector<2x32xf32>
    %cst_121 = arith.constant 1.000000e+00 : f32
    %313 = vector.broadcast %cst_121 : f32 to vector<2x32xf32>
    %314 = arith.addf %313, %312 : vector<2x32xf32>
    %315 = arith.divf %313, %314 : vector<2x32xf32>
    %316 = arith.addf %303, %9 : vector<2x32xf32>
    %317 = arith.mulf %309, %316 : vector<2x32xf32>
    %318 = arith.addf %300, %317 : vector<2x32xf32>
    %319 = math.tanh %318 : vector<2x32xf32>
    %cst_122 = arith.constant 1.000000e+00 : f32
    %320 = vector.broadcast %cst_122 : f32 to vector<2x32xf32>
    %321 = arith.subf %320, %315 : vector<2x32xf32>
    %322 = arith.mulf %321, %319 : vector<2x32xf32>
    %323 = arith.mulf %315, %279 : vector<2x32xf32>
    %324 = arith.addf %322, %323 : vector<2x32xf32>
    %c14 = arith.constant 14 : index
    %325 = memref.load %arg0[%c14] : memref<20xi32, #tpu.memory_space<smem>>
    %326 = arith.index_cast %325 : i32 to index
    %c0_123 = arith.constant 0 : index
    %327 = vector.load %arg2[%326, %c0_123] : memref<16x32xf32, #tpu.memory_space<vmem>>, vector<1x32xf32>
    %c15 = arith.constant 15 : index
    %328 = memref.load %arg0[%c15] : memref<20xi32, #tpu.memory_space<smem>>
    %329 = arith.index_cast %328 : i32 to index
    %c0_124 = arith.constant 0 : index
    %330 = vector.load %arg2[%329, %c0_124] : memref<16x32xf32, #tpu.memory_space<vmem>>, vector<1x32xf32>
    %331 = tpu.concatenate %327, %330 in 0 : vector<1x32xf32>, vector<1x32xf32> -> vector<2x32xf32>
    %c14_125 = arith.constant 14 : index
    %332 = memref.load %arg0[%c14_125] : memref<20xi32, #tpu.memory_space<smem>>
    %333 = arith.index_cast %332 : i32 to index
    %c0_126 = arith.constant 0 : index
    %334 = vector.load %arg3[%333, %c0_126] : memref<16x32xf32, #tpu.memory_space<vmem>>, vector<1x32xf32>
    %c15_127 = arith.constant 15 : index
    %335 = memref.load %arg0[%c15_127] : memref<20xi32, #tpu.memory_space<smem>>
    %336 = arith.index_cast %335 : i32 to index
    %c0_128 = arith.constant 0 : index
    %337 = vector.load %arg3[%336, %c0_128] : memref<16x32xf32, #tpu.memory_space<vmem>>, vector<1x32xf32>
    %338 = tpu.concatenate %334, %337 in 0 : vector<1x32xf32>, vector<1x32xf32> -> vector<2x32xf32>
    %c14_129 = arith.constant 14 : index
    %339 = memref.load %arg0[%c14_129] : memref<20xi32, #tpu.memory_space<smem>>
    %340 = arith.index_cast %339 : i32 to index
    %c0_130 = arith.constant 0 : index
    %341 = vector.load %arg4[%340, %c0_130] : memref<16x32xf32, #tpu.memory_space<vmem>>, vector<1x32xf32>
    %c15_131 = arith.constant 15 : index
    %342 = memref.load %arg0[%c15_131] : memref<20xi32, #tpu.memory_space<smem>>
    %343 = arith.index_cast %342 : i32 to index
    %c0_132 = arith.constant 0 : index
    %344 = vector.load %arg4[%343, %c0_132] : memref<16x32xf32, #tpu.memory_space<vmem>>, vector<1x32xf32>
    %345 = tpu.concatenate %341, %344 in 0 : vector<1x32xf32>, vector<1x32xf32> -> vector<2x32xf32>
    %cst_133 = arith.constant dense<0.000000e+00> : vector<2x32xf32>
    %346 = tpu.matmul %324, %2, %cst_133 {dimension_numbers = #tpu.dot_dimension_numbers<[1], [0], [0], [1], [0, 0, 1, 1], [], []>} : vector<2x32xf32>, vector<32x32xf32>, vector<2x32xf32> -> vector<2x32xf32>
    %cst_134 = arith.constant dense<0.000000e+00> : vector<2x32xf32>
    %347 = tpu.matmul %324, %4, %cst_134 {dimension_numbers = #tpu.dot_dimension_numbers<[1], [0], [0], [1], [0, 0, 1, 1], [], []>} : vector<2x32xf32>, vector<32x32xf32>, vector<2x32xf32> -> vector<2x32xf32>
    %cst_135 = arith.constant dense<0.000000e+00> : vector<2x32xf32>
    %348 = tpu.matmul %324, %6, %cst_135 {dimension_numbers = #tpu.dot_dimension_numbers<[1], [0], [0], [1], [0, 0, 1, 1], [], []>} : vector<2x32xf32>, vector<32x32xf32>, vector<2x32xf32> -> vector<2x32xf32>
    %349 = arith.addf %331, %346 : vector<2x32xf32>
    %350 = arith.negf %349 : vector<2x32xf32>
    %351 = math.exp %350 : vector<2x32xf32>
    %cst_136 = arith.constant 1.000000e+00 : f32
    %352 = vector.broadcast %cst_136 : f32 to vector<2x32xf32>
    %353 = arith.addf %352, %351 : vector<2x32xf32>
    %354 = arith.divf %352, %353 : vector<2x32xf32>
    %355 = arith.addf %338, %347 : vector<2x32xf32>
    %356 = arith.negf %355 : vector<2x32xf32>
    %357 = math.exp %356 : vector<2x32xf32>
    %cst_137 = arith.constant 1.000000e+00 : f32
    %358 = vector.broadcast %cst_137 : f32 to vector<2x32xf32>
    %359 = arith.addf %358, %357 : vector<2x32xf32>
    %360 = arith.divf %358, %359 : vector<2x32xf32>
    %361 = arith.addf %348, %9 : vector<2x32xf32>
    %362 = arith.mulf %354, %361 : vector<2x32xf32>
    %363 = arith.addf %345, %362 : vector<2x32xf32>
    %364 = math.tanh %363 : vector<2x32xf32>
    %cst_138 = arith.constant 1.000000e+00 : f32
    %365 = vector.broadcast %cst_138 : f32 to vector<2x32xf32>
    %366 = arith.subf %365, %360 : vector<2x32xf32>
    %367 = arith.mulf %366, %364 : vector<2x32xf32>
    %368 = arith.mulf %360, %324 : vector<2x32xf32>
    %369 = arith.addf %367, %368 : vector<2x32xf32>
    %c16 = arith.constant 16 : index
    %370 = memref.load %arg0[%c16] : memref<20xi32, #tpu.memory_space<smem>>
    %371 = arith.index_cast %370 : i32 to index
    %c0_139 = arith.constant 0 : index
    %372 = vector.load %arg2[%371, %c0_139] : memref<16x32xf32, #tpu.memory_space<vmem>>, vector<1x32xf32>
    %c17 = arith.constant 17 : index
    %373 = memref.load %arg0[%c17] : memref<20xi32, #tpu.memory_space<smem>>
    %374 = arith.index_cast %373 : i32 to index
    %c0_140 = arith.constant 0 : index
    %375 = vector.load %arg2[%374, %c0_140] : memref<16x32xf32, #tpu.memory_space<vmem>>, vector<1x32xf32>
    %376 = tpu.concatenate %372, %375 in 0 : vector<1x32xf32>, vector<1x32xf32> -> vector<2x32xf32>
    %c16_141 = arith.constant 16 : index
    %377 = memref.load %arg0[%c16_141] : memref<20xi32, #tpu.memory_space<smem>>
    %378 = arith.index_cast %377 : i32 to index
    %c0_142 = arith.constant 0 : index
    %379 = vector.load %arg3[%378, %c0_142] : memref<16x32xf32, #tpu.memory_space<vmem>>, vector<1x32xf32>
    %c17_143 = arith.constant 17 : index
    %380 = memref.load %arg0[%c17_143] : memref<20xi32, #tpu.memory_space<smem>>
    %381 = arith.index_cast %380 : i32 to index
    %c0_144 = arith.constant 0 : index
    %382 = vector.load %arg3[%381, %c0_144] : memref<16x32xf32, #tpu.memory_space<vmem>>, vector<1x32xf32>
    %383 = tpu.concatenate %379, %382 in 0 : vector<1x32xf32>, vector<1x32xf32> -> vector<2x32xf32>
    %c16_145 = arith.constant 16 : index
    %384 = memref.load %arg0[%c16_145] : memref<20xi32, #tpu.memory_space<smem>>
    %385 = arith.index_cast %384 : i32 to index
    %c0_146 = arith.constant 0 : index
    %386 = vector.load %arg4[%385, %c0_146] : memref<16x32xf32, #tpu.memory_space<vmem>>, vector<1x32xf32>
    %c17_147 = arith.constant 17 : index
    %387 = memref.load %arg0[%c17_147] : memref<20xi32, #tpu.memory_space<smem>>
    %388 = arith.index_cast %387 : i32 to index
    %c0_148 = arith.constant 0 : index
    %389 = vector.load %arg4[%388, %c0_148] : memref<16x32xf32, #tpu.memory_space<vmem>>, vector<1x32xf32>
    %390 = tpu.concatenate %386, %389 in 0 : vector<1x32xf32>, vector<1x32xf32> -> vector<2x32xf32>
    %cst_149 = arith.constant dense<0.000000e+00> : vector<2x32xf32>
    %391 = tpu.matmul %369, %2, %cst_149 {dimension_numbers = #tpu.dot_dimension_numbers<[1], [0], [0], [1], [0, 0, 1, 1], [], []>} : vector<2x32xf32>, vector<32x32xf32>, vector<2x32xf32> -> vector<2x32xf32>
    %cst_150 = arith.constant dense<0.000000e+00> : vector<2x32xf32>
    %392 = tpu.matmul %369, %4, %cst_150 {dimension_numbers = #tpu.dot_dimension_numbers<[1], [0], [0], [1], [0, 0, 1, 1], [], []>} : vector<2x32xf32>, vector<32x32xf32>, vector<2x32xf32> -> vector<2x32xf32>
    %cst_151 = arith.constant dense<0.000000e+00> : vector<2x32xf32>
    %393 = tpu.matmul %369, %6, %cst_151 {dimension_numbers = #tpu.dot_dimension_numbers<[1], [0], [0], [1], [0, 0, 1, 1], [], []>} : vector<2x32xf32>, vector<32x32xf32>, vector<2x32xf32> -> vector<2x32xf32>
    %394 = arith.addf %376, %391 : vector<2x32xf32>
    %395 = arith.negf %394 : vector<2x32xf32>
    %396 = math.exp %395 : vector<2x32xf32>
    %cst_152 = arith.constant 1.000000e+00 : f32
    %397 = vector.broadcast %cst_152 : f32 to vector<2x32xf32>
    %398 = arith.addf %397, %396 : vector<2x32xf32>
    %399 = arith.divf %397, %398 : vector<2x32xf32>
    %400 = arith.addf %383, %392 : vector<2x32xf32>
    %401 = arith.negf %400 : vector<2x32xf32>
    %402 = math.exp %401 : vector<2x32xf32>
    %cst_153 = arith.constant 1.000000e+00 : f32
    %403 = vector.broadcast %cst_153 : f32 to vector<2x32xf32>
    %404 = arith.addf %403, %402 : vector<2x32xf32>
    %405 = arith.divf %403, %404 : vector<2x32xf32>
    %406 = arith.addf %393, %9 : vector<2x32xf32>
    %407 = arith.mulf %399, %406 : vector<2x32xf32>
    %408 = arith.addf %390, %407 : vector<2x32xf32>
    %409 = math.tanh %408 : vector<2x32xf32>
    %cst_154 = arith.constant 1.000000e+00 : f32
    %410 = vector.broadcast %cst_154 : f32 to vector<2x32xf32>
    %411 = arith.subf %410, %405 : vector<2x32xf32>
    %412 = arith.mulf %411, %409 : vector<2x32xf32>
    %413 = arith.mulf %405, %369 : vector<2x32xf32>
    %414 = arith.addf %412, %413 : vector<2x32xf32>
    %c18 = arith.constant 18 : index
    %415 = memref.load %arg0[%c18] : memref<20xi32, #tpu.memory_space<smem>>
    %416 = arith.index_cast %415 : i32 to index
    %c0_155 = arith.constant 0 : index
    %417 = vector.load %arg2[%416, %c0_155] : memref<16x32xf32, #tpu.memory_space<vmem>>, vector<1x32xf32>
    %c19 = arith.constant 19 : index
    %418 = memref.load %arg0[%c19] : memref<20xi32, #tpu.memory_space<smem>>
    %419 = arith.index_cast %418 : i32 to index
    %c0_156 = arith.constant 0 : index
    %420 = vector.load %arg2[%419, %c0_156] : memref<16x32xf32, #tpu.memory_space<vmem>>, vector<1x32xf32>
    %421 = tpu.concatenate %417, %420 in 0 : vector<1x32xf32>, vector<1x32xf32> -> vector<2x32xf32>
    %c18_157 = arith.constant 18 : index
    %422 = memref.load %arg0[%c18_157] : memref<20xi32, #tpu.memory_space<smem>>
    %423 = arith.index_cast %422 : i32 to index
    %c0_158 = arith.constant 0 : index
    %424 = vector.load %arg3[%423, %c0_158] : memref<16x32xf32, #tpu.memory_space<vmem>>, vector<1x32xf32>
    %c19_159 = arith.constant 19 : index
    %425 = memref.load %arg0[%c19_159] : memref<20xi32, #tpu.memory_space<smem>>
    %426 = arith.index_cast %425 : i32 to index
    %c0_160 = arith.constant 0 : index
    %427 = vector.load %arg3[%426, %c0_160] : memref<16x32xf32, #tpu.memory_space<vmem>>, vector<1x32xf32>
    %428 = tpu.concatenate %424, %427 in 0 : vector<1x32xf32>, vector<1x32xf32> -> vector<2x32xf32>
    %c18_161 = arith.constant 18 : index
    %429 = memref.load %arg0[%c18_161] : memref<20xi32, #tpu.memory_space<smem>>
    %430 = arith.index_cast %429 : i32 to index
    %c0_162 = arith.constant 0 : index
    %431 = vector.load %arg4[%430, %c0_162] : memref<16x32xf32, #tpu.memory_space<vmem>>, vector<1x32xf32>
    %c19_163 = arith.constant 19 : index
    %432 = memref.load %arg0[%c19_163] : memref<20xi32, #tpu.memory_space<smem>>
    %433 = arith.index_cast %432 : i32 to index
    %c0_164 = arith.constant 0 : index
    %434 = vector.load %arg4[%433, %c0_164] : memref<16x32xf32, #tpu.memory_space<vmem>>, vector<1x32xf32>
    %435 = tpu.concatenate %431, %434 in 0 : vector<1x32xf32>, vector<1x32xf32> -> vector<2x32xf32>
    %cst_165 = arith.constant dense<0.000000e+00> : vector<2x32xf32>
    %436 = tpu.matmul %414, %2, %cst_165 {dimension_numbers = #tpu.dot_dimension_numbers<[1], [0], [0], [1], [0, 0, 1, 1], [], []>} : vector<2x32xf32>, vector<32x32xf32>, vector<2x32xf32> -> vector<2x32xf32>
    %cst_166 = arith.constant dense<0.000000e+00> : vector<2x32xf32>
    %437 = tpu.matmul %414, %4, %cst_166 {dimension_numbers = #tpu.dot_dimension_numbers<[1], [0], [0], [1], [0, 0, 1, 1], [], []>} : vector<2x32xf32>, vector<32x32xf32>, vector<2x32xf32> -> vector<2x32xf32>
    %cst_167 = arith.constant dense<0.000000e+00> : vector<2x32xf32>
    %438 = tpu.matmul %414, %6, %cst_167 {dimension_numbers = #tpu.dot_dimension_numbers<[1], [0], [0], [1], [0, 0, 1, 1], [], []>} : vector<2x32xf32>, vector<32x32xf32>, vector<2x32xf32> -> vector<2x32xf32>
    %439 = arith.addf %421, %436 : vector<2x32xf32>
    %440 = arith.negf %439 : vector<2x32xf32>
    %441 = math.exp %440 : vector<2x32xf32>
    %cst_168 = arith.constant 1.000000e+00 : f32
    %442 = vector.broadcast %cst_168 : f32 to vector<2x32xf32>
    %443 = arith.addf %442, %441 : vector<2x32xf32>
    %444 = arith.divf %442, %443 : vector<2x32xf32>
    %445 = arith.addf %428, %437 : vector<2x32xf32>
    %446 = arith.negf %445 : vector<2x32xf32>
    %447 = math.exp %446 : vector<2x32xf32>
    %cst_169 = arith.constant 1.000000e+00 : f32
    %448 = vector.broadcast %cst_169 : f32 to vector<2x32xf32>
    %449 = arith.addf %448, %447 : vector<2x32xf32>
    %450 = arith.divf %448, %449 : vector<2x32xf32>
    %451 = arith.addf %438, %9 : vector<2x32xf32>
    %452 = arith.mulf %444, %451 : vector<2x32xf32>
    %453 = arith.addf %435, %452 : vector<2x32xf32>
    %454 = math.tanh %453 : vector<2x32xf32>
    %cst_170 = arith.constant 1.000000e+00 : f32
    %455 = vector.broadcast %cst_170 : f32 to vector<2x32xf32>
    %456 = arith.subf %455, %450 : vector<2x32xf32>
    %457 = arith.mulf %456, %454 : vector<2x32xf32>
    %458 = arith.mulf %450, %414 : vector<2x32xf32>
    %459 = arith.addf %457, %458 : vector<2x32xf32>
    %c0_171 = arith.constant 0 : index
    %c0_172 = arith.constant 0 : index
    %c0_173 = arith.constant 0 : index
    %460 = vector.load %arg10[%c0_171, %c0_172, %c0_173] : memref<3x32x32xf32, #tpu.memory_space<vmem>>, vector<1x32x32xf32>
    %461 = vector.shape_cast %460 : vector<1x32x32xf32> to vector<32x32xf32>
    %c1_174 = arith.constant 1 : index
    %c0_175 = arith.constant 0 : index
    %c0_176 = arith.constant 0 : index
    %462 = vector.load %arg10[%c1_174, %c0_175, %c0_176] : memref<3x32x32xf32, #tpu.memory_space<vmem>>, vector<1x32x32xf32>
    %463 = vector.shape_cast %462 : vector<1x32x32xf32> to vector<32x32xf32>
    %c2_177 = arith.constant 2 : index
    %c0_178 = arith.constant 0 : index
    %c0_179 = arith.constant 0 : index
    %464 = vector.load %arg10[%c2_177, %c0_178, %c0_179] : memref<3x32x32xf32, #tpu.memory_space<vmem>>, vector<1x32x32xf32>
    %465 = vector.shape_cast %464 : vector<1x32x32xf32> to vector<32x32xf32>
    %c0_180 = arith.constant 0 : index
    %c0_181 = arith.constant 0 : index
    %466 = vector.load %arg11[%c0_180, %c0_181] : memref<1x32xf32, #tpu.memory_space<vmem>>, vector<1x32xf32>
    %467 = vector.shape_cast %466 : vector<1x32xf32> to vector<1x32xf32>
    %468 = vector.broadcast %467 : vector<1x32xf32> to vector<2x32xf32>
    %c0_182 = arith.constant 0 : index
    %469 = memref.load %arg1[%c0_182] : memref<14xi32, #tpu.memory_space<smem>>
    %470 = arith.index_cast %469 : i32 to index
    %c0_183 = arith.constant 0 : index
    %471 = vector.load %arg7[%470, %c0_183] : memref<16x32xf32, #tpu.memory_space<vmem>>, vector<1x32xf32>
    %c1_184 = arith.constant 1 : index
    %472 = memref.load %arg1[%c1_184] : memref<14xi32, #tpu.memory_space<smem>>
    %473 = arith.index_cast %472 : i32 to index
    %c0_185 = arith.constant 0 : index
    %474 = vector.load %arg7[%473, %c0_185] : memref<16x32xf32, #tpu.memory_space<vmem>>, vector<1x32xf32>
    %475 = tpu.concatenate %471, %474 in 0 : vector<1x32xf32>, vector<1x32xf32> -> vector<2x32xf32>
    %c0_186 = arith.constant 0 : index
    %476 = memref.load %arg1[%c0_186] : memref<14xi32, #tpu.memory_space<smem>>
    %477 = arith.index_cast %476 : i32 to index
    %c0_187 = arith.constant 0 : index
    %478 = vector.load %arg8[%477, %c0_187] : memref<16x32xf32, #tpu.memory_space<vmem>>, vector<1x32xf32>
    %c1_188 = arith.constant 1 : index
    %479 = memref.load %arg1[%c1_188] : memref<14xi32, #tpu.memory_space<smem>>
    %480 = arith.index_cast %479 : i32 to index
    %c0_189 = arith.constant 0 : index
    %481 = vector.load %arg8[%480, %c0_189] : memref<16x32xf32, #tpu.memory_space<vmem>>, vector<1x32xf32>
    %482 = tpu.concatenate %478, %481 in 0 : vector<1x32xf32>, vector<1x32xf32> -> vector<2x32xf32>
    %c0_190 = arith.constant 0 : index
    %483 = memref.load %arg1[%c0_190] : memref<14xi32, #tpu.memory_space<smem>>
    %484 = arith.index_cast %483 : i32 to index
    %c0_191 = arith.constant 0 : index
    %485 = vector.load %arg9[%484, %c0_191] : memref<16x32xf32, #tpu.memory_space<vmem>>, vector<1x32xf32>
    %c1_192 = arith.constant 1 : index
    %486 = memref.load %arg1[%c1_192] : memref<14xi32, #tpu.memory_space<smem>>
    %487 = arith.index_cast %486 : i32 to index
    %c0_193 = arith.constant 0 : index
    %488 = vector.load %arg9[%487, %c0_193] : memref<16x32xf32, #tpu.memory_space<vmem>>, vector<1x32xf32>
    %489 = tpu.concatenate %485, %488 in 0 : vector<1x32xf32>, vector<1x32xf32> -> vector<2x32xf32>
    %cst_194 = arith.constant dense<0.000000e+00> : vector<2x32xf32>
    %490 = tpu.matmul %459, %461, %cst_194 {dimension_numbers = #tpu.dot_dimension_numbers<[1], [0], [0], [1], [0, 0, 1, 1], [], []>} : vector<2x32xf32>, vector<32x32xf32>, vector<2x32xf32> -> vector<2x32xf32>
    %cst_195 = arith.constant dense<0.000000e+00> : vector<2x32xf32>
    %491 = tpu.matmul %459, %463, %cst_195 {dimension_numbers = #tpu.dot_dimension_numbers<[1], [0], [0], [1], [0, 0, 1, 1], [], []>} : vector<2x32xf32>, vector<32x32xf32>, vector<2x32xf32> -> vector<2x32xf32>
    %cst_196 = arith.constant dense<0.000000e+00> : vector<2x32xf32>
    %492 = tpu.matmul %459, %465, %cst_196 {dimension_numbers = #tpu.dot_dimension_numbers<[1], [0], [0], [1], [0, 0, 1, 1], [], []>} : vector<2x32xf32>, vector<32x32xf32>, vector<2x32xf32> -> vector<2x32xf32>
    %493 = arith.addf %475, %490 : vector<2x32xf32>
    %494 = arith.negf %493 : vector<2x32xf32>
    %495 = math.exp %494 : vector<2x32xf32>
    %cst_197 = arith.constant 1.000000e+00 : f32
    %496 = vector.broadcast %cst_197 : f32 to vector<2x32xf32>
    %497 = arith.addf %496, %495 : vector<2x32xf32>
    %498 = arith.divf %496, %497 : vector<2x32xf32>
    %499 = arith.addf %482, %491 : vector<2x32xf32>
    %500 = arith.negf %499 : vector<2x32xf32>
    %501 = math.exp %500 : vector<2x32xf32>
    %cst_198 = arith.constant 1.000000e+00 : f32
    %502 = vector.broadcast %cst_198 : f32 to vector<2x32xf32>
    %503 = arith.addf %502, %501 : vector<2x32xf32>
    %504 = arith.divf %502, %503 : vector<2x32xf32>
    %505 = arith.addf %492, %468 : vector<2x32xf32>
    %506 = arith.mulf %498, %505 : vector<2x32xf32>
    %507 = arith.addf %489, %506 : vector<2x32xf32>
    %508 = math.tanh %507 : vector<2x32xf32>
    %cst_199 = arith.constant 1.000000e+00 : f32
    %509 = vector.broadcast %cst_199 : f32 to vector<2x32xf32>
    %510 = arith.subf %509, %504 : vector<2x32xf32>
    %511 = arith.mulf %510, %508 : vector<2x32xf32>
    %512 = arith.mulf %504, %459 : vector<2x32xf32>
    %513 = arith.addf %511, %512 : vector<2x32xf32>
    %c2_200 = arith.constant 2 : index
    %514 = memref.load %arg1[%c2_200] : memref<14xi32, #tpu.memory_space<smem>>
    %515 = arith.index_cast %514 : i32 to index
    %c0_201 = arith.constant 0 : index
    %516 = vector.load %arg7[%515, %c0_201] : memref<16x32xf32, #tpu.memory_space<vmem>>, vector<1x32xf32>
    %c3_202 = arith.constant 3 : index
    %517 = memref.load %arg1[%c3_202] : memref<14xi32, #tpu.memory_space<smem>>
    %518 = arith.index_cast %517 : i32 to index
    %c0_203 = arith.constant 0 : index
    %519 = vector.load %arg7[%518, %c0_203] : memref<16x32xf32, #tpu.memory_space<vmem>>, vector<1x32xf32>
    %520 = tpu.concatenate %516, %519 in 0 : vector<1x32xf32>, vector<1x32xf32> -> vector<2x32xf32>
    %c2_204 = arith.constant 2 : index
    %521 = memref.load %arg1[%c2_204] : memref<14xi32, #tpu.memory_space<smem>>
    %522 = arith.index_cast %521 : i32 to index
    %c0_205 = arith.constant 0 : index
    %523 = vector.load %arg8[%522, %c0_205] : memref<16x32xf32, #tpu.memory_space<vmem>>, vector<1x32xf32>
    %c3_206 = arith.constant 3 : index
    %524 = memref.load %arg1[%c3_206] : memref<14xi32, #tpu.memory_space<smem>>
    %525 = arith.index_cast %524 : i32 to index
    %c0_207 = arith.constant 0 : index
    %526 = vector.load %arg8[%525, %c0_207] : memref<16x32xf32, #tpu.memory_space<vmem>>, vector<1x32xf32>
    %527 = tpu.concatenate %523, %526 in 0 : vector<1x32xf32>, vector<1x32xf32> -> vector<2x32xf32>
    %c2_208 = arith.constant 2 : index
    %528 = memref.load %arg1[%c2_208] : memref<14xi32, #tpu.memory_space<smem>>
    %529 = arith.index_cast %528 : i32 to index
    %c0_209 = arith.constant 0 : index
    %530 = vector.load %arg9[%529, %c0_209] : memref<16x32xf32, #tpu.memory_space<vmem>>, vector<1x32xf32>
    %c3_210 = arith.constant 3 : index
    %531 = memref.load %arg1[%c3_210] : memref<14xi32, #tpu.memory_space<smem>>
    %532 = arith.index_cast %531 : i32 to index
    %c0_211 = arith.constant 0 : index
    %533 = vector.load %arg9[%532, %c0_211] : memref<16x32xf32, #tpu.memory_space<vmem>>, vector<1x32xf32>
    %534 = tpu.concatenate %530, %533 in 0 : vector<1x32xf32>, vector<1x32xf32> -> vector<2x32xf32>
    %cst_212 = arith.constant dense<0.000000e+00> : vector<2x32xf32>
    %535 = tpu.matmul %513, %461, %cst_212 {dimension_numbers = #tpu.dot_dimension_numbers<[1], [0], [0], [1], [0, 0, 1, 1], [], []>} : vector<2x32xf32>, vector<32x32xf32>, vector<2x32xf32> -> vector<2x32xf32>
    %cst_213 = arith.constant dense<0.000000e+00> : vector<2x32xf32>
    %536 = tpu.matmul %513, %463, %cst_213 {dimension_numbers = #tpu.dot_dimension_numbers<[1], [0], [0], [1], [0, 0, 1, 1], [], []>} : vector<2x32xf32>, vector<32x32xf32>, vector<2x32xf32> -> vector<2x32xf32>
    %cst_214 = arith.constant dense<0.000000e+00> : vector<2x32xf32>
    %537 = tpu.matmul %513, %465, %cst_214 {dimension_numbers = #tpu.dot_dimension_numbers<[1], [0], [0], [1], [0, 0, 1, 1], [], []>} : vector<2x32xf32>, vector<32x32xf32>, vector<2x32xf32> -> vector<2x32xf32>
    %538 = arith.addf %520, %535 : vector<2x32xf32>
    %539 = arith.negf %538 : vector<2x32xf32>
    %540 = math.exp %539 : vector<2x32xf32>
    %cst_215 = arith.constant 1.000000e+00 : f32
    %541 = vector.broadcast %cst_215 : f32 to vector<2x32xf32>
    %542 = arith.addf %541, %540 : vector<2x32xf32>
    %543 = arith.divf %541, %542 : vector<2x32xf32>
    %544 = arith.addf %527, %536 : vector<2x32xf32>
    %545 = arith.negf %544 : vector<2x32xf32>
    %546 = math.exp %545 : vector<2x32xf32>
    %cst_216 = arith.constant 1.000000e+00 : f32
    %547 = vector.broadcast %cst_216 : f32 to vector<2x32xf32>
    %548 = arith.addf %547, %546 : vector<2x32xf32>
    %549 = arith.divf %547, %548 : vector<2x32xf32>
    %550 = arith.addf %537, %468 : vector<2x32xf32>
    %551 = arith.mulf %543, %550 : vector<2x32xf32>
    %552 = arith.addf %534, %551 : vector<2x32xf32>
    %553 = math.tanh %552 : vector<2x32xf32>
    %cst_217 = arith.constant 1.000000e+00 : f32
    %554 = vector.broadcast %cst_217 : f32 to vector<2x32xf32>
    %555 = arith.subf %554, %549 : vector<2x32xf32>
    %556 = arith.mulf %555, %553 : vector<2x32xf32>
    %557 = arith.mulf %549, %513 : vector<2x32xf32>
    %558 = arith.addf %556, %557 : vector<2x32xf32>
    %c4_218 = arith.constant 4 : index
    %559 = memref.load %arg1[%c4_218] : memref<14xi32, #tpu.memory_space<smem>>
    %560 = arith.index_cast %559 : i32 to index
    %c0_219 = arith.constant 0 : index
    %561 = vector.load %arg7[%560, %c0_219] : memref<16x32xf32, #tpu.memory_space<vmem>>, vector<1x32xf32>
    %c5_220 = arith.constant 5 : index
    %562 = memref.load %arg1[%c5_220] : memref<14xi32, #tpu.memory_space<smem>>
    %563 = arith.index_cast %562 : i32 to index
    %c0_221 = arith.constant 0 : index
    %564 = vector.load %arg7[%563, %c0_221] : memref<16x32xf32, #tpu.memory_space<vmem>>, vector<1x32xf32>
    %565 = tpu.concatenate %561, %564 in 0 : vector<1x32xf32>, vector<1x32xf32> -> vector<2x32xf32>
    %c4_222 = arith.constant 4 : index
    %566 = memref.load %arg1[%c4_222] : memref<14xi32, #tpu.memory_space<smem>>
    %567 = arith.index_cast %566 : i32 to index
    %c0_223 = arith.constant 0 : index
    %568 = vector.load %arg8[%567, %c0_223] : memref<16x32xf32, #tpu.memory_space<vmem>>, vector<1x32xf32>
    %c5_224 = arith.constant 5 : index
    %569 = memref.load %arg1[%c5_224] : memref<14xi32, #tpu.memory_space<smem>>
    %570 = arith.index_cast %569 : i32 to index
    %c0_225 = arith.constant 0 : index
    %571 = vector.load %arg8[%570, %c0_225] : memref<16x32xf32, #tpu.memory_space<vmem>>, vector<1x32xf32>
    %572 = tpu.concatenate %568, %571 in 0 : vector<1x32xf32>, vector<1x32xf32> -> vector<2x32xf32>
    %c4_226 = arith.constant 4 : index
    %573 = memref.load %arg1[%c4_226] : memref<14xi32, #tpu.memory_space<smem>>
    %574 = arith.index_cast %573 : i32 to index
    %c0_227 = arith.constant 0 : index
    %575 = vector.load %arg9[%574, %c0_227] : memref<16x32xf32, #tpu.memory_space<vmem>>, vector<1x32xf32>
    %c5_228 = arith.constant 5 : index
    %576 = memref.load %arg1[%c5_228] : memref<14xi32, #tpu.memory_space<smem>>
    %577 = arith.index_cast %576 : i32 to index
    %c0_229 = arith.constant 0 : index
    %578 = vector.load %arg9[%577, %c0_229] : memref<16x32xf32, #tpu.memory_space<vmem>>, vector<1x32xf32>
    %579 = tpu.concatenate %575, %578 in 0 : vector<1x32xf32>, vector<1x32xf32> -> vector<2x32xf32>
    %cst_230 = arith.constant dense<0.000000e+00> : vector<2x32xf32>
    %580 = tpu.matmul %558, %461, %cst_230 {dimension_numbers = #tpu.dot_dimension_numbers<[1], [0], [0], [1], [0, 0, 1, 1], [], []>} : vector<2x32xf32>, vector<32x32xf32>, vector<2x32xf32> -> vector<2x32xf32>
    %cst_231 = arith.constant dense<0.000000e+00> : vector<2x32xf32>
    %581 = tpu.matmul %558, %463, %cst_231 {dimension_numbers = #tpu.dot_dimension_numbers<[1], [0], [0], [1], [0, 0, 1, 1], [], []>} : vector<2x32xf32>, vector<32x32xf32>, vector<2x32xf32> -> vector<2x32xf32>
    %cst_232 = arith.constant dense<0.000000e+00> : vector<2x32xf32>
    %582 = tpu.matmul %558, %465, %cst_232 {dimension_numbers = #tpu.dot_dimension_numbers<[1], [0], [0], [1], [0, 0, 1, 1], [], []>} : vector<2x32xf32>, vector<32x32xf32>, vector<2x32xf32> -> vector<2x32xf32>
    %583 = arith.addf %565, %580 : vector<2x32xf32>
    %584 = arith.negf %583 : vector<2x32xf32>
    %585 = math.exp %584 : vector<2x32xf32>
    %cst_233 = arith.constant 1.000000e+00 : f32
    %586 = vector.broadcast %cst_233 : f32 to vector<2x32xf32>
    %587 = arith.addf %586, %585 : vector<2x32xf32>
    %588 = arith.divf %586, %587 : vector<2x32xf32>
    %589 = arith.addf %572, %581 : vector<2x32xf32>
    %590 = arith.negf %589 : vector<2x32xf32>
    %591 = math.exp %590 : vector<2x32xf32>
    %cst_234 = arith.constant 1.000000e+00 : f32
    %592 = vector.broadcast %cst_234 : f32 to vector<2x32xf32>
    %593 = arith.addf %592, %591 : vector<2x32xf32>
    %594 = arith.divf %592, %593 : vector<2x32xf32>
    %595 = arith.addf %582, %468 : vector<2x32xf32>
    %596 = arith.mulf %588, %595 : vector<2x32xf32>
    %597 = arith.addf %579, %596 : vector<2x32xf32>
    %598 = math.tanh %597 : vector<2x32xf32>
    %cst_235 = arith.constant 1.000000e+00 : f32
    %599 = vector.broadcast %cst_235 : f32 to vector<2x32xf32>
    %600 = arith.subf %599, %594 : vector<2x32xf32>
    %601 = arith.mulf %600, %598 : vector<2x32xf32>
    %602 = arith.mulf %594, %558 : vector<2x32xf32>
    %603 = arith.addf %601, %602 : vector<2x32xf32>
    %c6_236 = arith.constant 6 : index
    %604 = memref.load %arg1[%c6_236] : memref<14xi32, #tpu.memory_space<smem>>
    %605 = arith.index_cast %604 : i32 to index
    %c0_237 = arith.constant 0 : index
    %606 = vector.load %arg7[%605, %c0_237] : memref<16x32xf32, #tpu.memory_space<vmem>>, vector<1x32xf32>
    %c7_238 = arith.constant 7 : index
    %607 = memref.load %arg1[%c7_238] : memref<14xi32, #tpu.memory_space<smem>>
    %608 = arith.index_cast %607 : i32 to index
    %c0_239 = arith.constant 0 : index
    %609 = vector.load %arg7[%608, %c0_239] : memref<16x32xf32, #tpu.memory_space<vmem>>, vector<1x32xf32>
    %610 = tpu.concatenate %606, %609 in 0 : vector<1x32xf32>, vector<1x32xf32> -> vector<2x32xf32>
    %c6_240 = arith.constant 6 : index
    %611 = memref.load %arg1[%c6_240] : memref<14xi32, #tpu.memory_space<smem>>
    %612 = arith.index_cast %611 : i32 to index
    %c0_241 = arith.constant 0 : index
    %613 = vector.load %arg8[%612, %c0_241] : memref<16x32xf32, #tpu.memory_space<vmem>>, vector<1x32xf32>
    %c7_242 = arith.constant 7 : index
    %614 = memref.load %arg1[%c7_242] : memref<14xi32, #tpu.memory_space<smem>>
    %615 = arith.index_cast %614 : i32 to index
    %c0_243 = arith.constant 0 : index
    %616 = vector.load %arg8[%615, %c0_243] : memref<16x32xf32, #tpu.memory_space<vmem>>, vector<1x32xf32>
    %617 = tpu.concatenate %613, %616 in 0 : vector<1x32xf32>, vector<1x32xf32> -> vector<2x32xf32>
    %c6_244 = arith.constant 6 : index
    %618 = memref.load %arg1[%c6_244] : memref<14xi32, #tpu.memory_space<smem>>
    %619 = arith.index_cast %618 : i32 to index
    %c0_245 = arith.constant 0 : index
    %620 = vector.load %arg9[%619, %c0_245] : memref<16x32xf32, #tpu.memory_space<vmem>>, vector<1x32xf32>
    %c7_246 = arith.constant 7 : index
    %621 = memref.load %arg1[%c7_246] : memref<14xi32, #tpu.memory_space<smem>>
    %622 = arith.index_cast %621 : i32 to index
    %c0_247 = arith.constant 0 : index
    %623 = vector.load %arg9[%622, %c0_247] : memref<16x32xf32, #tpu.memory_space<vmem>>, vector<1x32xf32>
    %624 = tpu.concatenate %620, %623 in 0 : vector<1x32xf32>, vector<1x32xf32> -> vector<2x32xf32>
    %cst_248 = arith.constant dense<0.000000e+00> : vector<2x32xf32>
    %625 = tpu.matmul %603, %461, %cst_248 {dimension_numbers = #tpu.dot_dimension_numbers<[1], [0], [0], [1], [0, 0, 1, 1], [], []>} : vector<2x32xf32>, vector<32x32xf32>, vector<2x32xf32> -> vector<2x32xf32>
    %cst_249 = arith.constant dense<0.000000e+00> : vector<2x32xf32>
    %626 = tpu.matmul %603, %463, %cst_249 {dimension_numbers = #tpu.dot_dimension_numbers<[1], [0], [0], [1], [0, 0, 1, 1], [], []>} : vector<2x32xf32>, vector<32x32xf32>, vector<2x32xf32> -> vector<2x32xf32>
    %cst_250 = arith.constant dense<0.000000e+00> : vector<2x32xf32>
    %627 = tpu.matmul %603, %465, %cst_250 {dimension_numbers = #tpu.dot_dimension_numbers<[1], [0], [0], [1], [0, 0, 1, 1], [], []>} : vector<2x32xf32>, vector<32x32xf32>, vector<2x32xf32> -> vector<2x32xf32>
    %628 = arith.addf %610, %625 : vector<2x32xf32>
    %629 = arith.negf %628 : vector<2x32xf32>
    %630 = math.exp %629 : vector<2x32xf32>
    %cst_251 = arith.constant 1.000000e+00 : f32
    %631 = vector.broadcast %cst_251 : f32 to vector<2x32xf32>
    %632 = arith.addf %631, %630 : vector<2x32xf32>
    %633 = arith.divf %631, %632 : vector<2x32xf32>
    %634 = arith.addf %617, %626 : vector<2x32xf32>
    %635 = arith.negf %634 : vector<2x32xf32>
    %636 = math.exp %635 : vector<2x32xf32>
    %cst_252 = arith.constant 1.000000e+00 : f32
    %637 = vector.broadcast %cst_252 : f32 to vector<2x32xf32>
    %638 = arith.addf %637, %636 : vector<2x32xf32>
    %639 = arith.divf %637, %638 : vector<2x32xf32>
    %640 = arith.addf %627, %468 : vector<2x32xf32>
    %641 = arith.mulf %633, %640 : vector<2x32xf32>
    %642 = arith.addf %624, %641 : vector<2x32xf32>
    %643 = math.tanh %642 : vector<2x32xf32>
    %cst_253 = arith.constant 1.000000e+00 : f32
    %644 = vector.broadcast %cst_253 : f32 to vector<2x32xf32>
    %645 = arith.subf %644, %639 : vector<2x32xf32>
    %646 = arith.mulf %645, %643 : vector<2x32xf32>
    %647 = arith.mulf %639, %603 : vector<2x32xf32>
    %648 = arith.addf %646, %647 : vector<2x32xf32>
    %c8_254 = arith.constant 8 : index
    %649 = memref.load %arg1[%c8_254] : memref<14xi32, #tpu.memory_space<smem>>
    %650 = arith.index_cast %649 : i32 to index
    %c0_255 = arith.constant 0 : index
    %651 = vector.load %arg7[%650, %c0_255] : memref<16x32xf32, #tpu.memory_space<vmem>>, vector<1x32xf32>
    %c9_256 = arith.constant 9 : index
    %652 = memref.load %arg1[%c9_256] : memref<14xi32, #tpu.memory_space<smem>>
    %653 = arith.index_cast %652 : i32 to index
    %c0_257 = arith.constant 0 : index
    %654 = vector.load %arg7[%653, %c0_257] : memref<16x32xf32, #tpu.memory_space<vmem>>, vector<1x32xf32>
    %655 = tpu.concatenate %651, %654 in 0 : vector<1x32xf32>, vector<1x32xf32> -> vector<2x32xf32>
    %c8_258 = arith.constant 8 : index
    %656 = memref.load %arg1[%c8_258] : memref<14xi32, #tpu.memory_space<smem>>
    %657 = arith.index_cast %656 : i32 to index
    %c0_259 = arith.constant 0 : index
    %658 = vector.load %arg8[%657, %c0_259] : memref<16x32xf32, #tpu.memory_space<vmem>>, vector<1x32xf32>
    %c9_260 = arith.constant 9 : index
    %659 = memref.load %arg1[%c9_260] : memref<14xi32, #tpu.memory_space<smem>>
    %660 = arith.index_cast %659 : i32 to index
    %c0_261 = arith.constant 0 : index
    %661 = vector.load %arg8[%660, %c0_261] : memref<16x32xf32, #tpu.memory_space<vmem>>, vector<1x32xf32>
    %662 = tpu.concatenate %658, %661 in 0 : vector<1x32xf32>, vector<1x32xf32> -> vector<2x32xf32>
    %c8_262 = arith.constant 8 : index
    %663 = memref.load %arg1[%c8_262] : memref<14xi32, #tpu.memory_space<smem>>
    %664 = arith.index_cast %663 : i32 to index
    %c0_263 = arith.constant 0 : index
    %665 = vector.load %arg9[%664, %c0_263] : memref<16x32xf32, #tpu.memory_space<vmem>>, vector<1x32xf32>
    %c9_264 = arith.constant 9 : index
    %666 = memref.load %arg1[%c9_264] : memref<14xi32, #tpu.memory_space<smem>>
    %667 = arith.index_cast %666 : i32 to index
    %c0_265 = arith.constant 0 : index
    %668 = vector.load %arg9[%667, %c0_265] : memref<16x32xf32, #tpu.memory_space<vmem>>, vector<1x32xf32>
    %669 = tpu.concatenate %665, %668 in 0 : vector<1x32xf32>, vector<1x32xf32> -> vector<2x32xf32>
    %cst_266 = arith.constant dense<0.000000e+00> : vector<2x32xf32>
    %670 = tpu.matmul %648, %461, %cst_266 {dimension_numbers = #tpu.dot_dimension_numbers<[1], [0], [0], [1], [0, 0, 1, 1], [], []>} : vector<2x32xf32>, vector<32x32xf32>, vector<2x32xf32> -> vector<2x32xf32>
    %cst_267 = arith.constant dense<0.000000e+00> : vector<2x32xf32>
    %671 = tpu.matmul %648, %463, %cst_267 {dimension_numbers = #tpu.dot_dimension_numbers<[1], [0], [0], [1], [0, 0, 1, 1], [], []>} : vector<2x32xf32>, vector<32x32xf32>, vector<2x32xf32> -> vector<2x32xf32>
    %cst_268 = arith.constant dense<0.000000e+00> : vector<2x32xf32>
    %672 = tpu.matmul %648, %465, %cst_268 {dimension_numbers = #tpu.dot_dimension_numbers<[1], [0], [0], [1], [0, 0, 1, 1], [], []>} : vector<2x32xf32>, vector<32x32xf32>, vector<2x32xf32> -> vector<2x32xf32>
    %673 = arith.addf %655, %670 : vector<2x32xf32>
    %674 = arith.negf %673 : vector<2x32xf32>
    %675 = math.exp %674 : vector<2x32xf32>
    %cst_269 = arith.constant 1.000000e+00 : f32
    %676 = vector.broadcast %cst_269 : f32 to vector<2x32xf32>
    %677 = arith.addf %676, %675 : vector<2x32xf32>
    %678 = arith.divf %676, %677 : vector<2x32xf32>
    %679 = arith.addf %662, %671 : vector<2x32xf32>
    %680 = arith.negf %679 : vector<2x32xf32>
    %681 = math.exp %680 : vector<2x32xf32>
    %cst_270 = arith.constant 1.000000e+00 : f32
    %682 = vector.broadcast %cst_270 : f32 to vector<2x32xf32>
    %683 = arith.addf %682, %681 : vector<2x32xf32>
    %684 = arith.divf %682, %683 : vector<2x32xf32>
    %685 = arith.addf %672, %468 : vector<2x32xf32>
    %686 = arith.mulf %678, %685 : vector<2x32xf32>
    %687 = arith.addf %669, %686 : vector<2x32xf32>
    %688 = math.tanh %687 : vector<2x32xf32>
    %cst_271 = arith.constant 1.000000e+00 : f32
    %689 = vector.broadcast %cst_271 : f32 to vector<2x32xf32>
    %690 = arith.subf %689, %684 : vector<2x32xf32>
    %691 = arith.mulf %690, %688 : vector<2x32xf32>
    %692 = arith.mulf %684, %648 : vector<2x32xf32>
    %693 = arith.addf %691, %692 : vector<2x32xf32>
    %c10_272 = arith.constant 10 : index
    %694 = memref.load %arg1[%c10_272] : memref<14xi32, #tpu.memory_space<smem>>
    %695 = arith.index_cast %694 : i32 to index
    %c0_273 = arith.constant 0 : index
    %696 = vector.load %arg7[%695, %c0_273] : memref<16x32xf32, #tpu.memory_space<vmem>>, vector<1x32xf32>
    %c11_274 = arith.constant 11 : index
    %697 = memref.load %arg1[%c11_274] : memref<14xi32, #tpu.memory_space<smem>>
    %698 = arith.index_cast %697 : i32 to index
    %c0_275 = arith.constant 0 : index
    %699 = vector.load %arg7[%698, %c0_275] : memref<16x32xf32, #tpu.memory_space<vmem>>, vector<1x32xf32>
    %700 = tpu.concatenate %696, %699 in 0 : vector<1x32xf32>, vector<1x32xf32> -> vector<2x32xf32>
    %c10_276 = arith.constant 10 : index
    %701 = memref.load %arg1[%c10_276] : memref<14xi32, #tpu.memory_space<smem>>
    %702 = arith.index_cast %701 : i32 to index
    %c0_277 = arith.constant 0 : index
    %703 = vector.load %arg8[%702, %c0_277] : memref<16x32xf32, #tpu.memory_space<vmem>>, vector<1x32xf32>
    %c11_278 = arith.constant 11 : index
    %704 = memref.load %arg1[%c11_278] : memref<14xi32, #tpu.memory_space<smem>>
    %705 = arith.index_cast %704 : i32 to index
    %c0_279 = arith.constant 0 : index
    %706 = vector.load %arg8[%705, %c0_279] : memref<16x32xf32, #tpu.memory_space<vmem>>, vector<1x32xf32>
    %707 = tpu.concatenate %703, %706 in 0 : vector<1x32xf32>, vector<1x32xf32> -> vector<2x32xf32>
    %c10_280 = arith.constant 10 : index
    %708 = memref.load %arg1[%c10_280] : memref<14xi32, #tpu.memory_space<smem>>
    %709 = arith.index_cast %708 : i32 to index
    %c0_281 = arith.constant 0 : index
    %710 = vector.load %arg9[%709, %c0_281] : memref<16x32xf32, #tpu.memory_space<vmem>>, vector<1x32xf32>
    %c11_282 = arith.constant 11 : index
    %711 = memref.load %arg1[%c11_282] : memref<14xi32, #tpu.memory_space<smem>>
    %712 = arith.index_cast %711 : i32 to index
    %c0_283 = arith.constant 0 : index
    %713 = vector.load %arg9[%712, %c0_283] : memref<16x32xf32, #tpu.memory_space<vmem>>, vector<1x32xf32>
    %714 = tpu.concatenate %710, %713 in 0 : vector<1x32xf32>, vector<1x32xf32> -> vector<2x32xf32>
    %cst_284 = arith.constant dense<0.000000e+00> : vector<2x32xf32>
    %715 = tpu.matmul %693, %461, %cst_284 {dimension_numbers = #tpu.dot_dimension_numbers<[1], [0], [0], [1], [0, 0, 1, 1], [], []>} : vector<2x32xf32>, vector<32x32xf32>, vector<2x32xf32> -> vector<2x32xf32>
    %cst_285 = arith.constant dense<0.000000e+00> : vector<2x32xf32>
    %716 = tpu.matmul %693, %463, %cst_285 {dimension_numbers = #tpu.dot_dimension_numbers<[1], [0], [0], [1], [0, 0, 1, 1], [], []>} : vector<2x32xf32>, vector<32x32xf32>, vector<2x32xf32> -> vector<2x32xf32>
    %cst_286 = arith.constant dense<0.000000e+00> : vector<2x32xf32>
    %717 = tpu.matmul %693, %465, %cst_286 {dimension_numbers = #tpu.dot_dimension_numbers<[1], [0], [0], [1], [0, 0, 1, 1], [], []>} : vector<2x32xf32>, vector<32x32xf32>, vector<2x32xf32> -> vector<2x32xf32>
    %718 = arith.addf %700, %715 : vector<2x32xf32>
    %719 = arith.negf %718 : vector<2x32xf32>
    %720 = math.exp %719 : vector<2x32xf32>
    %cst_287 = arith.constant 1.000000e+00 : f32
    %721 = vector.broadcast %cst_287 : f32 to vector<2x32xf32>
    %722 = arith.addf %721, %720 : vector<2x32xf32>
    %723 = arith.divf %721, %722 : vector<2x32xf32>
    %724 = arith.addf %707, %716 : vector<2x32xf32>
    %725 = arith.negf %724 : vector<2x32xf32>
    %726 = math.exp %725 : vector<2x32xf32>
    %cst_288 = arith.constant 1.000000e+00 : f32
    %727 = vector.broadcast %cst_288 : f32 to vector<2x32xf32>
    %728 = arith.addf %727, %726 : vector<2x32xf32>
    %729 = arith.divf %727, %728 : vector<2x32xf32>
    %730 = arith.addf %717, %468 : vector<2x32xf32>
    %731 = arith.mulf %723, %730 : vector<2x32xf32>
    %732 = arith.addf %714, %731 : vector<2x32xf32>
    %733 = math.tanh %732 : vector<2x32xf32>
    %cst_289 = arith.constant 1.000000e+00 : f32
    %734 = vector.broadcast %cst_289 : f32 to vector<2x32xf32>
    %735 = arith.subf %734, %729 : vector<2x32xf32>
    %736 = arith.mulf %735, %733 : vector<2x32xf32>
    %737 = arith.mulf %729, %693 : vector<2x32xf32>
    %738 = arith.addf %736, %737 : vector<2x32xf32>
    %c12_290 = arith.constant 12 : index
    %739 = memref.load %arg1[%c12_290] : memref<14xi32, #tpu.memory_space<smem>>
    %740 = arith.index_cast %739 : i32 to index
    %c0_291 = arith.constant 0 : index
    %741 = vector.load %arg7[%740, %c0_291] : memref<16x32xf32, #tpu.memory_space<vmem>>, vector<1x32xf32>
    %c13_292 = arith.constant 13 : index
    %742 = memref.load %arg1[%c13_292] : memref<14xi32, #tpu.memory_space<smem>>
    %743 = arith.index_cast %742 : i32 to index
    %c0_293 = arith.constant 0 : index
    %744 = vector.load %arg7[%743, %c0_293] : memref<16x32xf32, #tpu.memory_space<vmem>>, vector<1x32xf32>
    %745 = tpu.concatenate %741, %744 in 0 : vector<1x32xf32>, vector<1x32xf32> -> vector<2x32xf32>
    %c12_294 = arith.constant 12 : index
    %746 = memref.load %arg1[%c12_294] : memref<14xi32, #tpu.memory_space<smem>>
    %747 = arith.index_cast %746 : i32 to index
    %c0_295 = arith.constant 0 : index
    %748 = vector.load %arg8[%747, %c0_295] : memref<16x32xf32, #tpu.memory_space<vmem>>, vector<1x32xf32>
    %c13_296 = arith.constant 13 : index
    %749 = memref.load %arg1[%c13_296] : memref<14xi32, #tpu.memory_space<smem>>
    %750 = arith.index_cast %749 : i32 to index
    %c0_297 = arith.constant 0 : index
    %751 = vector.load %arg8[%750, %c0_297] : memref<16x32xf32, #tpu.memory_space<vmem>>, vector<1x32xf32>
    %752 = tpu.concatenate %748, %751 in 0 : vector<1x32xf32>, vector<1x32xf32> -> vector<2x32xf32>
    %c12_298 = arith.constant 12 : index
    %753 = memref.load %arg1[%c12_298] : memref<14xi32, #tpu.memory_space<smem>>
    %754 = arith.index_cast %753 : i32 to index
    %c0_299 = arith.constant 0 : index
    %755 = vector.load %arg9[%754, %c0_299] : memref<16x32xf32, #tpu.memory_space<vmem>>, vector<1x32xf32>
    %c13_300 = arith.constant 13 : index
    %756 = memref.load %arg1[%c13_300] : memref<14xi32, #tpu.memory_space<smem>>
    %757 = arith.index_cast %756 : i32 to index
    %c0_301 = arith.constant 0 : index
    %758 = vector.load %arg9[%757, %c0_301] : memref<16x32xf32, #tpu.memory_space<vmem>>, vector<1x32xf32>
    %759 = tpu.concatenate %755, %758 in 0 : vector<1x32xf32>, vector<1x32xf32> -> vector<2x32xf32>
    %cst_302 = arith.constant dense<0.000000e+00> : vector<2x32xf32>
    %760 = tpu.matmul %738, %461, %cst_302 {dimension_numbers = #tpu.dot_dimension_numbers<[1], [0], [0], [1], [0, 0, 1, 1], [], []>} : vector<2x32xf32>, vector<32x32xf32>, vector<2x32xf32> -> vector<2x32xf32>
    %cst_303 = arith.constant dense<0.000000e+00> : vector<2x32xf32>
    %761 = tpu.matmul %738, %463, %cst_303 {dimension_numbers = #tpu.dot_dimension_numbers<[1], [0], [0], [1], [0, 0, 1, 1], [], []>} : vector<2x32xf32>, vector<32x32xf32>, vector<2x32xf32> -> vector<2x32xf32>
    %cst_304 = arith.constant dense<0.000000e+00> : vector<2x32xf32>
    %762 = tpu.matmul %738, %465, %cst_304 {dimension_numbers = #tpu.dot_dimension_numbers<[1], [0], [0], [1], [0, 0, 1, 1], [], []>} : vector<2x32xf32>, vector<32x32xf32>, vector<2x32xf32> -> vector<2x32xf32>
    %763 = arith.addf %745, %760 : vector<2x32xf32>
    %764 = arith.negf %763 : vector<2x32xf32>
    %765 = math.exp %764 : vector<2x32xf32>
    %cst_305 = arith.constant 1.000000e+00 : f32
    %766 = vector.broadcast %cst_305 : f32 to vector<2x32xf32>
    %767 = arith.addf %766, %765 : vector<2x32xf32>
    %768 = arith.divf %766, %767 : vector<2x32xf32>
    %769 = arith.addf %752, %761 : vector<2x32xf32>
    %770 = arith.negf %769 : vector<2x32xf32>
    %771 = math.exp %770 : vector<2x32xf32>
    %cst_306 = arith.constant 1.000000e+00 : f32
    %772 = vector.broadcast %cst_306 : f32 to vector<2x32xf32>
    %773 = arith.addf %772, %771 : vector<2x32xf32>
    %774 = arith.divf %772, %773 : vector<2x32xf32>
    %775 = arith.addf %762, %468 : vector<2x32xf32>
    %776 = arith.mulf %768, %775 : vector<2x32xf32>
    %777 = arith.addf %759, %776 : vector<2x32xf32>
    %778 = math.tanh %777 : vector<2x32xf32>
    %cst_307 = arith.constant 1.000000e+00 : f32
    %779 = vector.broadcast %cst_307 : f32 to vector<2x32xf32>
    %780 = arith.subf %779, %774 : vector<2x32xf32>
    %781 = arith.mulf %780, %778 : vector<2x32xf32>
    %782 = arith.mulf %774, %738 : vector<2x32xf32>
    %783 = arith.addf %781, %782 : vector<2x32xf32>
    %784 = tpu.concatenate %513, %558, %603, %648, %693, %738, %783 in 0 : vector<2x32xf32>, vector<2x32xf32>, vector<2x32xf32>, vector<2x32xf32>, vector<2x32xf32>, vector<2x32xf32>, vector<2x32xf32> -> vector<14x32xf32>
    %c0_308 = arith.constant 0 : index
    %c0_309 = arith.constant 0 : index
    %785 = vector.load %arg12[%c0_308, %c0_309] : memref<32x128xf32, #tpu.memory_space<vmem>>, vector<32x128xf32>
    %cst_310 = arith.constant dense<0.000000e+00> : vector<14x128xf32>
    %786 = tpu.matmul %784, %785, %cst_310 {dimension_numbers = #tpu.dot_dimension_numbers<[1], [0], [0], [1], [0, 0, 1, 1], [], []>} : vector<14x32xf32>, vector<32x128xf32>, vector<14x128xf32> -> vector<14x128xf32>
    %c0_311 = arith.constant 0 : index
    %c0_312 = arith.constant 0 : index
    %787 = vector.load %arg13[%c0_311, %c0_312] : memref<1x128xf32, #tpu.memory_space<vmem>>, vector<1x128xf32>
    %788 = vector.broadcast %787 : vector<1x128xf32> to vector<14x128xf32>
    %789 = arith.addf %786, %788 : vector<14x128xf32>
    %cst_313 = arith.constant 0.000000e+00 : f32
    %790 = vector.broadcast %cst_313 : f32 to vector<1x2x128xf32>
    %791 = vector.shape_cast %789 : vector<14x128xf32> to vector<7x2x128xf32>
    %792 = tpu.concatenate %790, %791 in 0 : vector<1x2x128xf32>, vector<7x2x128xf32> -> vector<8x2x128xf32>
    %c0_314 = arith.constant 0 : index
    %c0_315 = arith.constant 0 : index
    %c0_316 = arith.constant 0 : index
    %793 = vector.load %arg14[%c0_314, %c0_315, %c0_316] : memref<8x2x128xf32, #tpu.memory_space<vmem>>, vector<8x2x128xf32>
    tpu.vector_store %arg14[%c0_314, %c0_315, %c0_316], %792 {strides = array<i32>} : memref<8x2x128xf32, #tpu.memory_space<vmem>>, vector<8x2x128xf32>,
    return
  }
}

</mosaic_0001>

<llo_original>
// kernel: encoder_decoder_forward.1
$region0: #{encoder_decoder_forward.1}
  #allocation0 [shape = 'u32[]', space=smem, size = 0x4, offset = 0x4, fixed_abs, tag = 'smem constant byte address 0x4 - core index']
  #allocation1 [shape = 'u32[72,128]{1,0:T(1,128)}', space=vmem, size = 0x9000, scoped, tag = 'internal scratch']
  %s0 = inlined_call_operand.vmem [shape: s32[20], index: 0, kind: input, shape index: {}]
  %s1 = inlined_call_operand.vmem [shape: s32[14], index: 1, kind: input, shape index: {}]
  %s2 = inlined_call_operand.vmem [shape: f32[16,32], index: 2, kind: input, shape index: {}]
  %s3 = inlined_call_operand.vmem [shape: f32[16,32], index: 3, kind: input, shape index: {}]
  %s4 = inlined_call_operand.vmem [shape: f32[16,32], index: 4, kind: input, shape index: {}]
  %s5 = inlined_call_operand.vmem [shape: f32[3,32,32], index: 5, kind: input, shape index: {}]
  %s6 = inlined_call_operand.vmem [shape: f32[1,32], index: 6, kind: input, shape index: {}]
  %s7 = inlined_call_operand.vmem [shape: f32[16,32], index: 7, kind: input, shape index: {}]
  %s8 = inlined_call_operand.vmem [shape: f32[16,32], index: 8, kind: input, shape index: {}]
  %s9 = inlined_call_operand.vmem [shape: f32[16,32], index: 9, kind: input, shape index: {}]
  %s10 = inlined_call_operand.vmem [shape: f32[3,32,32], index: 10, kind: input, shape index: {}]
  %s11 = inlined_call_operand.vmem [shape: f32[1,32], index: 11, kind: input, shape index: {}]
  %s12 = inlined_call_operand.vmem [shape: f32[32,128], index: 12, kind: input, shape index: {}]
  %s13 = inlined_call_operand.vmem [shape: f32[1,128], index: 13, kind: input, shape index: {}]
  %s14 = inlined_call_operand.hbm [shape: f32[8,2,128], index: 14, kind: output, shape index: {}]
  %s15 = sld [smem:[#allocation0]]
  $region74: #{encoder_decoder_forward.1} parent=0
    _
  %s17 = ssub.s32 1, %s15
  %s18 = scalar_select 0, %s17, %s15
  $region1: #{encoder_decoder_forward.1} parent=0
    #allocation2 [shape = 'u8[512]{0}', space=smem, size = 0x200, scoped, tag = 'input window, operand 0, single buffered']
    #allocation3 [shape = 's32[1]{0}', space=sflag, size = 0x4, scoped, tag = 'scoped memory for encoder_decoder_forward.1']
    #allocation4 [shape = 's32[1]{0}', space=sflag, size = 0x4, scoped, tag = 'scoped memory for encoder_decoder_forward.1']
    #allocation5 [shape = 'u8[512]{0}', space=smem, size = 0x200, scoped, tag = 'input window, operand 1, single buffered']
    #allocation6 [shape = 's32[1]{0}', space=sflag, size = 0x4, scoped, tag = 'scoped memory for encoder_decoder_forward.1']
    #allocation7 [shape = 'u8[8192]{0}', space=vmem, size = 0x2000, scoped, tag = 'output window, operand 0, single buffered']
    %19 = vsyncpa [#allocation4], 0
    %20 = vsyncpa [#allocation6], 0
    %21 = vsyncpa [#allocation3], 0
    // Predicated region
    $region2: #{encoder_decoder_forward.1} parent=1 // pred_check
      _
    $region3: #{encoder_decoder_forward.1} parent=1 // pred_check_branch
      %23 = sbr.rel (0) target = $region5
    $region4: #{encoder_decoder_forward.1} parent=1 // pred_region
      %25 = vsyncadd [#allocation4], 0
      %s27 = sshll.u32 %s0, 4
      %s28 = int_to_ptr.vmem [resolvable:$true] %s27
      %30 = dma.vmem_to_smem %s28, 16, [#allocation2], [#allocation4]
    $region5: #{encoder_decoder_forward.1} parent=1 // pred_fallthru
      _
    // Predicated region
    $region6: #{encoder_decoder_forward.1} parent=1 // pred_check
      _
    $region7: #{encoder_decoder_forward.1} parent=1 // pred_check_branch
      %32 = sbr.rel (0) target = $region9
    $region8: #{encoder_decoder_forward.1} parent=1 // pred_region
      %34 = vsyncadd [#allocation6], 0
      %s36 = sshll.u32 %s1, 4
      %s37 = int_to_ptr.vmem [resolvable:$true] %s36
      %39 = dma.vmem_to_smem %s37, 16, [#allocation5], [#allocation6]
    $region9: #{encoder_decoder_forward.1} parent=1 // pred_fallthru
      _
    // Predicated region
    $region10: #{encoder_decoder_forward.1} parent=1 // pred_check
      _
    $region11: #{encoder_decoder_forward.1} parent=1 // pred_check_branch
      %41 = sbr.rel (0) target = $region13
    $region12: #{encoder_decoder_forward.1} parent=1 // pred_region
      _
    $region13: #{encoder_decoder_forward.1} parent=1 // pred_fallthru
      _
    // Predicated region
    $region14: #{encoder_decoder_forward.1} parent=1 // pred_check
      _
    $region15: #{encoder_decoder_forward.1} parent=1 // pred_check_branch
      %43 = sbr.rel (0) target = $region17
    $region16: #{encoder_decoder_forward.1} parent=1 // pred_region
      _
    $region17: #{encoder_decoder_forward.1} parent=1 // pred_fallthru
      _
    // Predicated region
    $region18: #{encoder_decoder_forward.1} parent=1 // pred_check
      _
    $region19: #{encoder_decoder_forward.1} parent=1 // pred_check_branch
      %45 = sbr.rel (0) target = $region21
    $region20: #{encoder_decoder_forward.1} parent=1 // pred_region
      _
    $region21: #{encoder_decoder_forward.1} parent=1 // pred_fallthru
      _
    // Predicated region
    $region22: #{encoder_decoder_forward.1} parent=1 // pred_check
      _
    $region23: #{encoder_decoder_forward.1} parent=1 // pred_check_branch
      %47 = sbr.rel (0) target = $region25
    $region24: #{encoder_decoder_forward.1} parent=1 // pred_region
      _
    $region25: #{encoder_decoder_forward.1} parent=1 // pred_fallthru
      _
    // Predicated region
    $region26: #{encoder_decoder_forward.1} parent=1 // pred_check
      _
    $region27: #{encoder_decoder_forward.1} parent=1 // pred_check_branch
      %49 = sbr.rel (0) target = $region29
    $region28: #{encoder_decoder_forward.1} parent=1 // pred_region
      _
    $region29: #{encoder_decoder_forward.1} parent=1 // pred_fallthru
      _
    // Predicated region
    $region30: #{encoder_decoder_forward.1} parent=1 // pred_check
      _
    $region31: #{encoder_decoder_forward.1} parent=1 // pred_check_branch
      %51 = sbr.rel (0) target = $region33
    $region32: #{encoder_decoder_forward.1} parent=1 // pred_region
      _
    $region33: #{encoder_decoder_forward.1} parent=1 // pred_fallthru
      _
    // Predicated region
    $region34: #{encoder_decoder_forward.1} parent=1 // pred_check
      _
    $region35: #{encoder_decoder_forward.1} parent=1 // pred_check_branch
      %53 = sbr.rel (0) target = $region37
    $region36: #{encoder_decoder_forward.1} parent=1 // pred_region
      _
    $region37: #{encoder_decoder_forward.1} parent=1 // pred_fallthru
      _
    // Predicated region
    $region38: #{encoder_decoder_forward.1} parent=1 // pred_check
      _
    $region39: #{encoder_decoder_forward.1} parent=1 // pred_check_branch
      %55 = sbr.rel (0) target = $region41
    $region40: #{encoder_decoder_forward.1} parent=1 // pred_region
      _
    $region41: #{encoder_decoder_forward.1} parent=1 // pred_fallthru
      _
    // Predicated region
    $region42: #{encoder_decoder_forward.1} parent=1 // pred_check
      _
    $region43: #{encoder_decoder_forward.1} parent=1 // pred_check_branch
      %57 = sbr.rel (0) target = $region45
    $region44: #{encoder_decoder_forward.1} parent=1 // pred_region
      _
    $region45: #{encoder_decoder_forward.1} parent=1 // pred_fallthru
      _
    // Predicated region
    $region46: #{encoder_decoder_forward.1} parent=1 // pred_check
      _
    $region47: #{encoder_decoder_forward.1} parent=1 // pred_check_branch
      %59 = sbr.rel (0) target = $region49
    $region48: #{encoder_decoder_forward.1} parent=1 // pred_region
      _
    $region49: #{encoder_decoder_forward.1} parent=1 // pred_fallthru
      _
    // Predicated region
    $region50: #{encoder_decoder_forward.1} parent=1 // pred_check
      _
    $region51: #{encoder_decoder_forward.1} parent=1 // pred_check_branch
      %61 = sbr.rel (0) target = $region53
    $region52: #{encoder_decoder_forward.1} parent=1 // pred_region
      _
    $region53: #{encoder_decoder_forward.1} parent=1 // pred_fallthru
      _
    // Predicated region
    $region54: #{encoder_decoder_forward.1} parent=1 // pred_check
      _
    $region55: #{encoder_decoder_forward.1} parent=1 // pred_check_branch
      %63 = sbr.rel (0) target = $region57
    $region56: #{encoder_decoder_forward.1} parent=1 // pred_region
      _
    $region57: #{encoder_decoder_forward.1} parent=1 // pred_fallthru
      _
    // Predicated region
    $region58: #{encoder_decoder_forward.1} parent=1 // pred_check
      _
    $region59: #{encoder_decoder_forward.1} parent=1 // pred_check_branch
      %65 = sbr.rel (0) target = $region61
    $region60: #{encoder_decoder_forward.1} parent=1 // pred_region
      %67 = dma.done [#allocation4], 16
    $region61: #{encoder_decoder_forward.1} parent=1 // pred_fallthru
      _
    // Predicated region
    $region62: #{encoder_decoder_forward.1} parent=1 // pred_check
      _
    $region63: #{encoder_decoder_forward.1} parent=1 // pred_check_branch
      %69 = sbr.rel (0) target = $region65
    $region64: #{encoder_decoder_forward.1} parent=1 // pred_region
      %71 = dma.done [#allocation6], 16
    $region65: #{encoder_decoder_forward.1} parent=1 // pred_fallthru
      _
    %72 = sfence
    %v73 = vld [vmem:[%s5] sm:$0xff]
    %v74 = vld [vmem:[%s5 + $0x8] sm:$0xff]
    %v75 = vld [vmem:[%s5 + $0x10] sm:$0xff]
    %v76 = vld [vmem:[%s5 + $0x18] sm:$0xff]
    %s77 = scalar_lea.vmem %s5, 32
    %v78 = vld [vmem:[%s77] sm:$0xff]
    %v79 = vld [vmem:[%s77 + $0x8] sm:$0xff]
    %v80 = vld [vmem:[%s77 + $0x10] sm:$0xff]
    %v81 = vld [vmem:[%s77 + $0x18] sm:$0xff]
    %s82 = scalar_lea.vmem %s5, 64
    %v83 = vld [vmem:[%s82] sm:$0xff]
    %v84 = vld [vmem:[%s82 + $0x8] sm:$0xff]
    %v85 = vld [vmem:[%s82 + $0x10] sm:$0xff]
    %v86 = vld [vmem:[%s82 + $0x18] sm:$0xff]
    %v87 = vld [vmem:[%s6] sm:$0x1]
    %v89 = vperm.slane %v87, 0
    %s91 = sld [smem:[#allocation2]]
    %s92 = scalar_lea.vmem %s2, %s91
    %v93 = vld [vmem:[%s92] sm:$0x1]
    %s94 = sld [smem:[#allocation2 + $0x1]]
    %s95 = scalar_lea.vmem %s2, %s94
    %v96 = vld [vmem:[%s95] sm:$0x1]
    %v98 = vrot.slane %v96, 7
    %vm100 = vcmask 1040384
    %v101 = vsel %vm100, %v93, %v98
    %s102 = scalar_lea.vmem %s3, %s91
    %v103 = vld [vmem:[%s102] sm:$0x1]
    %s104 = scalar_lea.vmem %s3, %s94
    %v105 = vld [vmem:[%s104] sm:$0x1]
    %v107 = vrot.slane %v105, 7
    %v109 = vsel %vm100, %v103, %v107
    %s110 = scalar_lea.vmem %s4, %s91
    %v111 = vld [vmem:[%s110] sm:$0x1]
    %s112 = scalar_lea.vmem %s4, %s94
    %v113 = vld [vmem:[%s112] sm:$0x1]
    %v115 = vrot.slane %v113, 7
    %v117 = vsel %vm100, %v111, %v115
    %vm118 = vcmask 261120
    %v120 = vsel %vm118, 0.0, 0
    %122 = vmatpush.msra.mxu0 0.0
    %123 = vmatpush.msra.mxu0 0.0
    %124 = vmatpush.msra.mxu0 0.0
    %125 = vmatpush.msra.mxu0 0.0
    %126 = vmatpush.msra.mxu0 0.0
    %127 = vmatpush.msra.mxu0 0.0
    %128 = vmatpush.msra.mxu0 0.0
    %129 = vmatpush.msra.mxu0 0.0
    %130 = vmatpush.msra.mxu0 0.0
    %131 = vmatpush.msra.mxu0 0.0
    %132 = vmatpush.msra.mxu0 0.0
    %133 = vmatpush.msra.mxu0 0.0
    %134 = vmatpush.msra.mxu0 %v76
    %135 = vmatpush.msra.mxu0 %v75
    %136 = vmatpush.msra.mxu0 %v74
    %137 = vmatpush.msra.mxu0 %v73
    %138 = vmatmul.f32.gmra.mxu0 %v120
    %v139 = vpop.f32.mrf.mxu0
    %v140 = vadd.f32 0.0, %v139
    %141 = vdwg.mxu0
    %142 = vmatpush.msra.mxu0 0.0
    %143 = vmatpush.msra.mxu0 0.0
    %144 = vmatpush.msra.mxu0 0.0
    %145 = vmatpush.msra.mxu0 0.0
    %146 = vmatpush.msra.mxu0 0.0
    %147 = vmatpush.msra.mxu0 0.0
    %148 = vmatpush.msra.mxu0 0.0
    %149 = vmatpush.msra.mxu0 0.0
    %150 = vmatpush.msra.mxu0 0.0
    %151 = vmatpush.msra.mxu0 0.0
    %152 = vmatpush.msra.mxu0 0.0
    %153 = vmatpush.msra.mxu0 0.0
    %154 = vmatpush.msra.mxu0 %v81
    %155 = vmatpush.msra.mxu0 %v80
    %156 = vmatpush.msra.mxu0 %v79
    %157 = vmatpush.msra.mxu0 %v78
    %158 = vmatmul.f32.gmra.mxu0 %v120
    %v159 = vpop.f32.mrf.mxu0
    %v160 = vadd.f32 0.0, %v159
    %161 = vdwg.mxu0
    %v162 = vadd.f32 %v101, %v140
    %v163 = vxor.u32 %v162, 2147483648
    %v164 = vmul.f32 %v163, 1.442695
    %v165 = vpow.pop %v164
    %v166 = vadd.f32 %v165, 1.0
    %v167 = vrcp.pop %v166
    %v168 = vmul.f32 %v166, %v167
    %v169 = vsub.f32 1.0, %v168
    %v170 = vmul.f32 %v167, %v169
    %v171 = vadd.f32 %v167, %v170
    %vm172 = vweird.f32 %v166
    %vm173 = vweird.f32 %v167
    %vm174 = vmor %vm172, %vm173
    %v175 = vsel %vm174, %v167, %v171
    %v176 = vand.u32 2147483647, %v166
    %vm177 = vcmp.eq.f32.partialorder %v176, 8.507059e+37
    %v178 = vand.u32 %v166, 2147483648
    %v179 = vor.u32 1.1754944e-38, %v178
    %v180 = vsel %vm177, %v179, %v175
    %v181 = vmul.f32 1.0, %v180
    %v182 = vadd.f32 %v109, %v160
    %v183 = vxor.u32 %v182, 2147483648
    %v184 = vmul.f32 %v183, 1.442695
    %v185 = vpow.pop %v184
    %v186 = vadd.f32 %v185, 1.0
    %v187 = vrcp.pop %v186
    %v188 = vmul.f32 %v186, %v187
    %v189 = vsub.f32 1.0, %v188
    %v190 = vmul.f32 %v187, %v189
    %v191 = vadd.f32 %v187, %v190
    %vm192 = vweird.f32 %v186
    %vm193 = vweird.f32 %v187
    %vm194 = vmor %vm192, %vm193
    %v195 = vsel %vm194, %v187, %v191
    %v196 = vand.u32 2147483647, %v186
    %vm197 = vcmp.eq.f32.partialorder %v196, 8.507059e+37
    %v198 = vand.u32 %v186, 2147483648
    %v199 = vor.u32 1.1754944e-38, %v198
    %v200 = vsel %vm197, %v199, %v195
    %v201 = vmul.f32 1.0, %v200
    %202 = vmatpush.msra.mxu0 0.0
    %203 = vmatpush.msra.mxu0 0.0
    %204 = vmatpush.msra.mxu0 0.0
    %205 = vmatpush.msra.mxu0 0.0
    %206 = vmatpush.msra.mxu0 0.0
    %207 = vmatpush.msra.mxu0 0.0
    %208 = vmatpush.msra.mxu0 0.0
    %209 = vmatpush.msra.mxu0 0.0
    %210 = vmatpush.msra.mxu0 0.0
    %211 = vmatpush.msra.mxu0 0.0
    %212 = vmatpush.msra.mxu0 0.0
    %213 = vmatpush.msra.mxu0 0.0
    %214 = vmatpush.msra.mxu0 %v86
    %215 = vmatpush.msra.mxu0 %v85
    %216 = vmatpush.msra.mxu0 %v84
    %217 = vmatpush.msra.mxu0 %v83
    %218 = vmatmul.f32.gmra.mxu0 %v120
    %v219 = vpop.f32.mrf.mxu0
    %v220 = vadd.f32 %v89, %v219
    %221 = vdwg.mxu0
    %v222 = vmul.f32 %v181, %v220
    %v223 = vadd.f32 %v117, %v222
    %v224 = vtanh.pop %v223
    %v225 = vsub.f32 1.0, %v201
    %v226 = vmul.f32 %v225, %v224
    %v227 = vmul.f32 %v201, 0.0
    %v228 = vadd.f32 %v226, %v227
    %s229 = sld [smem:[#allocation2 + $0x2]]
    %s230 = scalar_lea.vmem %s2, %s229
    %v231 = vld [vmem:[%s230] sm:$0x1]
    %s232 = sld [smem:[#allocation2 + $0x3]]
    %s233 = scalar_lea.vmem %s2, %s232
    %v234 = vld [vmem:[%s233] sm:$0x1]
    %v236 = vrot.slane %v234, 7
    %v238 = vsel %vm100, %v231, %v236
    %s239 = scalar_lea.vmem %s3, %s229
    %v240 = vld [vmem:[%s239] sm:$0x1]
    %s241 = scalar_lea.vmem %s3, %s232
    %v242 = vld [vmem:[%s241] sm:$0x1]
    %v244 = vrot.slane %v242, 7
    %v246 = vsel %vm100, %v240, %v244
    %s247 = scalar_lea.vmem %s4, %s229
    %v248 = vld [vmem:[%s247] sm:$0x1]
    %s249 = scalar_lea.vmem %s4, %s232
    %v250 = vld [vmem:[%s249] sm:$0x1]
    %v252 = vrot.slane %v250, 7
    %v254 = vsel %vm100, %v248, %v252
    %v256 = vsel %vm118, %v228, 0
    %258 = vmatpush.msra.mxu0 0.0
    %259 = vmatpush.msra.mxu0 0.0
    %260 = vmatpush.msra.mxu0 0.0
    %261 = vmatpush.msra.mxu0 0.0
    %262 = vmatpush.msra.mxu0 0.0
    %263 = vmatpush.msra.mxu0 0.0
    %264 = vmatpush.msra.mxu0 0.0
    %265 = vmatpush.msra.mxu0 0.0
    %266 = vmatpush.msra.mxu0 0.0
    %267 = vmatpush.msra.mxu0 0.0
    %268 = vmatpush.msra.mxu0 0.0
    %269 = vmatpush.msra.mxu0 0.0
    %270 = vmatpush.msra.mxu0 %v76
    %271 = vmatpush.msra.mxu0 %v75
    %272 = vmatpush.msra.mxu0 %v74
    %273 = vmatpush.msra.mxu0 %v73
    %274 = vmatmul.f32.gmra.mxu0 %v256
    %v275 = vpop.f32.mrf.mxu0
    %v276 = vadd.f32 0.0, %v275
    %277 = vdwg.mxu0
    %278 = vmatpush.msra.mxu0 0.0
    %279 = vmatpush.msra.mxu0 0.0
    %280 = vmatpush.msra.mxu0 0.0
    %281 = vmatpush.msra.mxu0 0.0
    %282 = vmatpush.msra.mxu0 0.0
    %283 = vmatpush.msra.mxu0 0.0
    %284 = vmatpush.msra.mxu0 0.0
    %285 = vmatpush.msra.mxu0 0.0
    %286 = vmatpush.msra.mxu0 0.0
    %287 = vmatpush.msra.mxu0 0.0
    %288 = vmatpush.msra.mxu0 0.0
    %289 = vmatpush.msra.mxu0 0.0
    %290 = vmatpush.msra.mxu0 %v81
    %291 = vmatpush.msra.mxu0 %v80
    %292 = vmatpush.msra.mxu0 %v79
    %293 = vmatpush.msra.mxu0 %v78
    %294 = vmatmul.f32.gmra.mxu0 %v256
    %v295 = vpop.f32.mrf.mxu0
    %v296 = vadd.f32 0.0, %v295
    %297 = vdwg.mxu0
    %v298 = vadd.f32 %v238, %v276
    %v299 = vxor.u32 %v298, 2147483648
    %v300 = vmul.f32 %v299, 1.442695
    %v301 = vpow.pop %v300
    %v302 = vadd.f32 %v301, 1.0
    %v303 = vrcp.pop %v302
    %v304 = vmul.f32 %v302, %v303
    %v305 = vsub.f32 1.0, %v304
    %v306 = vmul.f32 %v303, %v305
    %v307 = vadd.f32 %v303, %v306
    %vm308 = vweird.f32 %v302
    %vm309 = vweird.f32 %v303
    %vm310 = vmor %vm308, %vm309
    %v311 = vsel %vm310, %v303, %v307
    %v312 = vand.u32 2147483647, %v302
    %vm313 = vcmp.eq.f32.partialorder %v312, 8.507059e+37
    %v314 = vand.u32 %v302, 2147483648
    %v315 = vor.u32 1.1754944e-38, %v314
    %v316 = vsel %vm313, %v315, %v311
    %v317 = vmul.f32 1.0, %v316
    %v318 = vadd.f32 %v246, %v296
    %v319 = vxor.u32 %v318, 2147483648
    %v320 = vmul.f32 %v319, 1.442695
    %v321 = vpow.pop %v320
    %v322 = vadd.f32 %v321, 1.0
    %v323 = vrcp.pop %v322
    %v324 = vmul.f32 %v322, %v323
    %v325 = vsub.f32 1.0, %v324
    %v326 = vmul.f32 %v323, %v325
    %v327 = vadd.f32 %v323, %v326
    %vm328 = vweird.f32 %v322
    %vm329 = vweird.f32 %v323
    %vm330 = vmor %vm328, %vm329
    %v331 = vsel %vm330, %v323, %v327
    %v332 = vand.u32 2147483647, %v322
    %vm333 = vcmp.eq.f32.partialorder %v332, 8.507059e+37
    %v334 = vand.u32 %v322, 2147483648
    %v335 = vor.u32 1.1754944e-38, %v334
    %v336 = vsel %vm333, %v335, %v331
    %v337 = vmul.f32 1.0, %v336
    %338 = vmatpush.msra.mxu0 0.0
    %339 = vmatpush.msra.mxu0 0.0
    %340 = vmatpush.msra.mxu0 0.0
    %341 = vmatpush.msra.mxu0 0.0
    %342 = vmatpush.msra.mxu0 0.0
    %343 = vmatpush.msra.mxu0 0.0
    %344 = vmatpush.msra.mxu0 0.0
    %345 = vmatpush.msra.mxu0 0.0
    %346 = vmatpush.msra.mxu0 0.0
    %347 = vmatpush.msra.mxu0 0.0
    %348 = vmatpush.msra.mxu0 0.0
    %349 = vmatpush.msra.mxu0 0.0
    %350 = vmatpush.msra.mxu0 %v86
    %351 = vmatpush.msra.mxu0 %v85
    %352 = vmatpush.msra.mxu0 %v84
    %353 = vmatpush.msra.mxu0 %v83
    %354 = vmatmul.f32.gmra.mxu0 %v256
    %v355 = vpop.f32.mrf.mxu0
    %v356 = vadd.f32 %v89, %v355
    %357 = vdwg.mxu0
    %v358 = vmul.f32 %v317, %v356
    %v359 = vadd.f32 %v254, %v358
    %v360 = vtanh.pop %v359
    %v361 = vsub.f32 1.0, %v337
    %v362 = vmul.f32 %v361, %v360
    %v363 = vmul.f32 %v337, %v228
    %v364 = vadd.f32 %v362, %v363
    %s365 = sld [smem:[#allocation2 + $0x4]]
    %s366 = scalar_lea.vmem %s2, %s365
    %v367 = vld [vmem:[%s366] sm:$0x1]
    %s368 = sld [smem:[#allocation2 + $0x5]]
    %s369 = scalar_lea.vmem %s2, %s368
    %v370 = vld [vmem:[%s369] sm:$0x1]
    %v372 = vrot.slane %v370, 7
    %v374 = vsel %vm100, %v367, %v372
    %s375 = scalar_lea.vmem %s3, %s365
    %v376 = vld [vmem:[%s375] sm:$0x1]
    %s377 = scalar_lea.vmem %s3, %s368
    %v378 = vld [vmem:[%s377] sm:$0x1]
    %v380 = vrot.slane %v378, 7
    %v382 = vsel %vm100, %v376, %v380
    %s383 = scalar_lea.vmem %s4, %s365
    %v384 = vld [vmem:[%s383] sm:$0x1]
    %s385 = scalar_lea.vmem %s4, %s368
    %v386 = vld [vmem:[%s385] sm:$0x1]
    %v388 = vrot.slane %v386, 7
    %v390 = vsel %vm100, %v384, %v388
    %v392 = vsel %vm118, %v364, 0
    %394 = vmatpush.msra.mxu0 0.0
    %395 = vmatpush.msra.mxu0 0.0
    %396 = vmatpush.msra.mxu0 0.0
    %397 = vmatpush.msra.mxu0 0.0
    %398 = vmatpush.msra.mxu0 0.0
    %399 = vmatpush.msra.mxu0 0.0
    %400 = vmatpush.msra.mxu0 0.0
    %401 = vmatpush.msra.mxu0 0.0
    %402 = vmatpush.msra.mxu0 0.0
    %403 = vmatpush.msra.mxu0 0.0
    %404 = vmatpush.msra.mxu0 0.0
    %405 = vmatpush.msra.mxu0 0.0
    %406 = vmatpush.msra.mxu0 %v76
    %407 = vmatpush.msra.mxu0 %v75
    %408 = vmatpush.msra.mxu0 %v74
    %409 = vmatpush.msra.mxu0 %v73
    %410 = vmatmul.f32.gmra.mxu0 %v392
    %v411 = vpop.f32.mrf.mxu0
    %v412 = vadd.f32 0.0, %v411
    %413 = vdwg.mxu0
    %414 = vmatpush.msra.mxu0 0.0
    %415 = vmatpush.msra.mxu0 0.0
    %416 = vmatpush.msra.mxu0 0.0
    %417 = vmatpush.msra.mxu0 0.0
    %418 = vmatpush.msra.mxu0 0.0
    %419 = vmatpush.msra.mxu0 0.0
    %420 = vmatpush.msra.mxu0 0.0
    %421 = vmatpush.msra.mxu0 0.0
    %422 = vmatpush.msra.mxu0 0.0
    %423 = vmatpush.msra.mxu0 0.0
    %424 = vmatpush.msra.mxu0 0.0
    %425 = vmatpush.msra.mxu0 0.0
    %426 = vmatpush.msra.mxu0 %v81
    %427 = vmatpush.msra.mxu0 %v80
    %428 = vmatpush.msra.mxu0 %v79
    %429 = vmatpush.msra.mxu0 %v78
    %430 = vmatmul.f32.gmra.mxu0 %v392
    %v431 = vpop.f32.mrf.mxu0
    %v432 = vadd.f32 0.0, %v431
    %433 = vdwg.mxu0
    %v434 = vadd.f32 %v374, %v412
    %v435 = vxor.u32 %v434, 2147483648
    %v436 = vmul.f32 %v435, 1.442695
    %v437 = vpow.pop %v436
    %v438 = vadd.f32 %v437, 1.0
    %v439 = vrcp.pop %v438
    %v440 = vmul.f32 %v438, %v439
    %v441 = vsub.f32 1.0, %v440
    %v442 = vmul.f32 %v439, %v441
    %v443 = vadd.f32 %v439, %v442
    %vm444 = vweird.f32 %v438
    %vm445 = vweird.f32 %v439
    %vm446 = vmor %vm444, %vm445
    %v447 = vsel %vm446, %v439, %v443
    %v448 = vand.u32 2147483647, %v438
    %vm449 = vcmp.eq.f32.partialorder %v448, 8.507059e+37
    %v450 = vand.u32 %v438, 2147483648
    %v451 = vor.u32 1.1754944e-38, %v450
    %v452 = vsel %vm449, %v451, %v447
    %v453 = vmul.f32 1.0, %v452
    %v454 = vadd.f32 %v382, %v432
    %v455 = vxor.u32 %v454, 2147483648
    %v456 = vmul.f32 %v455, 1.442695
    %v457 = vpow.pop %v456
    %v458 = vadd.f32 %v457, 1.0
    %v459 = vrcp.pop %v458
    %v460 = vmul.f32 %v458, %v459
    %v461 = vsub.f32 1.0, %v460
    %v462 = vmul.f32 %v459, %v461
    %v463 = vadd.f32 %v459, %v462
    %vm464 = vweird.f32 %v458
    %vm465 = vweird.f32 %v459
    %vm466 = vmor %vm464, %vm465
    %v467 = vsel %vm466, %v459, %v463
    %v468 = vand.u32 2147483647, %v458
    %vm469 = vcmp.eq.f32.partialorder %v468, 8.507059e+37
    %v470 = vand.u32 %v458, 2147483648
    %v471 = vor.u32 1.1754944e-38, %v470
    %v472 = vsel %vm469, %v471, %v467
    %v473 = vmul.f32 1.0, %v472
    %474 = vmatpush.msra.mxu0 0.0
    %475 = vmatpush.msra.mxu0 0.0
    %476 = vmatpush.msra.mxu0 0.0
    %477 = vmatpush.msra.mxu0 0.0
    %478 = vmatpush.msra.mxu0 0.0
    %479 = vmatpush.msra.mxu0 0.0
    %480 = vmatpush.msra.mxu0 0.0
    %481 = vmatpush.msra.mxu0 0.0
    %482 = vmatpush.msra.mxu0 0.0
    %483 = vmatpush.msra.mxu0 0.0
    %484 = vmatpush.msra.mxu0 0.0
    %485 = vmatpush.msra.mxu0 0.0
    %486 = vmatpush.msra.mxu0 %v86
    %487 = vmatpush.msra.mxu0 %v85
    %488 = vmatpush.msra.mxu0 %v84
    %489 = vmatpush.msra.mxu0 %v83
    %490 = vmatmul.f32.gmra.mxu0 %v392
    %v491 = vpop.f32.mrf.mxu0
    %v492 = vadd.f32 %v89, %v491
    %493 = vdwg.mxu0
    %v494 = vmul.f32 %v453, %v492
    %v495 = vadd.f32 %v390, %v494
    %v496 = vtanh.pop %v495
    %v497 = vsub.f32 1.0, %v473
    %v498 = vmul.f32 %v497, %v496
    %v499 = vmul.f32 %v473, %v364
    %v500 = vadd.f32 %v498, %v499
    %s501 = sld [smem:[#allocation2 + $0x6]]
    %s502 = scalar_lea.vmem %s2, %s501
    %v503 = vld [vmem:[%s502] sm:$0x1]
    %s504 = sld [smem:[#allocation2 + $0x7]]
    %s505 = scalar_lea.vmem %s2, %s504
    %v506 = vld [vmem:[%s505] sm:$0x1]
    %v508 = vrot.slane %v506, 7
    %v510 = vsel %vm100, %v503, %v508
    %s511 = scalar_lea.vmem %s3, %s501
    %v512 = vld [vmem:[%s511] sm:$0x1]
    %s513 = scalar_lea.vmem %s3, %s504
    %v514 = vld [vmem:[%s513] sm:$0x1]
    %v516 = vrot.slane %v514, 7
    %v518 = vsel %vm100, %v512, %v516
    %s519 = scalar_lea.vmem %s4, %s501
    %v520 = vld [vmem:[%s519] sm:$0x1]
    %s521 = scalar_lea.vmem %s4, %s504
    %v522 = vld [vmem:[%s521] sm:$0x1]
    %v524 = vrot.slane %v522, 7
    %v526 = vsel %vm100, %v520, %v524
    %v528 = vsel %vm118, %v500, 0
    %530 = vmatpush.msra.mxu0 0.0
    %531 = vmatpush.msra.mxu0 0.0
    %532 = vmatpush.msra.mxu0 0.0
    %533 = vmatpush.msra.mxu0 0.0
    %534 = vmatpush.msra.mxu0 0.0
    %535 = vmatpush.msra.mxu0 0.0
    %536 = vmatpush.msra.mxu0 0.0
    %537 = vmatpush.msra.mxu0 0.0
    %538 = vmatpush.msra.mxu0 0.0
    %539 = vmatpush.msra.mxu0 0.0
    %540 = vmatpush.msra.mxu0 0.0
    %541 = vmatpush.msra.mxu0 0.0
    %542 = vmatpush.msra.mxu0 %v76
    %543 = vmatpush.msra.mxu0 %v75
    %544 = vmatpush.msra.mxu0 %v74
    %545 = vmatpush.msra.mxu0 %v73
    %546 = vmatmul.f32.gmra.mxu0 %v528
    %v547 = vpop.f32.mrf.mxu0
    %v548 = vadd.f32 0.0, %v547
    %549 = vdwg.mxu0
    %550 = vmatpush.msra.mxu0 0.0
    %551 = vmatpush.msra.mxu0 0.0
    %552 = vmatpush.msra.mxu0 0.0
    %553 = vmatpush.msra.mxu0 0.0
    %554 = vmatpush.msra.mxu0 0.0
    %555 = vmatpush.msra.mxu0 0.0
    %556 = vmatpush.msra.mxu0 0.0
    %557 = vmatpush.msra.mxu0 0.0
    %558 = vmatpush.msra.mxu0 0.0
    %559 = vmatpush.msra.mxu0 0.0
    %560 = vmatpush.msra.mxu0 0.0
    %561 = vmatpush.msra.mxu0 0.0
    %562 = vmatpush.msra.mxu0 %v81
    %563 = vmatpush.msra.mxu0 %v80
    %564 = vmatpush.msra.mxu0 %v79
    %565 = vmatpush.msra.mxu0 %v78
    %566 = vmatmul.f32.gmra.mxu0 %v528
    %v567 = vpop.f32.mrf.mxu0
    %v568 = vadd.f32 0.0, %v567
    %569 = vdwg.mxu0
    %v570 = vadd.f32 %v510, %v548
    %v571 = vxor.u32 %v570, 2147483648
    %v572 = vmul.f32 %v571, 1.442695
    %v573 = vpow.pop %v572
    %v574 = vadd.f32 %v573, 1.0
    %v575 = vrcp.pop %v574
    %v576 = vmul.f32 %v574, %v575
    %v577 = vsub.f32 1.0, %v576
    %v578 = vmul.f32 %v575, %v577
    %v579 = vadd.f32 %v575, %v578
    %vm580 = vweird.f32 %v574
    %vm581 = vweird.f32 %v575
    %vm582 = vmor %vm580, %vm581
    %v583 = vsel %vm582, %v575, %v579
    %v584 = vand.u32 2147483647, %v574
    %vm585 = vcmp.eq.f32.partialorder %v584, 8.507059e+37
    %v586 = vand.u32 %v574, 2147483648
    %v587 = vor.u32 1.1754944e-38, %v586
    %v588 = vsel %vm585, %v587, %v583
    %v589 = vmul.f32 1.0, %v588
    %v590 = vadd.f32 %v518, %v568
    %v591 = vxor.u32 %v590, 2147483648
    %v592 = vmul.f32 %v591, 1.442695
    %v593 = vpow.pop %v592
    %v594 = vadd.f32 %v593, 1.0
    %v595 = vrcp.pop %v594
    %v596 = vmul.f32 %v594, %v595
    %v597 = vsub.f32 1.0, %v596
    %v598 = vmul.f32 %v595, %v597
    %v599 = vadd.f32 %v595, %v598
    %vm600 = vweird.f32 %v594
    %vm601 = vweird.f32 %v595
    %vm602 = vmor %vm600, %vm601
    %v603 = vsel %vm602, %v595, %v599
    %v604 = vand.u32 2147483647, %v594
    %vm605 = vcmp.eq.f32.partialorder %v604, 8.507059e+37
    %v606 = vand.u32 %v594, 2147483648
    %v607 = vor.u32 1.1754944e-38, %v606
    %v608 = vsel %vm605, %v607, %v603
    %v609 = vmul.f32 1.0, %v608
    %610 = vmatpush.msra.mxu0 0.0
    %611 = vmatpush.msra.mxu0 0.0
    %612 = vmatpush.msra.mxu0 0.0
    %613 = vmatpush.msra.mxu0 0.0
    %614 = vmatpush.msra.mxu0 0.0
    %615 = vmatpush.msra.mxu0 0.0
    %616 = vmatpush.msra.mxu0 0.0
    %617 = vmatpush.msra.mxu0 0.0
    %618 = vmatpush.msra.mxu0 0.0
    %619 = vmatpush.msra.mxu0 0.0
    %620 = vmatpush.msra.mxu0 0.0
    %621 = vmatpush.msra.mxu0 0.0
    %622 = vmatpush.msra.mxu0 %v86
    %623 = vmatpush.msra.mxu0 %v85
    %624 = vmatpush.msra.mxu0 %v84
    %625 = vmatpush.msra.mxu0 %v83
    %626 = vmatmul.f32.gmra.mxu0 %v528
    %v627 = vpop.f32.mrf.mxu0
    %v628 = vadd.f32 %v89, %v627
    %629 = vdwg.mxu0
    %v630 = vmul.f32 %v589, %v628
    %v631 = vadd.f32 %v526, %v630
    %v632 = vtanh.pop %v631
    %v633 = vsub.f32 1.0, %v609
    %v634 = vmul.f32 %v633, %v632
    %v635 = vmul.f32 %v609, %v500
    %v636 = vadd.f32 %v634, %v635
    %s637 = sld [smem:[#allocation2 + $0x8]]
    %s638 = scalar_lea.vmem %s2, %s637
    %v639 = vld [vmem:[%s638] sm:$0x1]
    %s640 = sld [smem:[#allocation2 + $0x9]]
    %s641 = scalar_lea.vmem %s2, %s640
    %v642 = vld [vmem:[%s641] sm:$0x1]
    %v644 = vrot.slane %v642, 7
    %v646 = vsel %vm100, %v639, %v644
    %s647 = scalar_lea.vmem %s3, %s637
    %v648 = vld [vmem:[%s647] sm:$0x1]
    %s649 = scalar_lea.vmem %s3, %s640
    %v650 = vld [vmem:[%s649] sm:$0x1]
    %v652 = vrot.slane %v650, 7
    %v654 = vsel %vm100, %v648, %v652
    %s655 = scalar_lea.vmem %s4, %s637
    %v656 = vld [vmem:[%s655] sm:$0x1]
    %s657 = scalar_lea.vmem %s4, %s640
    %v658 = vld [vmem:[%s657] sm:$0x1]
    %v660 = vrot.slane %v658, 7
    %v662 = vsel %vm100, %v656, %v660
    %v664 = vsel %vm118, %v636, 0
    %666 = vmatpush.msra.mxu0 0.0
    %667 = vmatpush.msra.mxu0 0.0
    %668 = vmatpush.msra.mxu0 0.0
    %669 = vmatpush.msra.mxu0 0.0
    %670 = vmatpush.msra.mxu0 0.0
    %671 = vmatpush.msra.mxu0 0.0
    %672 = vmatpush.msra.mxu0 0.0
    %673 = vmatpush.msra.mxu0 0.0
    %674 = vmatpush.msra.mxu0 0.0
    %675 = vmatpush.msra.mxu0 0.0
    %676 = vmatpush.msra.mxu0 0.0
    %677 = vmatpush.msra.mxu0 0.0
    %678 = vmatpush.msra.mxu0 %v76
    %679 = vmatpush.msra.mxu0 %v75
    %680 = vmatpush.msra.mxu0 %v74
    %681 = vmatpush.msra.mxu0 %v73
    %682 = vmatmul.f32.gmra.mxu0 %v664
    %v683 = vpop.f32.mrf.mxu0
    %v684 = vadd.f32 0.0, %v683
    %685 = vdwg.mxu0
    %686 = vmatpush.msra.mxu0 0.0
    %687 = vmatpush.msra.mxu0 0.0
    %688 = vmatpush.msra.mxu0 0.0
    %689 = vmatpush.msra.mxu0 0.0
    %690 = vmatpush.msra.mxu0 0.0
    %691 = vmatpush.msra.mxu0 0.0
    %692 = vmatpush.msra.mxu0 0.0
    %693 = vmatpush.msra.mxu0 0.0
    %694 = vmatpush.msra.mxu0 0.0
    %695 = vmatpush.msra.mxu0 0.0
    %696 = vmatpush.msra.mxu0 0.0
    %697 = vmatpush.msra.mxu0 0.0
    %698 = vmatpush.msra.mxu0 %v81
    %699 = vmatpush.msra.mxu0 %v80
    %700 = vmatpush.msra.mxu0 %v79
    %701 = vmatpush.msra.mxu0 %v78
    %702 = vmatmul.f32.gmra.mxu0 %v664
    %v703 = vpop.f32.mrf.mxu0
    %v704 = vadd.f32 0.0, %v703
    %705 = vdwg.mxu0
    %v706 = vadd.f32 %v646, %v684
    %v707 = vxor.u32 %v706, 2147483648
    %v708 = vmul.f32 %v707, 1.442695
    %v709 = vpow.pop %v708
    %v710 = vadd.f32 %v709, 1.0
    %v711 = vrcp.pop %v710
    %v712 = vmul.f32 %v710, %v711
    %v713 = vsub.f32 1.0, %v712
    %v714 = vmul.f32 %v711, %v713
    %v715 = vadd.f32 %v711, %v714
    %vm716 = vweird.f32 %v710
    %vm717 = vweird.f32 %v711
    %vm718 = vmor %vm716, %vm717
    %v719 = vsel %vm718, %v711, %v715
    %v720 = vand.u32 2147483647, %v710
    %vm721 = vcmp.eq.f32.partialorder %v720, 8.507059e+37
    %v722 = vand.u32 %v710, 2147483648
    %v723 = vor.u32 1.1754944e-38, %v722
    %v724 = vsel %vm721, %v723, %v719
    %v725 = vmul.f32 1.0, %v724
    %v726 = vadd.f32 %v654, %v704
    %v727 = vxor.u32 %v726, 2147483648
    %v728 = vmul.f32 %v727, 1.442695
    %v729 = vpow.pop %v728
    %v730 = vadd.f32 %v729, 1.0
    %v731 = vrcp.pop %v730
    %v732 = vmul.f32 %v730, %v731
    %v733 = vsub.f32 1.0, %v732
    %v734 = vmul.f32 %v731, %v733
    %v735 = vadd.f32 %v731, %v734
    %vm736 = vweird.f32 %v730
    %vm737 = vweird.f32 %v731
    %vm738 = vmor %vm736, %vm737
    %v739 = vsel %vm738, %v731, %v735
    %v740 = vand.u32 2147483647, %v730
    %vm741 = vcmp.eq.f32.partialorder %v740, 8.507059e+37
    %v742 = vand.u32 %v730, 2147483648
    %v743 = vor.u32 1.1754944e-38, %v742
    %v744 = vsel %vm741, %v743, %v739
    %v745 = vmul.f32 1.0, %v744
    %746 = vmatpush.msra.mxu0 0.0
    %747 = vmatpush.msra.mxu0 0.0
    %748 = vmatpush.msra.mxu0 0.0
    %749 = vmatpush.msra.mxu0 0.0
    %750 = vmatpush.msra.mxu0 0.0
    %751 = vmatpush.msra.mxu0 0.0
    %752 = vmatpush.msra.mxu0 0.0
    %753 = vmatpush.msra.mxu0 0.0
    %754 = vmatpush.msra.mxu0 0.0
    %755 = vmatpush.msra.mxu0 0.0
    %756 = vmatpush.msra.mxu0 0.0
    %757 = vmatpush.msra.mxu0 0.0
    %758 = vmatpush.msra.mxu0 %v86
    %759 = vmatpush.msra.mxu0 %v85
    %760 = vmatpush.msra.mxu0 %v84
    %761 = vmatpush.msra.mxu0 %v83
    %762 = vmatmul.f32.gmra.mxu0 %v664
    %v763 = vpop.f32.mrf.mxu0
    %v764 = vadd.f32 %v89, %v763
    %765 = vdwg.mxu0
    %v766 = vmul.f32 %v725, %v764
    %v767 = vadd.f32 %v662, %v766
    %v768 = vtanh.pop %v767
    %v769 = vsub.f32 1.0, %v745
    %v770 = vmul.f32 %v769, %v768
    %v771 = vmul.f32 %v745, %v636
    %v772 = vadd.f32 %v770, %v771
    %s773 = sld [smem:[#allocation2 + $0xa]]
    %s774 = scalar_lea.vmem %s2, %s773
    %v775 = vld [vmem:[%s774] sm:$0x1]
    %s776 = sld [smem:[#allocation2 + $0xb]]
    %s777 = scalar_lea.vmem %s2, %s776
    %v778 = vld [vmem:[%s777] sm:$0x1]
    %v780 = vrot.slane %v778, 7
    %v782 = vsel %vm100, %v775, %v780
    %s783 = scalar_lea.vmem %s3, %s773
    %v784 = vld [vmem:[%s783] sm:$0x1]
    %s785 = scalar_lea.vmem %s3, %s776
    %v786 = vld [vmem:[%s785] sm:$0x1]
    %v788 = vrot.slane %v786, 7
    %v790 = vsel %vm100, %v784, %v788
    %s791 = scalar_lea.vmem %s4, %s773
    %v792 = vld [vmem:[%s791] sm:$0x1]
    %s793 = scalar_lea.vmem %s4, %s776
    %v794 = vld [vmem:[%s793] sm:$0x1]
    %v796 = vrot.slane %v794, 7
    %v798 = vsel %vm100, %v792, %v796
    %v800 = vsel %vm118, %v772, 0
    %802 = vmatpush.msra.mxu0 0.0
    %803 = vmatpush.msra.mxu0 0.0
    %804 = vmatpush.msra.mxu0 0.0
    %805 = vmatpush.msra.mxu0 0.0
    %806 = vmatpush.msra.mxu0 0.0
    %807 = vmatpush.msra.mxu0 0.0
    %808 = vmatpush.msra.mxu0 0.0
    %809 = vmatpush.msra.mxu0 0.0
    %810 = vmatpush.msra.mxu0 0.0
    %811 = vmatpush.msra.mxu0 0.0
    %812 = vmatpush.msra.mxu0 0.0
    %813 = vmatpush.msra.mxu0 0.0
    %814 = vmatpush.msra.mxu0 %v76
    %815 = vmatpush.msra.mxu0 %v75
    %816 = vmatpush.msra.mxu0 %v74
    %817 = vmatpush.msra.mxu0 %v73
    %818 = vmatmul.f32.gmra.mxu0 %v800
    %v819 = vpop.f32.mrf.mxu0
    %v820 = vadd.f32 0.0, %v819
    %821 = vdwg.mxu0
    %822 = vmatpush.msra.mxu0 0.0
    %823 = vmatpush.msra.mxu0 0.0
    %824 = vmatpush.msra.mxu0 0.0
    %825 = vmatpush.msra.mxu0 0.0
    %826 = vmatpush.msra.mxu0 0.0
    %827 = vmatpush.msra.mxu0 0.0
    %828 = vmatpush.msra.mxu0 0.0
    %829 = vmatpush.msra.mxu0 0.0
    %830 = vmatpush.msra.mxu0 0.0
    %831 = vmatpush.msra.mxu0 0.0
    %832 = vmatpush.msra.mxu0 0.0
    %833 = vmatpush.msra.mxu0 0.0
    %834 = vmatpush.msra.mxu0 %v81
    %835 = vmatpush.msra.mxu0 %v80
    %836 = vmatpush.msra.mxu0 %v79
    %837 = vmatpush.msra.mxu0 %v78
    %838 = vmatmul.f32.gmra.mxu0 %v800
    %v839 = vpop.f32.mrf.mxu0
    %v840 = vadd.f32 0.0, %v839
    %841 = vdwg.mxu0
    %v842 = vadd.f32 %v782, %v820
    %v843 = vxor.u32 %v842, 2147483648
    %v844 = vmul.f32 %v843, 1.442695
    %v845 = vpow.pop %v844
    %v846 = vadd.f32 %v845, 1.0
    %v847 = vrcp.pop %v846
    %v848 = vmul.f32 %v846, %v847
    %v849 = vsub.f32 1.0, %v848
    %v850 = vmul.f32 %v847, %v849
    %v851 = vadd.f32 %v847, %v850
    %vm852 = vweird.f32 %v846
    %vm853 = vweird.f32 %v847
    %vm854 = vmor %vm852, %vm853
    %v855 = vsel %vm854, %v847, %v851
    %v856 = vand.u32 2147483647, %v846
    %vm857 = vcmp.eq.f32.partialorder %v856, 8.507059e+37
    %v858 = vand.u32 %v846, 2147483648
    %v859 = vor.u32 1.1754944e-38, %v858
    %v860 = vsel %vm857, %v859, %v855
    %v861 = vmul.f32 1.0, %v860
    %v862 = vadd.f32 %v790, %v840
    %v863 = vxor.u32 %v862, 2147483648
    %v864 = vmul.f32 %v863, 1.442695
    %v865 = vpow.pop %v864
    %v866 = vadd.f32 %v865, 1.0
    %v867 = vrcp.pop %v866
    %v868 = vmul.f32 %v866, %v867
    %v869 = vsub.f32 1.0, %v868
    %v870 = vmul.f32 %v867, %v869
    %v871 = vadd.f32 %v867, %v870
    %vm872 = vweird.f32 %v866
    %vm873 = vweird.f32 %v867
    %vm874 = vmor %vm872, %vm873
    %v875 = vsel %vm874, %v867, %v871
    %v876 = vand.u32 2147483647, %v866
    %vm877 = vcmp.eq.f32.partialorder %v876, 8.507059e+37
    %v878 = vand.u32 %v866, 2147483648
    %v879 = vor.u32 1.1754944e-38, %v878
    %v880 = vsel %vm877, %v879, %v875
    %v881 = vmul.f32 1.0, %v880
    %882 = vmatpush.msra.mxu0 0.0
    %883 = vmatpush.msra.mxu0 0.0
    %884 = vmatpush.msra.mxu0 0.0
    %885 = vmatpush.msra.mxu0 0.0
    %886 = vmatpush.msra.mxu0 0.0
    %887 = vmatpush.msra.mxu0 0.0
    %888 = vmatpush.msra.mxu0 0.0
    %889 = vmatpush.msra.mxu0 0.0
    %890 = vmatpush.msra.mxu0 0.0
    %891 = vmatpush.msra.mxu0 0.0
    %892 = vmatpush.msra.mxu0 0.0
    %893 = vmatpush.msra.mxu0 0.0
    %894 = vmatpush.msra.mxu0 %v86
    %895 = vmatpush.msra.mxu0 %v85
    %896 = vmatpush.msra.mxu0 %v84
    %897 = vmatpush.msra.mxu0 %v83
    %898 = vmatmul.f32.gmra.mxu0 %v800
    %v899 = vpop.f32.mrf.mxu0
    %v900 = vadd.f32 %v89, %v899
    %901 = vdwg.mxu0
    %v902 = vmul.f32 %v861, %v900
    %v903 = vadd.f32 %v798, %v902
    %v904 = vtanh.pop %v903
    %v905 = vsub.f32 1.0, %v881
    %v906 = vmul.f32 %v905, %v904
    %v907 = vmul.f32 %v881, %v772
    %v908 = vadd.f32 %v906, %v907
    %s909 = sld [smem:[#allocation2 + $0xc]]
    %s910 = scalar_lea.vmem %s2, %s909
    %v911 = vld [vmem:[%s910] sm:$0x1]
    %s912 = sld [smem:[#allocation2 + $0xd]]
    %s913 = scalar_lea.vmem %s2, %s912
    %v914 = vld [vmem:[%s913] sm:$0x1]
    %v916 = vrot.slane %v914, 7
    %v918 = vsel %vm100, %v911, %v916
    %s919 = scalar_lea.vmem %s3, %s909
    %v920 = vld [vmem:[%s919] sm:$0x1]
    %s921 = scalar_lea.vmem %s3, %s912
    %v922 = vld [vmem:[%s921] sm:$0x1]
    %v924 = vrot.slane %v922, 7
    %v926 = vsel %vm100, %v920, %v924
    %s927 = scalar_lea.vmem %s4, %s909
    %v928 = vld [vmem:[%s927] sm:$0x1]
    %s929 = scalar_lea.vmem %s4, %s912
    %v930 = vld [vmem:[%s929] sm:$0x1]
    %v932 = vrot.slane %v930, 7
    %v934 = vsel %vm100, %v928, %v932
    %v936 = vsel %vm118, %v908, 0
    %938 = vmatpush.msra.mxu0 0.0
    %939 = vmatpush.msra.mxu0 0.0
    %940 = vmatpush.msra.mxu0 0.0
    %941 = vmatpush.msra.mxu0 0.0
    %942 = vmatpush.msra.mxu0 0.0
    %943 = vmatpush.msra.mxu0 0.0
    %944 = vmatpush.msra.mxu0 0.0
    %945 = vmatpush.msra.mxu0 0.0
    %946 = vmatpush.msra.mxu0 0.0
    %947 = vmatpush.msra.mxu0 0.0
    %948 = vmatpush.msra.mxu0 0.0
    %949 = vmatpush.msra.mxu0 0.0
    %950 = vmatpush.msra.mxu0 %v76
    %951 = vmatpush.msra.mxu0 %v75
    %952 = vmatpush.msra.mxu0 %v74
    %953 = vmatpush.msra.mxu0 %v73
    %954 = vmatmul.f32.gmra.mxu0 %v936
    %v955 = vpop.f32.mrf.mxu0
    %v956 = vadd.f32 0.0, %v955
    %957 = vdwg.mxu0
    %958 = vmatpush.msra.mxu0 0.0
    %959 = vmatpush.msra.mxu0 0.0
    %960 = vmatpush.msra.mxu0 0.0
    %961 = vmatpush.msra.mxu0 0.0
    %962 = vmatpush.msra.mxu0 0.0
    %963 = vmatpush.msra.mxu0 0.0
    %964 = vmatpush.msra.mxu0 0.0
    %965 = vmatpush.msra.mxu0 0.0
    %966 = vmatpush.msra.mxu0 0.0
    %967 = vmatpush.msra.mxu0 0.0
    %968 = vmatpush.msra.mxu0 0.0
    %969 = vmatpush.msra.mxu0 0.0
    %970 = vmatpush.msra.mxu0 %v81
    %971 = vmatpush.msra.mxu0 %v80
    %972 = vmatpush.msra.mxu0 %v79
    %973 = vmatpush.msra.mxu0 %v78
    %974 = vmatmul.f32.gmra.mxu0 %v936
    %v975 = vpop.f32.mrf.mxu0
    %v976 = vadd.f32 0.0, %v975
    %977 = vdwg.mxu0
    %v978 = vadd.f32 %v918, %v956
    %v979 = vxor.u32 %v978, 2147483648
    %v980 = vmul.f32 %v979, 1.442695
    %v981 = vpow.pop %v980
    %v982 = vadd.f32 %v981, 1.0
    %v983 = vrcp.pop %v982
    %v984 = vmul.f32 %v982, %v983
    %v985 = vsub.f32 1.0, %v984
    %v986 = vmul.f32 %v983, %v985
    %v987 = vadd.f32 %v983, %v986
    %vm988 = vweird.f32 %v982
    %vm989 = vweird.f32 %v983
    %vm990 = vmor %vm988, %vm989
    %v991 = vsel %vm990, %v983, %v987
    %v992 = vand.u32 2147483647, %v982
    %vm993 = vcmp.eq.f32.partialorder %v992, 8.507059e+37
    %v994 = vand.u32 %v982, 2147483648
    %v995 = vor.u32 1.1754944e-38, %v994
    %v996 = vsel %vm993, %v995, %v991
    %v997 = vmul.f32 1.0, %v996
    %v998 = vadd.f32 %v926, %v976
    %v999 = vxor.u32 %v998, 2147483648
    %v1000 = vmul.f32 %v999, 1.442695
    %v1001 = vpow.pop %v1000
    %v1002 = vadd.f32 %v1001, 1.0
    %v1003 = vrcp.pop %v1002
    %v1004 = vmul.f32 %v1002, %v1003
    %v1005 = vsub.f32 1.0, %v1004
    %v1006 = vmul.f32 %v1003, %v1005
    %v1007 = vadd.f32 %v1003, %v1006
    %vm1008 = vweird.f32 %v1002
    %vm1009 = vweird.f32 %v1003
    %vm1010 = vmor %vm1008, %vm1009
    %v1011 = vsel %vm1010, %v1003, %v1007
    %v1012 = vand.u32 2147483647, %v1002
    %vm1013 = vcmp.eq.f32.partialorder %v1012, 8.507059e+37
    %v1014 = vand.u32 %v1002, 2147483648
    %v1015 = vor.u32 1.1754944e-38, %v1014
    %v1016 = vsel %vm1013, %v1015, %v1011
    %v1017 = vmul.f32 1.0, %v1016
    %1018 = vmatpush.msra.mxu0 0.0
    %1019 = vmatpush.msra.mxu0 0.0
    %1020 = vmatpush.msra.mxu0 0.0
    %1021 = vmatpush.msra.mxu0 0.0
    %1022 = vmatpush.msra.mxu0 0.0
    %1023 = vmatpush.msra.mxu0 0.0
    %1024 = vmatpush.msra.mxu0 0.0
    %1025 = vmatpush.msra.mxu0 0.0
    %1026 = vmatpush.msra.mxu0 0.0
    %1027 = vmatpush.msra.mxu0 0.0
    %1028 = vmatpush.msra.mxu0 0.0
    %1029 = vmatpush.msra.mxu0 0.0
    %1030 = vmatpush.msra.mxu0 %v86
    %1031 = vmatpush.msra.mxu0 %v85
    %1032 = vmatpush.msra.mxu0 %v84
    %1033 = vmatpush.msra.mxu0 %v83
    %1034 = vmatmul.f32.gmra.mxu0 %v936
    %v1035 = vpop.f32.mrf.mxu0
    %v1036 = vadd.f32 %v89, %v1035
    %1037 = vdwg.mxu0
    %v1038 = vmul.f32 %v997, %v1036
    %v1039 = vadd.f32 %v934, %v1038
    %v1040 = vtanh.pop %v1039
    %v1041 = vsub.f32 1.0, %v1017
    %v1042 = vmul.f32 %v1041, %v1040
    %v1043 = vmul.f32 %v1017, %v908
    %v1044 = vadd.f32 %v1042, %v1043
    %s1045 = sld [smem:[#allocation2 + $0xe]]
    %s1046 = scalar_lea.vmem %s2, %s1045
    %v1047 = vld [vmem:[%s1046] sm:$0x1]
    %s1048 = sld [smem:[#allocation2 + $0xf]]
    %s1049 = scalar_lea.vmem %s2, %s1048
    %v1050 = vld [vmem:[%s1049] sm:$0x1]
    %v1052 = vrot.slane %v1050, 7
    %v1054 = vsel %vm100, %v1047, %v1052
    %s1055 = scalar_lea.vmem %s3, %s1045
    %v1056 = vld [vmem:[%s1055] sm:$0x1]
    %s1057 = scalar_lea.vmem %s3, %s1048
    %v1058 = vld [vmem:[%s1057] sm:$0x1]
    %v1060 = vrot.slane %v1058, 7
    %v1062 = vsel %vm100, %v1056, %v1060
    %s1063 = scalar_lea.vmem %s4, %s1045
    %v1064 = vld [vmem:[%s1063] sm:$0x1]
    %s1065 = scalar_lea.vmem %s4, %s1048
    %v1066 = vld [vmem:[%s1065] sm:$0x1]
    %v1068 = vrot.slane %v1066, 7
    %v1070 = vsel %vm100, %v1064, %v1068
    %v1072 = vsel %vm118, %v1044, 0
    %1074 = vmatpush.msra.mxu0 0.0
    %1075 = vmatpush.msra.mxu0 0.0
    %1076 = vmatpush.msra.mxu0 0.0
    %1077 = vmatpush.msra.mxu0 0.0
    %1078 = vmatpush.msra.mxu0 0.0
    %1079 = vmatpush.msra.mxu0 0.0
    %1080 = vmatpush.msra.mxu0 0.0
    %1081 = vmatpush.msra.mxu0 0.0
    %1082 = vmatpush.msra.mxu0 0.0
    %1083 = vmatpush.msra.mxu0 0.0
    %1084 = vmatpush.msra.mxu0 0.0
    %1085 = vmatpush.msra.mxu0 0.0
    %1086 = vmatpush.msra.mxu0 %v76
    %1087 = vmatpush.msra.mxu0 %v75
    %1088 = vmatpush.msra.mxu0 %v74
    %1089 = vmatpush.msra.mxu0 %v73
    %1090 = vmatmul.f32.gmra.mxu0 %v1072
    %v1091 = vpop.f32.mrf.mxu0
    %v1092 = vadd.f32 0.0, %v1091
    %1093 = vdwg.mxu0
    %1094 = vmatpush.msra.mxu0 0.0
    %1095 = vmatpush.msra.mxu0 0.0
    %1096 = vmatpush.msra.mxu0 0.0
    %1097 = vmatpush.msra.mxu0 0.0
    %1098 = vmatpush.msra.mxu0 0.0
    %1099 = vmatpush.msra.mxu0 0.0
    %1100 = vmatpush.msra.mxu0 0.0
    %1101 = vmatpush.msra.mxu0 0.0
    %1102 = vmatpush.msra.mxu0 0.0
    %1103 = vmatpush.msra.mxu0 0.0
    %1104 = vmatpush.msra.mxu0 0.0
    %1105 = vmatpush.msra.mxu0 0.0
    %1106 = vmatpush.msra.mxu0 %v81
    %1107 = vmatpush.msra.mxu0 %v80
    %1108 = vmatpush.msra.mxu0 %v79
    %1109 = vmatpush.msra.mxu0 %v78
    %1110 = vmatmul.f32.gmra.mxu0 %v1072
    %v1111 = vpop.f32.mrf.mxu0
    %v1112 = vadd.f32 0.0, %v1111
    %1113 = vdwg.mxu0
    %v1114 = vadd.f32 %v1054, %v1092
    %v1115 = vxor.u32 %v1114, 2147483648
    %v1116 = vmul.f32 %v1115, 1.442695
    %v1117 = vpow.pop %v1116
    %v1118 = vadd.f32 %v1117, 1.0
    %v1119 = vrcp.pop %v1118
    %v1120 = vmul.f32 %v1118, %v1119
    %v1121 = vsub.f32 1.0, %v1120
    %v1122 = vmul.f32 %v1119, %v1121
    %v1123 = vadd.f32 %v1119, %v1122
    %vm1124 = vweird.f32 %v1118
    %vm1125 = vweird.f32 %v1119
    %vm1126 = vmor %vm1124, %vm1125
    %v1127 = vsel %vm1126, %v1119, %v1123
    %v1128 = vand.u32 2147483647, %v1118
    %vm1129 = vcmp.eq.f32.partialorder %v1128, 8.507059e+37
    %v1130 = vand.u32 %v1118, 2147483648
    %v1131 = vor.u32 1.1754944e-38, %v1130
    %v1132 = vsel %vm1129, %v1131, %v1127
    %v1133 = vmul.f32 1.0, %v1132
    %v1134 = vadd.f32 %v1062, %v1112
    %v1135 = vxor.u32 %v1134, 2147483648
    %v1136 = vmul.f32 %v1135, 1.442695
    %v1137 = vpow.pop %v1136
    %v1138 = vadd.f32 %v1137, 1.0
    %v1139 = vrcp.pop %v1138
    %v1140 = vmul.f32 %v1138, %v1139
    %v1141 = vsub.f32 1.0, %v1140
    %v1142 = vmul.f32 %v1139, %v1141
    %v1143 = vadd.f32 %v1139, %v1142
    %vm1144 = vweird.f32 %v1138
    %vm1145 = vweird.f32 %v1139
    %vm1146 = vmor %vm1144, %vm1145
    %v1147 = vsel %vm1146, %v1139, %v1143
    %v1148 = vand.u32 2147483647, %v1138
    %vm1149 = vcmp.eq.f32.partialorder %v1148, 8.507059e+37
    %v1150 = vand.u32 %v1138, 2147483648
    %v1151 = vor.u32 1.1754944e-38, %v1150
    %v1152 = vsel %vm1149, %v1151, %v1147
    %v1153 = vmul.f32 1.0, %v1152
    %1154 = vmatpush.msra.mxu0 0.0
    %1155 = vmatpush.msra.mxu0 0.0
    %1156 = vmatpush.msra.mxu0 0.0
    %1157 = vmatpush.msra.mxu0 0.0
    %1158 = vmatpush.msra.mxu0 0.0
    %1159 = vmatpush.msra.mxu0 0.0
    %1160 = vmatpush.msra.mxu0 0.0
    %1161 = vmatpush.msra.mxu0 0.0
    %1162 = vmatpush.msra.mxu0 0.0
    %1163 = vmatpush.msra.mxu0 0.0
    %1164 = vmatpush.msra.mxu0 0.0
    %1165 = vmatpush.msra.mxu0 0.0
    %1166 = vmatpush.msra.mxu0 %v86
    %1167 = vmatpush.msra.mxu0 %v85
    %1168 = vmatpush.msra.mxu0 %v84
    %1169 = vmatpush.msra.mxu0 %v83
    %1170 = vmatmul.f32.gmra.mxu0 %v1072
    %v1171 = vpop.f32.mrf.mxu0
    %v1172 = vadd.f32 %v89, %v1171
    %1173 = vdwg.mxu0
    %v1174 = vmul.f32 %v1133, %v1172
    %v1175 = vadd.f32 %v1070, %v1174
    %v1176 = vtanh.pop %v1175
    %v1177 = vsub.f32 1.0, %v1153
    %v1178 = vmul.f32 %v1177, %v1176
    %v1179 = vmul.f32 %v1153, %v1044
    %v1180 = vadd.f32 %v1178, %v1179
    %s1181 = sld [smem:[#allocation2 + $0x10]]
    %s1182 = scalar_lea.vmem %s2, %s1181
    %v1183 = vld [vmem:[%s1182] sm:$0x1]
    %s1184 = sld [smem:[#allocation2 + $0x11]]
    %s1185 = scalar_lea.vmem %s2, %s1184
    %v1186 = vld [vmem:[%s1185] sm:$0x1]
    %v1188 = vrot.slane %v1186, 7
    %v1190 = vsel %vm100, %v1183, %v1188
    %s1191 = scalar_lea.vmem %s3, %s1181
    %v1192 = vld [vmem:[%s1191] sm:$0x1]
    %s1193 = scalar_lea.vmem %s3, %s1184
    %v1194 = vld [vmem:[%s1193] sm:$0x1]
    %v1196 = vrot.slane %v1194, 7
    %v1198 = vsel %vm100, %v1192, %v1196
    %s1199 = scalar_lea.vmem %s4, %s1181
    %v1200 = vld [vmem:[%s1199] sm:$0x1]
    %s1201 = scalar_lea.vmem %s4, %s1184
    %v1202 = vld [vmem:[%s1201] sm:$0x1]
    %v1204 = vrot.slane %v1202, 7
    %v1206 = vsel %vm100, %v1200, %v1204
    %v1208 = vsel %vm118, %v1180, 0
    %1210 = vmatpush.msra.mxu0 0.0
    %1211 = vmatpush.msra.mxu0 0.0
    %1212 = vmatpush.msra.mxu0 0.0
    %1213 = vmatpush.msra.mxu0 0.0
    %1214 = vmatpush.msra.mxu0 0.0
    %1215 = vmatpush.msra.mxu0 0.0
    %1216 = vmatpush.msra.mxu0 0.0
    %1217 = vmatpush.msra.mxu0 0.0
    %1218 = vmatpush.msra.mxu0 0.0
    %1219 = vmatpush.msra.mxu0 0.0
    %1220 = vmatpush.msra.mxu0 0.0
    %1221 = vmatpush.msra.mxu0 0.0
    %1222 = vmatpush.msra.mxu0 %v76
    %1223 = vmatpush.msra.mxu0 %v75
    %1224 = vmatpush.msra.mxu0 %v74
    %1225 = vmatpush.msra.mxu0 %v73
    %1226 = vmatmul.f32.gmra.mxu0 %v1208
    %v1227 = vpop.f32.mrf.mxu0
    %v1228 = vadd.f32 0.0, %v1227
    %1229 = vdwg.mxu0
    %1230 = vmatpush.msra.mxu0 0.0
    %1231 = vmatpush.msra.mxu0 0.0
    %1232 = vmatpush.msra.mxu0 0.0
    %1233 = vmatpush.msra.mxu0 0.0
    %1234 = vmatpush.msra.mxu0 0.0
    %1235 = vmatpush.msra.mxu0 0.0
    %1236 = vmatpush.msra.mxu0 0.0
    %1237 = vmatpush.msra.mxu0 0.0
    %1238 = vmatpush.msra.mxu0 0.0
    %1239 = vmatpush.msra.mxu0 0.0
    %1240 = vmatpush.msra.mxu0 0.0
    %1241 = vmatpush.msra.mxu0 0.0
    %1242 = vmatpush.msra.mxu0 %v81
    %1243 = vmatpush.msra.mxu0 %v80
    %1244 = vmatpush.msra.mxu0 %v79
    %1245 = vmatpush.msra.mxu0 %v78
    %1246 = vmatmul.f32.gmra.mxu0 %v1208
    %v1247 = vpop.f32.mrf.mxu0
    %v1248 = vadd.f32 0.0, %v1247
    %1249 = vdwg.mxu0
    %v1250 = vadd.f32 %v1190, %v1228
    %v1251 = vxor.u32 %v1250, 2147483648
    %v1252 = vmul.f32 %v1251, 1.442695
    %v1253 = vpow.pop %v1252
    %v1254 = vadd.f32 %v1253, 1.0
    %v1255 = vrcp.pop %v1254
    %v1256 = vmul.f32 %v1254, %v1255
    %v1257 = vsub.f32 1.0, %v1256
    %v1258 = vmul.f32 %v1255, %v1257
    %v1259 = vadd.f32 %v1255, %v1258
    %vm1260 = vweird.f32 %v1254
    %vm1261 = vweird.f32 %v1255
    %vm1262 = vmor %vm1260, %vm1261
    %v1263 = vsel %vm1262, %v1255, %v1259
    %v1264 = vand.u32 2147483647, %v1254
    %vm1265 = vcmp.eq.f32.partialorder %v1264, 8.507059e+37
    %v1266 = vand.u32 %v1254, 2147483648
    %v1267 = vor.u32 1.1754944e-38, %v1266
    %v1268 = vsel %vm1265, %v1267, %v1263
    %v1269 = vmul.f32 1.0, %v1268
    %v1270 = vadd.f32 %v1198, %v1248
    %v1271 = vxor.u32 %v1270, 2147483648
    %v1272 = vmul.f32 %v1271, 1.442695
    %v1273 = vpow.pop %v1272
    %v1274 = vadd.f32 %v1273, 1.0
    %v1275 = vrcp.pop %v1274
    %v1276 = vmul.f32 %v1274, %v1275
    %v1277 = vsub.f32 1.0, %v1276
    %v1278 = vmul.f32 %v1275, %v1277
    %v1279 = vadd.f32 %v1275, %v1278
    %vm1280 = vweird.f32 %v1274
    %vm1281 = vweird.f32 %v1275
    %vm1282 = vmor %vm1280, %vm1281
    %v1283 = vsel %vm1282, %v1275, %v1279
    %v1284 = vand.u32 2147483647, %v1274
    %vm1285 = vcmp.eq.f32.partialorder %v1284, 8.507059e+37
    %v1286 = vand.u32 %v1274, 2147483648
    %v1287 = vor.u32 1.1754944e-38, %v1286
    %v1288 = vsel %vm1285, %v1287, %v1283
    %v1289 = vmul.f32 1.0, %v1288
    %1290 = vmatpush.msra.mxu0 0.0
    %1291 = vmatpush.msra.mxu0 0.0
    %1292 = vmatpush.msra.mxu0 0.0
    %1293 = vmatpush.msra.mxu0 0.0
    %1294 = vmatpush.msra.mxu0 0.0
    %1295 = vmatpush.msra.mxu0 0.0
    %1296 = vmatpush.msra.mxu0 0.0
    %1297 = vmatpush.msra.mxu0 0.0
    %1298 = vmatpush.msra.mxu0 0.0
    %1299 = vmatpush.msra.mxu0 0.0
    %1300 = vmatpush.msra.mxu0 0.0
    %1301 = vmatpush.msra.mxu0 0.0
    %1302 = vmatpush.msra.mxu0 %v86
    %1303 = vmatpush.msra.mxu0 %v85
    %1304 = vmatpush.msra.mxu0 %v84
    %1305 = vmatpush.msra.mxu0 %v83
    %1306 = vmatmul.f32.gmra.mxu0 %v1208
    %v1307 = vpop.f32.mrf.mxu0
    %v1308 = vadd.f32 %v89, %v1307
    %1309 = vdwg.mxu0
    %v1310 = vmul.f32 %v1269, %v1308
    %v1311 = vadd.f32 %v1206, %v1310
    %v1312 = vtanh.pop %v1311
    %v1313 = vsub.f32 1.0, %v1289
    %v1314 = vmul.f32 %v1313, %v1312
    %v1315 = vmul.f32 %v1289, %v1180
    %v1316 = vadd.f32 %v1314, %v1315
    %s1317 = sld [smem:[#allocation2 + $0x12]]
    %s1318 = scalar_lea.vmem %s2, %s1317
    %v1319 = vld [vmem:[%s1318] sm:$0x1]
    %s1320 = sld [smem:[#allocation2 + $0x13]]
    %s1321 = scalar_lea.vmem %s2, %s1320
    %v1322 = vld [vmem:[%s1321] sm:$0x1]
    %v1324 = vrot.slane %v1322, 7
    %v1326 = vsel %vm100, %v1319, %v1324
    %s1327 = scalar_lea.vmem %s3, %s1317
    %v1328 = vld [vmem:[%s1327] sm:$0x1]
    %s1329 = scalar_lea.vmem %s3, %s1320
    %v1330 = vld [vmem:[%s1329] sm:$0x1]
    %v1332 = vrot.slane %v1330, 7
    %v1334 = vsel %vm100, %v1328, %v1332
    %s1335 = scalar_lea.vmem %s4, %s1317
    %v1336 = vld [vmem:[%s1335] sm:$0x1]
    %s1337 = scalar_lea.vmem %s4, %s1320
    %v1338 = vld [vmem:[%s1337] sm:$0x1]
    %v1340 = vrot.slane %v1338, 7
    %v1342 = vsel %vm100, %v1336, %v1340
    %v1344 = vsel %vm118, %v1316, 0
    %1346 = vmatpush.msra.mxu0 0.0
    %1347 = vmatpush.msra.mxu0 0.0
    %1348 = vmatpush.msra.mxu0 0.0
    %1349 = vmatpush.msra.mxu0 0.0
    %1350 = vmatpush.msra.mxu0 0.0
    %1351 = vmatpush.msra.mxu0 0.0
    %1352 = vmatpush.msra.mxu0 0.0
    %1353 = vmatpush.msra.mxu0 0.0
    %1354 = vmatpush.msra.mxu0 0.0
    %1355 = vmatpush.msra.mxu0 0.0
    %1356 = vmatpush.msra.mxu0 0.0
    %1357 = vmatpush.msra.mxu0 0.0
    %1358 = vmatpush.msra.mxu0 %v76
    %1359 = vmatpush.msra.mxu0 %v75
    %1360 = vmatpush.msra.mxu0 %v74
    %1361 = vmatpush.msra.mxu0 %v73
    %1362 = vmatmul.f32.gmra.mxu0 %v1344
    %v1363 = vpop.f32.mrf.mxu0
    %v1364 = vadd.f32 0.0, %v1363
    %1365 = vdwg.mxu0
    %1366 = vmatpush.msra.mxu0 0.0
    %1367 = vmatpush.msra.mxu0 0.0
    %1368 = vmatpush.msra.mxu0 0.0
    %1369 = vmatpush.msra.mxu0 0.0
    %1370 = vmatpush.msra.mxu0 0.0
    %1371 = vmatpush.msra.mxu0 0.0
    %1372 = vmatpush.msra.mxu0 0.0
    %1373 = vmatpush.msra.mxu0 0.0
    %1374 = vmatpush.msra.mxu0 0.0
    %1375 = vmatpush.msra.mxu0 0.0
    %1376 = vmatpush.msra.mxu0 0.0
    %1377 = vmatpush.msra.mxu0 0.0
    %1378 = vmatpush.msra.mxu0 %v81
    %1379 = vmatpush.msra.mxu0 %v80
    %1380 = vmatpush.msra.mxu0 %v79
    %1381 = vmatpush.msra.mxu0 %v78
    %1382 = vmatmul.f32.gmra.mxu0 %v1344
    %v1383 = vpop.f32.mrf.mxu0
    %v1384 = vadd.f32 0.0, %v1383
    %1385 = vdwg.mxu0
    %v1386 = vadd.f32 %v1326, %v1364
    %v1387 = vxor.u32 %v1386, 2147483648
    %v1388 = vmul.f32 %v1387, 1.442695
    %v1389 = vpow.pop %v1388
    %v1390 = vadd.f32 %v1389, 1.0
    %v1391 = vrcp.pop %v1390
    %v1392 = vmul.f32 %v1390, %v1391
    %v1393 = vsub.f32 1.0, %v1392
    %v1394 = vmul.f32 %v1391, %v1393
    %v1395 = vadd.f32 %v1391, %v1394
    %vm1396 = vweird.f32 %v1390
    %vm1397 = vweird.f32 %v1391
    %vm1398 = vmor %vm1396, %vm1397
    %v1399 = vsel %vm1398, %v1391, %v1395
    %v1400 = vand.u32 2147483647, %v1390
    %vm1401 = vcmp.eq.f32.partialorder %v1400, 8.507059e+37
    %v1402 = vand.u32 %v1390, 2147483648
    %v1403 = vor.u32 1.1754944e-38, %v1402
    %v1404 = vsel %vm1401, %v1403, %v1399
    %v1405 = vmul.f32 1.0, %v1404
    %v1406 = vadd.f32 %v1334, %v1384
    %v1407 = vxor.u32 %v1406, 2147483648
    %v1408 = vmul.f32 %v1407, 1.442695
    %v1409 = vpow.pop %v1408
    %v1410 = vadd.f32 %v1409, 1.0
    %v1411 = vrcp.pop %v1410
    %v1412 = vmul.f32 %v1410, %v1411
    %v1413 = vsub.f32 1.0, %v1412
    %v1414 = vmul.f32 %v1411, %v1413
    %v1415 = vadd.f32 %v1411, %v1414
    %vm1416 = vweird.f32 %v1410
    %vm1417 = vweird.f32 %v1411
    %vm1418 = vmor %vm1416, %vm1417
    %v1419 = vsel %vm1418, %v1411, %v1415
    %v1420 = vand.u32 2147483647, %v1410
    %vm1421 = vcmp.eq.f32.partialorder %v1420, 8.507059e+37
    %v1422 = vand.u32 %v1410, 2147483648
    %v1423 = vor.u32 1.1754944e-38, %v1422
    %v1424 = vsel %vm1421, %v1423, %v1419
    %v1425 = vmul.f32 1.0, %v1424
    %1426 = vmatpush.msra.mxu0 0.0
    %1427 = vmatpush.msra.mxu0 0.0
    %1428 = vmatpush.msra.mxu0 0.0
    %1429 = vmatpush.msra.mxu0 0.0
    %1430 = vmatpush.msra.mxu0 0.0
    %1431 = vmatpush.msra.mxu0 0.0
    %1432 = vmatpush.msra.mxu0 0.0
    %1433 = vmatpush.msra.mxu0 0.0
    %1434 = vmatpush.msra.mxu0 0.0
    %1435 = vmatpush.msra.mxu0 0.0
    %1436 = vmatpush.msra.mxu0 0.0
    %1437 = vmatpush.msra.mxu0 0.0
    %1438 = vmatpush.msra.mxu0 %v86
    %1439 = vmatpush.msra.mxu0 %v85
    %1440 = vmatpush.msra.mxu0 %v84
    %1441 = vmatpush.msra.mxu0 %v83
    %1442 = vmatmul.f32.gmra.mxu0 %v1344
    %v1443 = vpop.f32.mrf.mxu0
    %v1444 = vadd.f32 %v89, %v1443
    %1445 = vdwg.mxu0
    %v1446 = vmul.f32 %v1405, %v1444
    %v1447 = vadd.f32 %v1342, %v1446
    %v1448 = vtanh.pop %v1447
    %v1449 = vsub.f32 1.0, %v1425
    %v1450 = vmul.f32 %v1449, %v1448
    %v1451 = vmul.f32 %v1425, %v1316
    %v1452 = vadd.f32 %v1450, %v1451
    %v1453 = vld [vmem:[%s10] sm:$0xff]
    %v1454 = vld [vmem:[%s10 + $0x8] sm:$0xff]
    %v1455 = vld [vmem:[%s10 + $0x10] sm:$0xff]
    %v1456 = vld [vmem:[%s10 + $0x18] sm:$0xff]
    %s1457 = scalar_lea.vmem %s10, 32
    %v1458 = vld [vmem:[%s1457] sm:$0xff]
    %v1459 = vld [vmem:[%s1457 + $0x8] sm:$0xff]
    %v1460 = vld [vmem:[%s1457 + $0x10] sm:$0xff]
    %v1461 = vld [vmem:[%s1457 + $0x18] sm:$0xff]
    %s1462 = scalar_lea.vmem %s10, 64
    %v1463 = vld [vmem:[%s1462] sm:$0xff]
    %v1464 = vld [vmem:[%s1462 + $0x8] sm:$0xff]
    %v1465 = vld [vmem:[%s1462 + $0x10] sm:$0xff]
    %v1466 = vld [vmem:[%s1462 + $0x18] sm:$0xff]
    %v1467 = vld [vmem:[%s11] sm:$0x1]
    %v1469 = vperm.slane %v1467, 0
    %s1471 = sld [smem:[#allocation5]]
    %s1472 = scalar_lea.vmem %s7, %s1471
    %v1473 = vld [vmem:[%s1472] sm:$0x1]
    %s1474 = sld [smem:[#allocation5 + $0x1]]
    %s1475 = scalar_lea.vmem %s7, %s1474
    %v1476 = vld [vmem:[%s1475] sm:$0x1]
    %v1478 = vrot.slane %v1476, 7
    %v1480 = vsel %vm100, %v1473, %v1478
    %s1481 = scalar_lea.vmem %s8, %s1471
    %v1482 = vld [vmem:[%s1481] sm:$0x1]
    %s1483 = scalar_lea.vmem %s8, %s1474
    %v1484 = vld [vmem:[%s1483] sm:$0x1]
    %v1486 = vrot.slane %v1484, 7
    %v1488 = vsel %vm100, %v1482, %v1486
    %s1489 = scalar_lea.vmem %s9, %s1471
    %v1490 = vld [vmem:[%s1489] sm:$0x1]
    %s1491 = scalar_lea.vmem %s9, %s1474
    %v1492 = vld [vmem:[%s1491] sm:$0x1]
    %v1494 = vrot.slane %v1492, 7
    %v1496 = vsel %vm100, %v1490, %v1494
    %v1498 = vsel %vm118, %v1452, 0
    %1500 = vmatpush.msra.mxu0 0.0
    %1501 = vmatpush.msra.mxu0 0.0
    %1502 = vmatpush.msra.mxu0 0.0
    %1503 = vmatpush.msra.mxu0 0.0
    %1504 = vmatpush.msra.mxu0 0.0
    %1505 = vmatpush.msra.mxu0 0.0
    %1506 = vmatpush.msra.mxu0 0.0
    %1507 = vmatpush.msra.mxu0 0.0
    %1508 = vmatpush.msra.mxu0 0.0
    %1509 = vmatpush.msra.mxu0 0.0
    %1510 = vmatpush.msra.mxu0 0.0
    %1511 = vmatpush.msra.mxu0 0.0
    %1512 = vmatpush.msra.mxu0 %v1456
    %1513 = vmatpush.msra.mxu0 %v1455
    %1514 = vmatpush.msra.mxu0 %v1454
    %1515 = vmatpush.msra.mxu0 %v1453
    %1516 = vmatmul.f32.gmra.mxu0 %v1498
    %v1517 = vpop.f32.mrf.mxu0
    %v1518 = vadd.f32 0.0, %v1517
    %1519 = vdwg.mxu0
    %1520 = vmatpush.msra.mxu0 0.0
    %1521 = vmatpush.msra.mxu0 0.0
    %1522 = vmatpush.msra.mxu0 0.0
    %1523 = vmatpush.msra.mxu0 0.0
    %1524 = vmatpush.msra.mxu0 0.0
    %1525 = vmatpush.msra.mxu0 0.0
    %1526 = vmatpush.msra.mxu0 0.0
    %1527 = vmatpush.msra.mxu0 0.0
    %1528 = vmatpush.msra.mxu0 0.0
    %1529 = vmatpush.msra.mxu0 0.0
    %1530 = vmatpush.msra.mxu0 0.0
    %1531 = vmatpush.msra.mxu0 0.0
    %1532 = vmatpush.msra.mxu0 %v1461
    %1533 = vmatpush.msra.mxu0 %v1460
    %1534 = vmatpush.msra.mxu0 %v1459
    %1535 = vmatpush.msra.mxu0 %v1458
    %1536 = vmatmul.f32.gmra.mxu0 %v1498
    %v1537 = vpop.f32.mrf.mxu0
    %v1538 = vadd.f32 0.0, %v1537
    %1539 = vdwg.mxu0
    %v1540 = vadd.f32 %v1480, %v1518
    %v1541 = vxor.u32 %v1540, 2147483648
    %v1542 = vmul.f32 %v1541, 1.442695
    %v1543 = vpow.pop %v1542
    %v1544 = vadd.f32 %v1543, 1.0
    %v1545 = vrcp.pop %v1544
    %v1546 = vmul.f32 %v1544, %v1545
    %v1547 = vsub.f32 1.0, %v1546
    %v1548 = vmul.f32 %v1545, %v1547
    %v1549 = vadd.f32 %v1545, %v1548
    %vm1550 = vweird.f32 %v1544
    %vm1551 = vweird.f32 %v1545
    %vm1552 = vmor %vm1550, %vm1551
    %v1553 = vsel %vm1552, %v1545, %v1549
    %v1554 = vand.u32 2147483647, %v1544
    %vm1555 = vcmp.eq.f32.partialorder %v1554, 8.507059e+37
    %v1556 = vand.u32 %v1544, 2147483648
    %v1557 = vor.u32 1.1754944e-38, %v1556
    %v1558 = vsel %vm1555, %v1557, %v1553
    %v1559 = vmul.f32 1.0, %v1558
    %v1560 = vadd.f32 %v1488, %v1538
    %v1561 = vxor.u32 %v1560, 2147483648
    %v1562 = vmul.f32 %v1561, 1.442695
    %v1563 = vpow.pop %v1562
    %v1564 = vadd.f32 %v1563, 1.0
    %v1565 = vrcp.pop %v1564
    %v1566 = vmul.f32 %v1564, %v1565
    %v1567 = vsub.f32 1.0, %v1566
    %v1568 = vmul.f32 %v1565, %v1567
    %v1569 = vadd.f32 %v1565, %v1568
    %vm1570 = vweird.f32 %v1564
    %vm1571 = vweird.f32 %v1565
    %vm1572 = vmor %vm1570, %vm1571
    %v1573 = vsel %vm1572, %v1565, %v1569
    %v1574 = vand.u32 2147483647, %v1564
    %vm1575 = vcmp.eq.f32.partialorder %v1574, 8.507059e+37
    %v1576 = vand.u32 %v1564, 2147483648
    %v1577 = vor.u32 1.1754944e-38, %v1576
    %v1578 = vsel %vm1575, %v1577, %v1573
    %v1579 = vmul.f32 1.0, %v1578
    %1580 = vmatpush.msra.mxu0 0.0
    %1581 = vmatpush.msra.mxu0 0.0
    %1582 = vmatpush.msra.mxu0 0.0
    %1583 = vmatpush.msra.mxu0 0.0
    %1584 = vmatpush.msra.mxu0 0.0
    %1585 = vmatpush.msra.mxu0 0.0
    %1586 = vmatpush.msra.mxu0 0.0
    %1587 = vmatpush.msra.mxu0 0.0
    %1588 = vmatpush.msra.mxu0 0.0
    %1589 = vmatpush.msra.mxu0 0.0
    %1590 = vmatpush.msra.mxu0 0.0
    %1591 = vmatpush.msra.mxu0 0.0
    %1592 = vmatpush.msra.mxu0 %v1466
    %1593 = vmatpush.msra.mxu0 %v1465
    %1594 = vmatpush.msra.mxu0 %v1464
    %1595 = vmatpush.msra.mxu0 %v1463
    %1596 = vmatmul.f32.gmra.mxu0 %v1498
    %v1597 = vpop.f32.mrf.mxu0
    %v1598 = vadd.f32 %v1469, %v1597
    %1599 = vdwg.mxu0
    %v1600 = vmul.f32 %v1559, %v1598
    %v1601 = vadd.f32 %v1496, %v1600
    %v1602 = vtanh.pop %v1601
    %v1603 = vsub.f32 1.0, %v1579
    %v1604 = vmul.f32 %v1603, %v1602
    %v1605 = vmul.f32 %v1579, %v1452
    %v1606 = vadd.f32 %v1604, %v1605
    %s1607 = sld [smem:[#allocation5 + $0x2]]
    %s1608 = scalar_lea.vmem %s7, %s1607
    %v1609 = vld [vmem:[%s1608] sm:$0x1]
    %s1610 = sld [smem:[#allocation5 + $0x3]]
    %s1611 = scalar_lea.vmem %s7, %s1610
    %v1612 = vld [vmem:[%s1611] sm:$0x1]
    %v1614 = vrot.slane %v1612, 7
    %v1616 = vsel %vm100, %v1609, %v1614
    %s1617 = scalar_lea.vmem %s8, %s1607
    %v1618 = vld [vmem:[%s1617] sm:$0x1]
    %s1619 = scalar_lea.vmem %s8, %s1610
    %v1620 = vld [vmem:[%s1619] sm:$0x1]
    %v1622 = vrot.slane %v1620, 7
    %v1624 = vsel %vm100, %v1618, %v1622
    %s1625 = scalar_lea.vmem %s9, %s1607
    %v1626 = vld [vmem:[%s1625] sm:$0x1]
    %s1627 = scalar_lea.vmem %s9, %s1610
    %v1628 = vld [vmem:[%s1627] sm:$0x1]
    %v1630 = vrot.slane %v1628, 7
    %v1632 = vsel %vm100, %v1626, %v1630
    %v1634 = vsel %vm118, %v1606, 0
    %1636 = vmatpush.msra.mxu0 0.0
    %1637 = vmatpush.msra.mxu0 0.0
    %1638 = vmatpush.msra.mxu0 0.0
    %1639 = vmatpush.msra.mxu0 0.0
    %1640 = vmatpush.msra.mxu0 0.0
    %1641 = vmatpush.msra.mxu0 0.0
    %1642 = vmatpush.msra.mxu0 0.0
    %1643 = vmatpush.msra.mxu0 0.0
    %1644 = vmatpush.msra.mxu0 0.0
    %1645 = vmatpush.msra.mxu0 0.0
    %1646 = vmatpush.msra.mxu0 0.0
    %1647 = vmatpush.msra.mxu0 0.0
    %1648 = vmatpush.msra.mxu0 %v1456
    %1649 = vmatpush.msra.mxu0 %v1455
    %1650 = vmatpush.msra.mxu0 %v1454
    %1651 = vmatpush.msra.mxu0 %v1453
    %1652 = vmatmul.f32.gmra.mxu0 %v1634
    %v1653 = vpop.f32.mrf.mxu0
    %v1654 = vadd.f32 0.0, %v1653
    %1655 = vdwg.mxu0
    %1656 = vmatpush.msra.mxu0 0.0
    %1657 = vmatpush.msra.mxu0 0.0
    %1658 = vmatpush.msra.mxu0 0.0
    %1659 = vmatpush.msra.mxu0 0.0
    %1660 = vmatpush.msra.mxu0 0.0
    %1661 = vmatpush.msra.mxu0 0.0
    %1662 = vmatpush.msra.mxu0 0.0
    %1663 = vmatpush.msra.mxu0 0.0
    %1664 = vmatpush.msra.mxu0 0.0
    %1665 = vmatpush.msra.mxu0 0.0
    %1666 = vmatpush.msra.mxu0 0.0
    %1667 = vmatpush.msra.mxu0 0.0
    %1668 = vmatpush.msra.mxu0 %v1461
    %1669 = vmatpush.msra.mxu0 %v1460
    %1670 = vmatpush.msra.mxu0 %v1459
    %1671 = vmatpush.msra.mxu0 %v1458
    %1672 = vmatmul.f32.gmra.mxu0 %v1634
    %v1673 = vpop.f32.mrf.mxu0
    %v1674 = vadd.f32 0.0, %v1673
    %1675 = vdwg.mxu0
    %v1676 = vadd.f32 %v1616, %v1654
    %v1677 = vxor.u32 %v1676, 2147483648
    %v1678 = vmul.f32 %v1677, 1.442695
    %v1679 = vpow.pop %v1678
    %v1680 = vadd.f32 %v1679, 1.0
    %v1681 = vrcp.pop %v1680
    %v1682 = vmul.f32 %v1680, %v1681
    %v1683 = vsub.f32 1.0, %v1682
    %v1684 = vmul.f32 %v1681, %v1683
    %v1685 = vadd.f32 %v1681, %v1684
    %vm1686 = vweird.f32 %v1680
    %vm1687 = vweird.f32 %v1681
    %vm1688 = vmor %vm1686, %vm1687
    %v1689 = vsel %vm1688, %v1681, %v1685
    %v1690 = vand.u32 2147483647, %v1680
    %vm1691 = vcmp.eq.f32.partialorder %v1690, 8.507059e+37
    %v1692 = vand.u32 %v1680, 2147483648
    %v1693 = vor.u32 1.1754944e-38, %v1692
    %v1694 = vsel %vm1691, %v1693, %v1689
    %v1695 = vmul.f32 1.0, %v1694
    %v1696 = vadd.f32 %v1624, %v1674
    %v1697 = vxor.u32 %v1696, 2147483648
    %v1698 = vmul.f32 %v1697, 1.442695
    %v1699 = vpow.pop %v1698
    %v1700 = vadd.f32 %v1699, 1.0
    %v1701 = vrcp.pop %v1700
    %v1702 = vmul.f32 %v1700, %v1701
    %v1703 = vsub.f32 1.0, %v1702
    %v1704 = vmul.f32 %v1701, %v1703
    %v1705 = vadd.f32 %v1701, %v1704
    %vm1706 = vweird.f32 %v1700
    %vm1707 = vweird.f32 %v1701
    %vm1708 = vmor %vm1706, %vm1707
    %v1709 = vsel %vm1708, %v1701, %v1705
    %v1710 = vand.u32 2147483647, %v1700
    %vm1711 = vcmp.eq.f32.partialorder %v1710, 8.507059e+37
    %v1712 = vand.u32 %v1700, 2147483648
    %v1713 = vor.u32 1.1754944e-38, %v1712
    %v1714 = vsel %vm1711, %v1713, %v1709
    %v1715 = vmul.f32 1.0, %v1714
    %1716 = vmatpush.msra.mxu0 0.0
    %1717 = vmatpush.msra.mxu0 0.0
    %1718 = vmatpush.msra.mxu0 0.0
    %1719 = vmatpush.msra.mxu0 0.0
    %1720 = vmatpush.msra.mxu0 0.0
    %1721 = vmatpush.msra.mxu0 0.0
    %1722 = vmatpush.msra.mxu0 0.0
    %1723 = vmatpush.msra.mxu0 0.0
    %1724 = vmatpush.msra.mxu0 0.0
    %1725 = vmatpush.msra.mxu0 0.0
    %1726 = vmatpush.msra.mxu0 0.0
    %1727 = vmatpush.msra.mxu0 0.0
    %1728 = vmatpush.msra.mxu0 %v1466
    %1729 = vmatpush.msra.mxu0 %v1465
    %1730 = vmatpush.msra.mxu0 %v1464
    %1731 = vmatpush.msra.mxu0 %v1463
    %1732 = vmatmul.f32.gmra.mxu0 %v1634
    %v1733 = vpop.f32.mrf.mxu0
    %v1734 = vadd.f32 %v1469, %v1733
    %1735 = vdwg.mxu0
    %v1736 = vmul.f32 %v1695, %v1734
    %v1737 = vadd.f32 %v1632, %v1736
    %v1738 = vtanh.pop %v1737
    %v1739 = vsub.f32 1.0, %v1715
    %v1740 = vmul.f32 %v1739, %v1738
    %v1741 = vmul.f32 %v1715, %v1606
    %v1742 = vadd.f32 %v1740, %v1741
    %s1743 = sld [smem:[#allocation5 + $0x4]]
    %s1744 = scalar_lea.vmem %s7, %s1743
    %v1745 = vld [vmem:[%s1744] sm:$0x1]
    %s1746 = sld [smem:[#allocation5 + $0x5]]
    %s1747 = scalar_lea.vmem %s7, %s1746
    %v1748 = vld [vmem:[%s1747] sm:$0x1]
    %v1750 = vrot.slane %v1748, 7
    %v1752 = vsel %vm100, %v1745, %v1750
    %s1753 = scalar_lea.vmem %s8, %s1743
    %v1754 = vld [vmem:[%s1753] sm:$0x1]
    %s1755 = scalar_lea.vmem %s8, %s1746
    %v1756 = vld [vmem:[%s1755] sm:$0x1]
    %v1758 = vrot.slane %v1756, 7
    %v1760 = vsel %vm100, %v1754, %v1758
    %s1761 = scalar_lea.vmem %s9, %s1743
    %v1762 = vld [vmem:[%s1761] sm:$0x1]
    %s1763 = scalar_lea.vmem %s9, %s1746
    %v1764 = vld [vmem:[%s1763] sm:$0x1]
    %v1766 = vrot.slane %v1764, 7
    %v1768 = vsel %vm100, %v1762, %v1766
    %v1770 = vsel %vm118, %v1742, 0
    %1772 = vmatpush.msra.mxu0 0.0
    %1773 = vmatpush.msra.mxu0 0.0
    %1774 = vmatpush.msra.mxu0 0.0
    %1775 = vmatpush.msra.mxu0 0.0
    %1776 = vmatpush.msra.mxu0 0.0
    %1777 = vmatpush.msra.mxu0 0.0
    %1778 = vmatpush.msra.mxu0 0.0
    %1779 = vmatpush.msra.mxu0 0.0
    %1780 = vmatpush.msra.mxu0 0.0
    %1781 = vmatpush.msra.mxu0 0.0
    %1782 = vmatpush.msra.mxu0 0.0
    %1783 = vmatpush.msra.mxu0 0.0
    %1784 = vmatpush.msra.mxu0 %v1456
    %1785 = vmatpush.msra.mxu0 %v1455
    %1786 = vmatpush.msra.mxu0 %v1454
    %1787 = vmatpush.msra.mxu0 %v1453
    %1788 = vmatmul.f32.gmra.mxu0 %v1770
    %v1789 = vpop.f32.mrf.mxu0
    %v1790 = vadd.f32 0.0, %v1789
    %1791 = vdwg.mxu0
    %1792 = vmatpush.msra.mxu0 0.0
    %1793 = vmatpush.msra.mxu0 0.0
    %1794 = vmatpush.msra.mxu0 0.0
    %1795 = vmatpush.msra.mxu0 0.0
    %1796 = vmatpush.msra.mxu0 0.0
    %1797 = vmatpush.msra.mxu0 0.0
    %1798 = vmatpush.msra.mxu0 0.0
    %1799 = vmatpush.msra.mxu0 0.0
    %1800 = vmatpush.msra.mxu0 0.0
    %1801 = vmatpush.msra.mxu0 0.0
    %1802 = vmatpush.msra.mxu0 0.0
    %1803 = vmatpush.msra.mxu0 0.0
    %1804 = vmatpush.msra.mxu0 %v1461
    %1805 = vmatpush.msra.mxu0 %v1460
    %1806 = vmatpush.msra.mxu0 %v1459
    %1807 = vmatpush.msra.mxu0 %v1458
    %1808 = vmatmul.f32.gmra.mxu0 %v1770
    %v1809 = vpop.f32.mrf.mxu0
    %v1810 = vadd.f32 0.0, %v1809
    %1811 = vdwg.mxu0
    %v1812 = vadd.f32 %v1752, %v1790
    %v1813 = vxor.u32 %v1812, 2147483648
    %v1814 = vmul.f32 %v1813, 1.442695
    %v1815 = vpow.pop %v1814
    %v1816 = vadd.f32 %v1815, 1.0
    %v1817 = vrcp.pop %v1816
    %v1818 = vmul.f32 %v1816, %v1817
    %v1819 = vsub.f32 1.0, %v1818
    %v1820 = vmul.f32 %v1817, %v1819
    %v1821 = vadd.f32 %v1817, %v1820
    %vm1822 = vweird.f32 %v1816
    %vm1823 = vweird.f32 %v1817
    %vm1824 = vmor %vm1822, %vm1823
    %v1825 = vsel %vm1824, %v1817, %v1821
    %v1826 = vand.u32 2147483647, %v1816
    %vm1827 = vcmp.eq.f32.partialorder %v1826, 8.507059e+37
    %v1828 = vand.u32 %v1816, 2147483648
    %v1829 = vor.u32 1.1754944e-38, %v1828
    %v1830 = vsel %vm1827, %v1829, %v1825
    %v1831 = vmul.f32 1.0, %v1830
    %v1832 = vadd.f32 %v1760, %v1810
    %v1833 = vxor.u32 %v1832, 2147483648
    %v1834 = vmul.f32 %v1833, 1.442695
    %v1835 = vpow.pop %v1834
    %v1836 = vadd.f32 %v1835, 1.0
    %v1837 = vrcp.pop %v1836
    %v1838 = vmul.f32 %v1836, %v1837
    %v1839 = vsub.f32 1.0, %v1838
    %v1840 = vmul.f32 %v1837, %v1839
    %v1841 = vadd.f32 %v1837, %v1840
    %vm1842 = vweird.f32 %v1836
    %vm1843 = vweird.f32 %v1837
    %vm1844 = vmor %vm1842, %vm1843
    %v1845 = vsel %vm1844, %v1837, %v1841
    %v1846 = vand.u32 2147483647, %v1836
    %vm1847 = vcmp.eq.f32.partialorder %v1846, 8.507059e+37
    %v1848 = vand.u32 %v1836, 2147483648
    %v1849 = vor.u32 1.1754944e-38, %v1848
    %v1850 = vsel %vm1847, %v1849, %v1845
    %v1851 = vmul.f32 1.0, %v1850
    %1852 = vmatpush.msra.mxu0 0.0
    %1853 = vmatpush.msra.mxu0 0.0
    %1854 = vmatpush.msra.mxu0 0.0
    %1855 = vmatpush.msra.mxu0 0.0
    %1856 = vmatpush.msra.mxu0 0.0
    %1857 = vmatpush.msra.mxu0 0.0
    %1858 = vmatpush.msra.mxu0 0.0
    %1859 = vmatpush.msra.mxu0 0.0
    %1860 = vmatpush.msra.mxu0 0.0
    %1861 = vmatpush.msra.mxu0 0.0
    %1862 = vmatpush.msra.mxu0 0.0
    %1863 = vmatpush.msra.mxu0 0.0
    %1864 = vmatpush.msra.mxu0 %v1466
    %1865 = vmatpush.msra.mxu0 %v1465
    %1866 = vmatpush.msra.mxu0 %v1464
    %1867 = vmatpush.msra.mxu0 %v1463
    %1868 = vmatmul.f32.gmra.mxu0 %v1770
    %v1869 = vpop.f32.mrf.mxu0
    %v1870 = vadd.f32 %v1469, %v1869
    %1871 = vdwg.mxu0
    %v1872 = vmul.f32 %v1831, %v1870
    %v1873 = vadd.f32 %v1768, %v1872
    %v1874 = vtanh.pop %v1873
    %v1875 = vsub.f32 1.0, %v1851
    %v1876 = vmul.f32 %v1875, %v1874
    %v1877 = vmul.f32 %v1851, %v1742
    %v1878 = vadd.f32 %v1876, %v1877
    %s1879 = sld [smem:[#allocation5 + $0x6]]
    %s1880 = scalar_lea.vmem %s7, %s1879
    %v1881 = vld [vmem:[%s1880] sm:$0x1]
    %s1882 = sld [smem:[#allocation5 + $0x7]]
    %s1883 = scalar_lea.vmem %s7, %s1882
    %v1884 = vld [vmem:[%s1883] sm:$0x1]
    %v1886 = vrot.slane %v1884, 7
    %v1888 = vsel %vm100, %v1881, %v1886
    %s1889 = scalar_lea.vmem %s8, %s1879
    %v1890 = vld [vmem:[%s1889] sm:$0x1]
    %s1891 = scalar_lea.vmem %s8, %s1882
    %v1892 = vld [vmem:[%s1891] sm:$0x1]
    %v1894 = vrot.slane %v1892, 7
    %v1896 = vsel %vm100, %v1890, %v1894
    %s1897 = scalar_lea.vmem %s9, %s1879
    %v1898 = vld [vmem:[%s1897] sm:$0x1]
    %s1899 = scalar_lea.vmem %s9, %s1882
    %v1900 = vld [vmem:[%s1899] sm:$0x1]
    %v1902 = vrot.slane %v1900, 7
    %v1904 = vsel %vm100, %v1898, %v1902
    %v1906 = vsel %vm118, %v1878, 0
    %1908 = vmatpush.msra.mxu0 0.0
    %1909 = vmatpush.msra.mxu0 0.0
    %1910 = vmatpush.msra.mxu0 0.0
    %1911 = vmatpush.msra.mxu0 0.0
    %1912 = vmatpush.msra.mxu0 0.0
    %1913 = vmatpush.msra.mxu0 0.0
    %1914 = vmatpush.msra.mxu0 0.0
    %1915 = vmatpush.msra.mxu0 0.0
    %1916 = vmatpush.msra.mxu0 0.0
    %1917 = vmatpush.msra.mxu0 0.0
    %1918 = vmatpush.msra.mxu0 0.0
    %1919 = vmatpush.msra.mxu0 0.0
    %1920 = vmatpush.msra.mxu0 %v1456
    %1921 = vmatpush.msra.mxu0 %v1455
    %1922 = vmatpush.msra.mxu0 %v1454
    %1923 = vmatpush.msra.mxu0 %v1453
    %1924 = vmatmul.f32.gmra.mxu0 %v1906
    %v1925 = vpop.f32.mrf.mxu0
    %v1926 = vadd.f32 0.0, %v1925
    %1927 = vdwg.mxu0
    %1928 = vmatpush.msra.mxu0 0.0
    %1929 = vmatpush.msra.mxu0 0.0
    %1930 = vmatpush.msra.mxu0 0.0
    %1931 = vmatpush.msra.mxu0 0.0
    %1932 = vmatpush.msra.mxu0 0.0
    %1933 = vmatpush.msra.mxu0 0.0
    %1934 = vmatpush.msra.mxu0 0.0
    %1935 = vmatpush.msra.mxu0 0.0
    %1936 = vmatpush.msra.mxu0 0.0
    %1937 = vmatpush.msra.mxu0 0.0
    %1938 = vmatpush.msra.mxu0 0.0
    %1939 = vmatpush.msra.mxu0 0.0
    %1940 = vmatpush.msra.mxu0 %v1461
    %1941 = vmatpush.msra.mxu0 %v1460
    %1942 = vmatpush.msra.mxu0 %v1459
    %1943 = vmatpush.msra.mxu0 %v1458
    %1944 = vmatmul.f32.gmra.mxu0 %v1906
    %v1945 = vpop.f32.mrf.mxu0
    %v1946 = vadd.f32 0.0, %v1945
    %1947 = vdwg.mxu0
    %v1948 = vadd.f32 %v1888, %v1926
    %v1949 = vxor.u32 %v1948, 2147483648
    %v1950 = vmul.f32 %v1949, 1.442695
    %v1951 = vpow.pop %v1950
    %v1952 = vadd.f32 %v1951, 1.0
    %v1953 = vrcp.pop %v1952
    %v1954 = vmul.f32 %v1952, %v1953
    %v1955 = vsub.f32 1.0, %v1954
    %v1956 = vmul.f32 %v1953, %v1955
    %v1957 = vadd.f32 %v1953, %v1956
    %vm1958 = vweird.f32 %v1952
    %vm1959 = vweird.f32 %v1953
    %vm1960 = vmor %vm1958, %vm1959
    %v1961 = vsel %vm1960, %v1953, %v1957
    %v1962 = vand.u32 2147483647, %v1952
    %vm1963 = vcmp.eq.f32.partialorder %v1962, 8.507059e+37
    %v1964 = vand.u32 %v1952, 2147483648
    %v1965 = vor.u32 1.1754944e-38, %v1964
    %v1966 = vsel %vm1963, %v1965, %v1961
    %v1967 = vmul.f32 1.0, %v1966
    %v1968 = vadd.f32 %v1896, %v1946
    %v1969 = vxor.u32 %v1968, 2147483648
    %v1970 = vmul.f32 %v1969, 1.442695
    %v1971 = vpow.pop %v1970
    %v1972 = vadd.f32 %v1971, 1.0
    %v1973 = vrcp.pop %v1972
    %v1974 = vmul.f32 %v1972, %v1973
    %v1975 = vsub.f32 1.0, %v1974
    %v1976 = vmul.f32 %v1973, %v1975
    %v1977 = vadd.f32 %v1973, %v1976
    %vm1978 = vweird.f32 %v1972
    %vm1979 = vweird.f32 %v1973
    %vm1980 = vmor %vm1978, %vm1979
    %v1981 = vsel %vm1980, %v1973, %v1977
    %v1982 = vand.u32 2147483647, %v1972
    %vm1983 = vcmp.eq.f32.partialorder %v1982, 8.507059e+37
    %v1984 = vand.u32 %v1972, 2147483648
    %v1985 = vor.u32 1.1754944e-38, %v1984
    %v1986 = vsel %vm1983, %v1985, %v1981
    %v1987 = vmul.f32 1.0, %v1986
    %1988 = vmatpush.msra.mxu0 0.0
    %1989 = vmatpush.msra.mxu0 0.0
    %1990 = vmatpush.msra.mxu0 0.0
    %1991 = vmatpush.msra.mxu0 0.0
    %1992 = vmatpush.msra.mxu0 0.0
    %1993 = vmatpush.msra.mxu0 0.0
    %1994 = vmatpush.msra.mxu0 0.0
    %1995 = vmatpush.msra.mxu0 0.0
    %1996 = vmatpush.msra.mxu0 0.0
    %1997 = vmatpush.msra.mxu0 0.0
    %1998 = vmatpush.msra.mxu0 0.0
    %1999 = vmatpush.msra.mxu0 0.0
    %2000 = vmatpush.msra.mxu0 %v1466
    %2001 = vmatpush.msra.mxu0 %v1465
    %2002 = vmatpush.msra.mxu0 %v1464
    %2003 = vmatpush.msra.mxu0 %v1463
    %2004 = vmatmul.f32.gmra.mxu0 %v1906
    %v2005 = vpop.f32.mrf.mxu0
    %v2006 = vadd.f32 %v1469, %v2005
    %2007 = vdwg.mxu0
    %v2008 = vmul.f32 %v1967, %v2006
    %v2009 = vadd.f32 %v1904, %v2008
    %v2010 = vtanh.pop %v2009
    %v2011 = vsub.f32 1.0, %v1987
    %v2012 = vmul.f32 %v2011, %v2010
    %v2013 = vmul.f32 %v1987, %v1878
    %v2014 = vadd.f32 %v2012, %v2013
    %s2015 = sld [smem:[#allocation5 + $0x8]]
    %s2016 = scalar_lea.vmem %s7, %s2015
    %v2017 = vld [vmem:[%s2016] sm:$0x1]
    %s2018 = sld [smem:[#allocation5 + $0x9]]
    %s2019 = scalar_lea.vmem %s7, %s2018
    %v2020 = vld [vmem:[%s2019] sm:$0x1]
    %v2022 = vrot.slane %v2020, 7
    %v2024 = vsel %vm100, %v2017, %v2022
    %s2025 = scalar_lea.vmem %s8, %s2015
    %v2026 = vld [vmem:[%s2025] sm:$0x1]
    %s2027 = scalar_lea.vmem %s8, %s2018
    %v2028 = vld [vmem:[%s2027] sm:$0x1]
    %v2030 = vrot.slane %v2028, 7
    %v2032 = vsel %vm100, %v2026, %v2030
    %s2033 = scalar_lea.vmem %s9, %s2015
    %v2034 = vld [vmem:[%s2033] sm:$0x1]
    %s2035 = scalar_lea.vmem %s9, %s2018
    %v2036 = vld [vmem:[%s2035] sm:$0x1]
    %v2038 = vrot.slane %v2036, 7
    %v2040 = vsel %vm100, %v2034, %v2038
    %v2042 = vsel %vm118, %v2014, 0
    %2044 = vmatpush.msra.mxu0 0.0
    %2045 = vmatpush.msra.mxu0 0.0
    %2046 = vmatpush.msra.mxu0 0.0
    %2047 = vmatpush.msra.mxu0 0.0
    %2048 = vmatpush.msra.mxu0 0.0
    %2049 = vmatpush.msra.mxu0 0.0
    %2050 = vmatpush.msra.mxu0 0.0
    %2051 = vmatpush.msra.mxu0 0.0
    %2052 = vmatpush.msra.mxu0 0.0
    %2053 = vmatpush.msra.mxu0 0.0
    %2054 = vmatpush.msra.mxu0 0.0
    %2055 = vmatpush.msra.mxu0 0.0
    %2056 = vmatpush.msra.mxu0 %v1456
    %2057 = vmatpush.msra.mxu0 %v1455
    %2058 = vmatpush.msra.mxu0 %v1454
    %2059 = vmatpush.msra.mxu0 %v1453
    %2060 = vmatmul.f32.gmra.mxu0 %v2042
    %v2061 = vpop.f32.mrf.mxu0
    %v2062 = vadd.f32 0.0, %v2061
    %2063 = vdwg.mxu0
    %2064 = vmatpush.msra.mxu0 0.0
    %2065 = vmatpush.msra.mxu0 0.0
    %2066 = vmatpush.msra.mxu0 0.0
    %2067 = vmatpush.msra.mxu0 0.0
    %2068 = vmatpush.msra.mxu0 0.0
    %2069 = vmatpush.msra.mxu0 0.0
    %2070 = vmatpush.msra.mxu0 0.0
    %2071 = vmatpush.msra.mxu0 0.0
    %2072 = vmatpush.msra.mxu0 0.0
    %2073 = vmatpush.msra.mxu0 0.0
    %2074 = vmatpush.msra.mxu0 0.0
    %2075 = vmatpush.msra.mxu0 0.0
    %2076 = vmatpush.msra.mxu0 %v1461
    %2077 = vmatpush.msra.mxu0 %v1460
    %2078 = vmatpush.msra.mxu0 %v1459
    %2079 = vmatpush.msra.mxu0 %v1458
    %2080 = vmatmul.f32.gmra.mxu0 %v2042
    %v2081 = vpop.f32.mrf.mxu0
    %v2082 = vadd.f32 0.0, %v2081
    %2083 = vdwg.mxu0
    %v2084 = vadd.f32 %v2024, %v2062
    %v2085 = vxor.u32 %v2084, 2147483648
    %v2086 = vmul.f32 %v2085, 1.442695
    %v2087 = vpow.pop %v2086
    %v2088 = vadd.f32 %v2087, 1.0
    %v2089 = vrcp.pop %v2088
    %v2090 = vmul.f32 %v2088, %v2089
    %v2091 = vsub.f32 1.0, %v2090
    %v2092 = vmul.f32 %v2089, %v2091
    %v2093 = vadd.f32 %v2089, %v2092
    %vm2094 = vweird.f32 %v2088
    %vm2095 = vweird.f32 %v2089
    %vm2096 = vmor %vm2094, %vm2095
    %v2097 = vsel %vm2096, %v2089, %v2093
    %v2098 = vand.u32 2147483647, %v2088
    %vm2099 = vcmp.eq.f32.partialorder %v2098, 8.507059e+37
    %v2100 = vand.u32 %v2088, 2147483648
    %v2101 = vor.u32 1.1754944e-38, %v2100
    %v2102 = vsel %vm2099, %v2101, %v2097
    %v2103 = vmul.f32 1.0, %v2102
    %v2104 = vadd.f32 %v2032, %v2082
    %v2105 = vxor.u32 %v2104, 2147483648
    %v2106 = vmul.f32 %v2105, 1.442695
    %v2107 = vpow.pop %v2106
    %v2108 = vadd.f32 %v2107, 1.0
    %v2109 = vrcp.pop %v2108
    %v2110 = vmul.f32 %v2108, %v2109
    %v2111 = vsub.f32 1.0, %v2110
    %v2112 = vmul.f32 %v2109, %v2111
    %v2113 = vadd.f32 %v2109, %v2112
    %vm2114 = vweird.f32 %v2108
    %vm2115 = vweird.f32 %v2109
    %vm2116 = vmor %vm2114, %vm2115
    %v2117 = vsel %vm2116, %v2109, %v2113
    %v2118 = vand.u32 2147483647, %v2108
    %vm2119 = vcmp.eq.f32.partialorder %v2118, 8.507059e+37
    %v2120 = vand.u32 %v2108, 2147483648
    %v2121 = vor.u32 1.1754944e-38, %v2120
    %v2122 = vsel %vm2119, %v2121, %v2117
    %v2123 = vmul.f32 1.0, %v2122
    %2124 = vmatpush.msra.mxu0 0.0
    %2125 = vmatpush.msra.mxu0 0.0
    %2126 = vmatpush.msra.mxu0 0.0
    %2127 = vmatpush.msra.mxu0 0.0
    %2128 = vmatpush.msra.mxu0 0.0
    %2129 = vmatpush.msra.mxu0 0.0
    %2130 = vmatpush.msra.mxu0 0.0
    %2131 = vmatpush.msra.mxu0 0.0
    %2132 = vmatpush.msra.mxu0 0.0
    %2133 = vmatpush.msra.mxu0 0.0
    %2134 = vmatpush.msra.mxu0 0.0
    %2135 = vmatpush.msra.mxu0 0.0
    %2136 = vmatpush.msra.mxu0 %v1466
    %2137 = vmatpush.msra.mxu0 %v1465
    %2138 = vmatpush.msra.mxu0 %v1464
    %2139 = vmatpush.msra.mxu0 %v1463
    %2140 = vmatmul.f32.gmra.mxu0 %v2042
    %v2141 = vpop.f32.mrf.mxu0
    %v2142 = vadd.f32 %v1469, %v2141
    %2143 = vdwg.mxu0
    %v2144 = vmul.f32 %v2103, %v2142
    %v2145 = vadd.f32 %v2040, %v2144
    %v2146 = vtanh.pop %v2145
    %v2147 = vsub.f32 1.0, %v2123
    %v2148 = vmul.f32 %v2147, %v2146
    %v2149 = vmul.f32 %v2123, %v2014
    %v2150 = vadd.f32 %v2148, %v2149
    %s2151 = sld [smem:[#allocation5 + $0xa]]
    %s2152 = scalar_lea.vmem %s7, %s2151
    %v2153 = vld [vmem:[%s2152] sm:$0x1]
    %s2154 = sld [smem:[#allocation5 + $0xb]]
    %s2155 = scalar_lea.vmem %s7, %s2154
    %v2156 = vld [vmem:[%s2155] sm:$0x1]
    %v2158 = vrot.slane %v2156, 7
    %v2160 = vsel %vm100, %v2153, %v2158
    %s2161 = scalar_lea.vmem %s8, %s2151
    %v2162 = vld [vmem:[%s2161] sm:$0x1]
    %s2163 = scalar_lea.vmem %s8, %s2154
    %v2164 = vld [vmem:[%s2163] sm:$0x1]
    %v2166 = vrot.slane %v2164, 7
    %v2168 = vsel %vm100, %v2162, %v2166
    %s2169 = scalar_lea.vmem %s9, %s2151
    %v2170 = vld [vmem:[%s2169] sm:$0x1]
    %s2171 = scalar_lea.vmem %s9, %s2154
    %v2172 = vld [vmem:[%s2171] sm:$0x1]
    %v2174 = vrot.slane %v2172, 7
    %v2176 = vsel %vm100, %v2170, %v2174
    %v2178 = vsel %vm118, %v2150, 0
    %2180 = vmatpush.msra.mxu0 0.0
    %2181 = vmatpush.msra.mxu0 0.0
    %2182 = vmatpush.msra.mxu0 0.0
    %2183 = vmatpush.msra.mxu0 0.0
    %2184 = vmatpush.msra.mxu0 0.0
    %2185 = vmatpush.msra.mxu0 0.0
    %2186 = vmatpush.msra.mxu0 0.0
    %2187 = vmatpush.msra.mxu0 0.0
    %2188 = vmatpush.msra.mxu0 0.0
    %2189 = vmatpush.msra.mxu0 0.0
    %2190 = vmatpush.msra.mxu0 0.0
    %2191 = vmatpush.msra.mxu0 0.0
    %2192 = vmatpush.msra.mxu0 %v1456
    %2193 = vmatpush.msra.mxu0 %v1455
    %2194 = vmatpush.msra.mxu0 %v1454
    %2195 = vmatpush.msra.mxu0 %v1453
    %2196 = vmatmul.f32.gmra.mxu0 %v2178
    %v2197 = vpop.f32.mrf.mxu0
    %v2198 = vadd.f32 0.0, %v2197
    %2199 = vdwg.mxu0
    %2200 = vmatpush.msra.mxu0 0.0
    %2201 = vmatpush.msra.mxu0 0.0
    %2202 = vmatpush.msra.mxu0 0.0
    %2203 = vmatpush.msra.mxu0 0.0
    %2204 = vmatpush.msra.mxu0 0.0
    %2205 = vmatpush.msra.mxu0 0.0
    %2206 = vmatpush.msra.mxu0 0.0
    %2207 = vmatpush.msra.mxu0 0.0
    %2208 = vmatpush.msra.mxu0 0.0
    %2209 = vmatpush.msra.mxu0 0.0
    %2210 = vmatpush.msra.mxu0 0.0
    %2211 = vmatpush.msra.mxu0 0.0
    %2212 = vmatpush.msra.mxu0 %v1461
    %2213 = vmatpush.msra.mxu0 %v1460
    %2214 = vmatpush.msra.mxu0 %v1459
    %2215 = vmatpush.msra.mxu0 %v1458
    %2216 = vmatmul.f32.gmra.mxu0 %v2178
    %v2217 = vpop.f32.mrf.mxu0
    %v2218 = vadd.f32 0.0, %v2217
    %2219 = vdwg.mxu0
    %v2220 = vadd.f32 %v2160, %v2198
    %v2221 = vxor.u32 %v2220, 2147483648
    %v2222 = vmul.f32 %v2221, 1.442695
    %v2223 = vpow.pop %v2222
    %v2224 = vadd.f32 %v2223, 1.0
    %v2225 = vrcp.pop %v2224
    %v2226 = vmul.f32 %v2224, %v2225
    %v2227 = vsub.f32 1.0, %v2226
    %v2228 = vmul.f32 %v2225, %v2227
    %v2229 = vadd.f32 %v2225, %v2228
    %vm2230 = vweird.f32 %v2224
    %vm2231 = vweird.f32 %v2225
    %vm2232 = vmor %vm2230, %vm2231
    %v2233 = vsel %vm2232, %v2225, %v2229
    %v2234 = vand.u32 2147483647, %v2224
    %vm2235 = vcmp.eq.f32.partialorder %v2234, 8.507059e+37
    %v2236 = vand.u32 %v2224, 2147483648
    %v2237 = vor.u32 1.1754944e-38, %v2236
    %v2238 = vsel %vm2235, %v2237, %v2233
    %v2239 = vmul.f32 1.0, %v2238
    %v2240 = vadd.f32 %v2168, %v2218
    %v2241 = vxor.u32 %v2240, 2147483648
    %v2242 = vmul.f32 %v2241, 1.442695
    %v2243 = vpow.pop %v2242
    %v2244 = vadd.f32 %v2243, 1.0
    %v2245 = vrcp.pop %v2244
    %v2246 = vmul.f32 %v2244, %v2245
    %v2247 = vsub.f32 1.0, %v2246
    %v2248 = vmul.f32 %v2245, %v2247
    %v2249 = vadd.f32 %v2245, %v2248
    %vm2250 = vweird.f32 %v2244
    %vm2251 = vweird.f32 %v2245
    %vm2252 = vmor %vm2250, %vm2251
    %v2253 = vsel %vm2252, %v2245, %v2249
    %v2254 = vand.u32 2147483647, %v2244
    %vm2255 = vcmp.eq.f32.partialorder %v2254, 8.507059e+37
    %v2256 = vand.u32 %v2244, 2147483648
    %v2257 = vor.u32 1.1754944e-38, %v2256
    %v2258 = vsel %vm2255, %v2257, %v2253
    %v2259 = vmul.f32 1.0, %v2258
    %2260 = vmatpush.msra.mxu0 0.0
    %2261 = vmatpush.msra.mxu0 0.0
    %2262 = vmatpush.msra.mxu0 0.0
    %2263 = vmatpush.msra.mxu0 0.0
    %2264 = vmatpush.msra.mxu0 0.0
    %2265 = vmatpush.msra.mxu0 0.0
    %2266 = vmatpush.msra.mxu0 0.0
    %2267 = vmatpush.msra.mxu0 0.0
    %2268 = vmatpush.msra.mxu0 0.0
    %2269 = vmatpush.msra.mxu0 0.0
    %2270 = vmatpush.msra.mxu0 0.0
    %2271 = vmatpush.msra.mxu0 0.0
    %2272 = vmatpush.msra.mxu0 %v1466
    %2273 = vmatpush.msra.mxu0 %v1465
    %2274 = vmatpush.msra.mxu0 %v1464
    %2275 = vmatpush.msra.mxu0 %v1463
    %2276 = vmatmul.f32.gmra.mxu0 %v2178
    %v2277 = vpop.f32.mrf.mxu0
    %v2278 = vadd.f32 %v1469, %v2277
    %2279 = vdwg.mxu0
    %v2280 = vmul.f32 %v2239, %v2278
    %v2281 = vadd.f32 %v2176, %v2280
    %v2282 = vtanh.pop %v2281
    %v2283 = vsub.f32 1.0, %v2259
    %v2284 = vmul.f32 %v2283, %v2282
    %v2285 = vmul.f32 %v2259, %v2150
    %v2286 = vadd.f32 %v2284, %v2285
    %s2287 = sld [smem:[#allocation5 + $0xc]]
    %s2288 = scalar_lea.vmem %s7, %s2287
    %v2289 = vld [vmem:[%s2288] sm:$0x1]
    %s2290 = sld [smem:[#allocation5 + $0xd]]
    %s2291 = scalar_lea.vmem %s7, %s2290
    %v2292 = vld [vmem:[%s2291] sm:$0x1]
    %v2294 = vrot.slane %v2292, 7
    %v2296 = vsel %vm100, %v2289, %v2294
    %s2297 = scalar_lea.vmem %s8, %s2287
    %v2298 = vld [vmem:[%s2297] sm:$0x1]
    %s2299 = scalar_lea.vmem %s8, %s2290
    %v2300 = vld [vmem:[%s2299] sm:$0x1]
    %v2302 = vrot.slane %v2300, 7
    %v2304 = vsel %vm100, %v2298, %v2302
    %s2305 = scalar_lea.vmem %s9, %s2287
    %v2306 = vld [vmem:[%s2305] sm:$0x1]
    %s2307 = scalar_lea.vmem %s9, %s2290
    %v2308 = vld [vmem:[%s2307] sm:$0x1]
    %v2310 = vrot.slane %v2308, 7
    %v2312 = vsel %vm100, %v2306, %v2310
    %v2314 = vsel %vm118, %v2286, 0
    %2316 = vmatpush.msra.mxu0 0.0
    %2317 = vmatpush.msra.mxu0 0.0
    %2318 = vmatpush.msra.mxu0 0.0
    %2319 = vmatpush.msra.mxu0 0.0
    %2320 = vmatpush.msra.mxu0 0.0
    %2321 = vmatpush.msra.mxu0 0.0
    %2322 = vmatpush.msra.mxu0 0.0
    %2323 = vmatpush.msra.mxu0 0.0
    %2324 = vmatpush.msra.mxu0 0.0
    %2325 = vmatpush.msra.mxu0 0.0
    %2326 = vmatpush.msra.mxu0 0.0
    %2327 = vmatpush.msra.mxu0 0.0
    %2328 = vmatpush.msra.mxu0 %v1456
    %2329 = vmatpush.msra.mxu0 %v1455
    %2330 = vmatpush.msra.mxu0 %v1454
    %2331 = vmatpush.msra.mxu0 %v1453
    %2332 = vmatmul.f32.gmra.mxu0 %v2314
    %v2333 = vpop.f32.mrf.mxu0
    %v2334 = vadd.f32 0.0, %v2333
    %2335 = vdwg.mxu0
    %2336 = vmatpush.msra.mxu0 0.0
    %2337 = vmatpush.msra.mxu0 0.0
    %2338 = vmatpush.msra.mxu0 0.0
    %2339 = vmatpush.msra.mxu0 0.0
    %2340 = vmatpush.msra.mxu0 0.0
    %2341 = vmatpush.msra.mxu0 0.0
    %2342 = vmatpush.msra.mxu0 0.0
    %2343 = vmatpush.msra.mxu0 0.0
    %2344 = vmatpush.msra.mxu0 0.0
    %2345 = vmatpush.msra.mxu0 0.0
    %2346 = vmatpush.msra.mxu0 0.0
    %2347 = vmatpush.msra.mxu0 0.0
    %2348 = vmatpush.msra.mxu0 %v1461
    %2349 = vmatpush.msra.mxu0 %v1460
    %2350 = vmatpush.msra.mxu0 %v1459
    %2351 = vmatpush.msra.mxu0 %v1458
    %2352 = vmatmul.f32.gmra.mxu0 %v2314
    %v2353 = vpop.f32.mrf.mxu0
    %v2354 = vadd.f32 0.0, %v2353
    %2355 = vdwg.mxu0
    %v2356 = vadd.f32 %v2296, %v2334
    %v2357 = vxor.u32 %v2356, 2147483648
    %v2358 = vmul.f32 %v2357, 1.442695
    %v2359 = vpow.pop %v2358
    %v2360 = vadd.f32 %v2359, 1.0
    %v2361 = vrcp.pop %v2360
    %v2362 = vmul.f32 %v2360, %v2361
    %v2363 = vsub.f32 1.0, %v2362
    %v2364 = vmul.f32 %v2361, %v2363
    %v2365 = vadd.f32 %v2361, %v2364
    %vm2366 = vweird.f32 %v2360
    %vm2367 = vweird.f32 %v2361
    %vm2368 = vmor %vm2366, %vm2367
    %v2369 = vsel %vm2368, %v2361, %v2365
    %v2370 = vand.u32 2147483647, %v2360
    %vm2371 = vcmp.eq.f32.partialorder %v2370, 8.507059e+37
    %v2372 = vand.u32 %v2360, 2147483648
    %v2373 = vor.u32 1.1754944e-38, %v2372
    %v2374 = vsel %vm2371, %v2373, %v2369
    %v2375 = vmul.f32 1.0, %v2374
    %v2376 = vadd.f32 %v2304, %v2354
    %v2377 = vxor.u32 %v2376, 2147483648
    %v2378 = vmul.f32 %v2377, 1.442695
    %v2379 = vpow.pop %v2378
    %v2380 = vadd.f32 %v2379, 1.0
    %v2381 = vrcp.pop %v2380
    %v2382 = vmul.f32 %v2380, %v2381
    %v2383 = vsub.f32 1.0, %v2382
    %v2384 = vmul.f32 %v2381, %v2383
    %v2385 = vadd.f32 %v2381, %v2384
    %vm2386 = vweird.f32 %v2380
    %vm2387 = vweird.f32 %v2381
    %vm2388 = vmor %vm2386, %vm2387
    %v2389 = vsel %vm2388, %v2381, %v2385
    %v2390 = vand.u32 2147483647, %v2380
    %vm2391 = vcmp.eq.f32.partialorder %v2390, 8.507059e+37
    %v2392 = vand.u32 %v2380, 2147483648
    %v2393 = vor.u32 1.1754944e-38, %v2392
    %v2394 = vsel %vm2391, %v2393, %v2389
    %v2395 = vmul.f32 1.0, %v2394
    %2396 = vmatpush.msra.mxu0 0.0
    %2397 = vmatpush.msra.mxu0 0.0
    %2398 = vmatpush.msra.mxu0 0.0
    %2399 = vmatpush.msra.mxu0 0.0
    %2400 = vmatpush.msra.mxu0 0.0
    %2401 = vmatpush.msra.mxu0 0.0
    %2402 = vmatpush.msra.mxu0 0.0
    %2403 = vmatpush.msra.mxu0 0.0
    %2404 = vmatpush.msra.mxu0 0.0
    %2405 = vmatpush.msra.mxu0 0.0
    %2406 = vmatpush.msra.mxu0 0.0
    %2407 = vmatpush.msra.mxu0 0.0
    %2408 = vmatpush.msra.mxu0 %v1466
    %2409 = vmatpush.msra.mxu0 %v1465
    %2410 = vmatpush.msra.mxu0 %v1464
    %2411 = vmatpush.msra.mxu0 %v1463
    %2412 = vmatmul.f32.gmra.mxu0 %v2314
    %v2413 = vpop.f32.mrf.mxu0
    %v2414 = vadd.f32 %v1469, %v2413
    %2415 = vdwg.mxu0
    %v2416 = vmul.f32 %v2375, %v2414
    %v2417 = vadd.f32 %v2312, %v2416
    %v2418 = vtanh.pop %v2417
    %v2419 = vsub.f32 1.0, %v2395
    %v2420 = vmul.f32 %v2419, %v2418
    %v2421 = vmul.f32 %v2395, %v2286
    %v2422 = vadd.f32 %v2420, %v2421
    %v2423 = vrot.slane %v1742, 6
    %v2425 = vrot.slane %v1878, 4
    %v2427 = vrot.slane %v2014, 2
    %v2429 = vrot.slane %v2286, 6
    %v2432 = vrot.slane %v2422, 4
    %vm2434 = vcmask 1041408
    %v2435 = vsel %vm2434, %v1606, %v2423
    %vm2436 = vcmask 1043456
    %v2437 = vsel %vm2436, %v2435, %v2425
    %vm2438 = vcmask 1045504
    %v2439 = vsel %vm2438, %v2437, %v2427
    %v2440 = vsel %vm2434, %v2150, %v2429
    %v2441 = vsel %vm2436, %v2440, %v2432
    %v2442 = vld [vmem:[%s12] sm:$0xff]
    %v2443 = vld [vmem:[%s12 + $0x8] sm:$0xff]
    %v2444 = vld [vmem:[%s12 + $0x10] sm:$0xff]
    %v2445 = vld [vmem:[%s12 + $0x18] sm:$0xff]
    %v2446 = vld [vmem:[%s13] sm:$0x1]
    %v2448 = vperm.slane %v2446, 0
    %v2451 = vsel %vm118, %v2439, 0
    %v2454 = vsel %vm118, %v2441, 0
    %2456 = vmatpush.msra.mxu0 0.0
    %2457 = vmatpush.msra.mxu0 0.0
    %2458 = vmatpush.msra.mxu0 0.0
    %2459 = vmatpush.msra.mxu0 0.0
    %2460 = vmatpush.msra.mxu0 0.0
    %2461 = vmatpush.msra.mxu0 0.0
    %2462 = vmatpush.msra.mxu0 0.0
    %2463 = vmatpush.msra.mxu0 0.0
    %2464 = vmatpush.msra.mxu0 0.0
    %2465 = vmatpush.msra.mxu0 0.0
    %2466 = vmatpush.msra.mxu0 0.0
    %2467 = vmatpush.msra.mxu0 0.0
    %2468 = vmatpush.msra.mxu0 %v2445
    %2469 = vmatpush.msra.mxu0 %v2444
    %2470 = vmatpush.msra.mxu0 %v2443
    %2471 = vmatpush.msra.mxu0 %v2442
    %2472 = vmatmul.f32.gmra.mxu0 %v2451
    %v2473 = vpop.f32.mrf.mxu0
    %v2474 = vadd.f32 %v2448, %v2473
    %2475 = vmatmul.f32.gmra.mxu0 %v2454
    %v2476 = vpop.f32.mrf.mxu0
    %v2477 = vadd.f32 %v2448, %v2476
    %2478 = vdwg.mxu0
    %v2481 = vrot.slane %v2474, 2
    %v2482 = vrot.slane %v2474, 4
    %v2483 = vrot.slane %v2474, 6
    %v2484 = vrot.slane %v2477, 2
    %v2485 = vrot.slane %v2477, 4
    %2491 = vst [vmem:[#allocation7] sm:$0x3] 0.0
    %2492 = vst [vmem:[#allocation7 + $0x2] sm:$0x3] %v2474
    %2493 = vst [vmem:[#allocation7 + $0x4] sm:$0x3] %v2481
    %2494 = vst [vmem:[#allocation7 + $0x6] sm:$0x3] %v2482
    %2495 = vst [vmem:[#allocation7 + $0x8] sm:$0x3] %v2483
    %2496 = vst [vmem:[#allocation7 + $0xa] sm:$0x3] %v2477
    %2497 = vst [vmem:[#allocation7 + $0xc] sm:$0x3] %v2484
    %2498 = vst [vmem:[#allocation7 + $0xe] sm:$0x3] %v2485
    // Predicated region
    $region66: #{encoder_decoder_forward.1} parent=1 // pred_check
      _
    $region67: #{encoder_decoder_forward.1} parent=1 // pred_check_branch
      %2500 = sbr.rel (0) target = $region69
    $region68: #{encoder_decoder_forward.1} parent=1 // pred_region
      %2502 = vsyncadd [#allocation3], 0
      %s2503 = sshll.u32 [#allocation7], 4
      %s2504 = int_to_ptr.vmem [resolvable:$true] %s2503
      %s2505 = sshll.u32 %s14, 4
      %s2506 = int_to_ptr.hbm [resolvable:$true] %s2505
      %2511 = dma.vmem_to_hbm [thread:$0]  %s2504, 256, %s2506, [#allocation3], 32, 32, 2
    $region69: #{encoder_decoder_forward.1} parent=1 // pred_fallthru
      _
    // Predicated region
    $region70: #{encoder_decoder_forward.1} parent=1 // pred_check
      _
    $region71: #{encoder_decoder_forward.1} parent=1 // pred_check_branch
      %2513 = sbr.rel (0) target = $region73
    $region72: #{encoder_decoder_forward.1} parent=1 // pred_region
      %2515 = dma.done [#allocation3], 256
    $region73: #{encoder_decoder_forward.1} parent=1 // pred_fallthru
      _
    %2516 = vsyncpa [#allocation3], 1
    %2517 = vsyncpa [#allocation4], 1
    %2518 = vsyncpa [#allocation6], 1

</llo_original>
